<compile_context>
chip_gen: v7x
topology: tpu7x:2x2x1
jax: 0.10.0
libtpu: 0.0.40
codegen_flags: <defaults>
</compile_context>

<pallas_src>
import functools

import jax
import jax.numpy as jnp
from jax.experimental import pallas as pl
from jax.experimental.pallas import tpu as pltpu

FC_MID = 25  # hidden width of the FC head (Linear(H, 25) -> ReLU -> Linear(25, O))


def _r8(n):
    return ((n + 7) // 8) * 8


# ---------------------------------------------------------------------------
# Fused kernel: both GRU layers + FC head, one invocation, 4 input slabs.
#
#   x_ref  : (T*BP, I)   time-major rows (row = t*BP + b), batch padded to BP
#   w_ref  : (Wrows, 3H) row-stacked [w_ih_l0^T | w_hh_l0^T | w_ih_l1^T | w_hh_l1^T | ...]
#   b_ref  : (2*L, 3H)   row 2l   = [b_ir+b_hr | b_iz+b_hz | b_in]  (input-side bias)
#                        row 2l+1 = [b_hn | 0 ... 0]
#   fc_ref : (H+48, WL)  rows 0:H = w1^T, row H = b1, rows H+8:H+8+25 = w2^T, row H+40 = b2
#   out_ref: (BP, O)
# ---------------------------------------------------------------------------
def _fused_gru_kernel(x_ref, w_ref, b_ref, fc_ref, out_ref, *,
                      num_layers, seq_len, batch_pad, hidden, in_size, out_size):
    T, BP, H = seq_len, batch_pad, hidden
    H2, H3 = 2 * H, 3 * H

    # Static row offsets into the weight slab (mirrors pack_params).
    w_offsets = []
    off = 0
    for layer in range(num_layers):
        isz = in_size if layer == 0 else H
        w_offsets.append((off, isz, off + _r8(isz)))  # (wi_row, in_rows, wh_row)
        off += _r8(isz) + _r8(H)

    x = x_ref[...]                                     # (T*BP, I)

    # ---- Layer-0 input projection: ONE dense (T*BP, I) @ (I, 3H) matmul -------------
    wi0_row, isz0, _ = w_offsets[0]
    gi_all = jnp.dot(x, w_ref[wi0_row:wi0_row + isz0, :],
                     preferred_element_type=jnp.float32) + b_ref[0:1, :]
    gi_steps = [gi_all[t * BP:(t + 1) * BP, :] for t in range(T)]  # 8-sublane aligned

    h = None
    for layer in range(num_layers):
        _, _, wh_row = w_offsets[layer]
        whh = w_ref[wh_row:wh_row + H, :]              # (H, 3H) fused recurrent weights
        bhn = jnp.broadcast_to(b_ref[2 * layer + 1:2 * layer + 2, 0:H], (BP, H))

        last = (layer + 1 == num_layers)
        if not last:
            nwi_row, nisz, _ = w_offsets[layer + 1]
            wi_next = w_ref[nwi_row:nwi_row + nisz, :]                 # (H, 3H)
            bi_next = jnp.broadcast_to(
                b_ref[2 * (layer + 1):2 * (layer + 1) + 1, :], (BP, H3))
            gi_next = []

        h = jnp.zeros((BP, H), jnp.float32)
        # Fully unrolled recurrence (T static): LLO co-issues MXU / VPU / EUP across steps.
        for t in range(T):
            gi = gi_steps[t]                                           # (BP, 3H)
            gh = jnp.dot(h, whh, preferred_element_type=jnp.float32)   # ONE MXU issue/step
            rz = jax.nn.sigmoid(gi[:, 0:H2] + gh[:, 0:H2])             # single EUP push r|z
            r = rz[:, 0:H]
            z = rz[:, H:H2]
            n = jnp.tanh(gi[:, H2:H3] + r * (gh[:, H2:H3] + bhn))
            h = (1.0 - z) * n + z * h
            if not last:
                # Next layer's input projection, interleaved: depends only on h_t, so it
                # hides under the next step's serial W_hh latency (and removes the concat).
                gi_next.append(jnp.dot(h, wi_next, preferred_element_type=jnp.float32)
                               + bi_next)
        if not last:
            gi_steps = gi_next

    # ---- FC head on the final hidden state: Linear(H,25) -> ReLU -> Linear(25,O) ----
    w2_row = H + 8
    b2_row = H + 8 + _r8(FC_MID)
    w1 = fc_ref[0:H, :]                                # (H, WL)
    b1 = fc_ref[H:H + 1, :]
    w2 = fc_ref[w2_row:w2_row + FC_MID, :]             # (25, WL), cols >= O are zero
    b2 = fc_ref[b2_row:b2_row + 1, :]

    z1 = jnp.maximum(jnp.dot(h, w1, preferred_element_type=jnp.float32) + b1, 0.0)
    out = jnp.dot(z1[:, 0:FC_MID], w2, preferred_element_type=jnp.float32) + b2
    out_ref[...] = out[:, 0:out_size]                  # (BP, O); padding rows kept


# ---------------------------------------------------------------------------
# One-time (model-load) parameter packing: all transposes / gate splits / bias
# combining / padding happen here, NOT in the per-call forward.
# ---------------------------------------------------------------------------
def pack_params(params):
    gru = params["gru"]
    fc = params["fc"]
    H = gru[0]["w_hh"].shape[1]
    H2, H3 = 2 * H, 3 * H
    O = fc["w2"].shape[0]
    w_lane = max(FC_MID, O)

    w_rows, b_rows = [], []
    for lp in gru:
        w_ih_t = lp["w_ih"].T.astype(jnp.float32)      # (in, 3H), lanes [r|z|n]
        w_hh_t = lp["w_hh"].T.astype(jnp.float32)      # (H, 3H)
        for blk in (w_ih_t, w_hh_t):
            w_rows.append(blk)
            pad = _r8(blk.shape[0]) - blk.shape[0]
            if pad:
                w_rows.append(jnp.zeros((pad, H3), jnp.float32))
        b_ih = lp["b_ih"].astype(jnp.float32)
        b_hh = lp["b_hh"].astype(jnp.float32)
        bias_i = jnp.concatenate([b_ih[:H2] + b_hh[:H2], b_ih[H2:H3]]).reshape(1, H3)
        b_hn = jnp.concatenate([b_hh[H2:H3],
                                jnp.zeros((H2,), jnp.float32)]).reshape(1, H3)
        b_rows += [bias_i, b_hn]

    def padl(a):
        return jnp.pad(a.astype(jnp.float32), ((0, 0), (0, w_lane - a.shape[-1])))

    w1t = fc["w1"].T                                   # (H, 25)
    w2t = fc["w2"].T                                   # (25, O)
    fc_rows = [
        padl(w1t),                                            # rows 0:H
        padl(fc["b1"].reshape(1, -1)),                        # row H
        jnp.zeros((7, w_lane), jnp.float32),                  # pad to H+8
        padl(w2t),                                            # rows H+8 : H+8+25
        jnp.zeros((_r8(FC_MID) - FC_MID, w_lane), jnp.float32),
        padl(fc["b2"].reshape(1, -1)),                        # row H+40
        jnp.zeros((7, w_lane), jnp.float32),
    ]

    return {
        "w": jnp.concatenate(w_rows, axis=0),          # (sum rows, 3H)
        "b": jnp.concatenate(b_rows, axis=0),          # (2L, 3H)
        "fc": jnp.concatenate(fc_rows, axis=0),        # (H+48, w_lane)
    }


# ---------------------------------------------------------------------------
# Per-call forward: only x relayout (3 tiny ops) + one pallas_call.
# ---------------------------------------------------------------------------
@functools.partial(jax.jit, static_argnames=("out_size",))
def gru_model_forward(packed, x_btf, *, out_size):
    x_btf = x_btf.astype(jnp.float32)
    B, T, I = x_btf.shape
    num_layers = packed["b"].shape[0] // 2
    H = packed["b"].shape[1] // 3
    BP = _r8(B)                                        # pad batch to sublane multiple

    x_tm = jnp.transpose(x_btf, (1, 0, 2))             # (T, B, I), tiny
    x_tm = jnp.pad(x_tm, ((0, 0), (0, BP - B), (0, 0)))
    x_flat = x_tm.reshape(T * BP, I)                   # rows ordered t*BP + b

    vmem = pl.BlockSpec(memory_space=pltpu.MemorySpace.VMEM)
    kernel = functools.partial(
        _fused_gru_kernel,
        num_layers=num_layers, seq_len=T, batch_pad=BP, hidden=H,
        in_size=I, out_size=out_size)

    out_p = pl.pallas_call(
        kernel,
        out_shape=jax.ShapeDtypeStruct((BP, out_size), jnp.float32),
        in_specs=[vmem, vmem, vmem, vmem],
        out_specs=vmem,
    )(x_flat, packed["w"], packed["b"], packed["fc"])
    return out_p[:B]                                   # drop batch-padding rows


# ---------------------------------------------------------------------------
# Parameter init (deterministic, PyTorch-style U(-1/sqrt(fan), 1/sqrt(fan))),
# stored in the nn.GRU / nn.Linear layout; pack_params re-lays them out once.
# ---------------------------------------------------------------------------
def init_params(key, input_size, hidden_size, num_layers, output_size):
    k = 1.0 / float(hidden_size) ** 0.5

    def uni(key, shape, bound):
        return jax.random.uniform(key, shape, jnp.float32, -bound, bound)

    params = {"gru": [], "fc": {}}
    for layer in range(num_layers):
        in_sz = input_size if layer == 0 else hidden_size
        key, k1, k2, k3, k4 = jax.random.split(key, 5)
        params["gru"].append({
            "w_ih": uni(k1, (3 * hidden_size, in_sz), k),
            "w_hh": uni(k2, (3 * hidden_size, hidden_size), k),
            "b_ih": uni(k3, (3 * hidden_size,), k),
            "b_hh": uni(k4, (3 * hidden_size,), k),
        })
    k1fc = 1.0 / float(hidden_size) ** 0.5
    k2fc = 1.0 / float(FC_MID) ** 0.5
    key, kw1, kb1, kw2, kb2 = jax.random.split(key, 5)
    params["fc"] = {
        "w1": uni(kw1, (FC_MID, hidden_size), k1fc),
        "b1": uni(kb1, (FC_MID,), k1fc),
        "w2": uni(kw2, (output_size, FC_MID), k2fc),
        "b2": uni(kb2, (output_size,), k2fc),
    }
    return params


# ---------------------------------------------------------------------------
# Pure-JAX reference (matches PyTorch GRU equations) for a correctness check.
# ---------------------------------------------------------------------------
def gru_model_reference(params, x_btf):
    x = jnp.transpose(x_btf, (1, 0, 2)).astype(jnp.float32)   # (T, B, I)
    T, B, _ = x.shape
    for lp in params["gru"]:
        H = lp["w_hh"].shape[1]
        h = jnp.zeros((B, H), jnp.float32)
        outs = []
        for t in range(T):
            gi = x[t] @ lp["w_ih"].T + lp["b_ih"]
            gh = h @ lp["w_hh"].T + lp["b_hh"]
            i_r, i_z, i_n = gi[:, 0:H], gi[:, H:2 * H], gi[:, 2 * H:3 * H]
            h_r, h_z, h_n = gh[:, 0:H], gh[:, H:2 * H], gh[:, 2 * H:3 * H]
            r = jax.nn.sigmoid(i_r + h_r)
            z = jax.nn.sigmoid(i_z + h_z)
            n = jnp.tanh(i_n + r * h_n)
            h = (1.0 - z) * n + z * h
            outs.append(h)
        x = jnp.stack(outs, axis=0)
    fc = params["fc"]
    zz = jnp.maximum(x[-1] @ fc["w1"].T + fc["b1"], 0.0)
    return zz @ fc["w2"].T + fc["b2"]


if __name__ == "__main__":
    input_size, hidden_size, num_layers, output_size = 16, 32, 2, 4
    batch, seq = 2, 8

    key = jax.random.PRNGKey(0)
    key, pkey, xkey = jax.random.split(key, 3)
    params = init_params(pkey, input_size, hidden_size, num_layers, output_size)
    x = jax.random.normal(xkey, (batch, seq, input_size), jnp.float32)

    packed = pack_params(params)           # one-time, model-load-time re-layout

    out = gru_model_forward(packed, x, out_size=output_size)
    out = jax.block_until_ready(out)
    assert out.shape == (batch, output_size)

    ref = jax.block_until_ready(gru_model_reference(params, x))
    assert bool(jnp.allclose(out, ref, atol=1e-4, rtol=1e-4))

    print("KERNEL_OK")
</pallas_src>

<mosaic_0001>
module attributes {stable_mosaic.version = 11 : i64} {
  func.func @_fused_gru_kernel(%arg0: memref<64x16xf32, #tpu.memory_space<vmem>>, %arg1: memref<112x96xf32, #tpu.memory_space<vmem>>, %arg2: memref<4x96xf32, #tpu.memory_space<vmem>>, %arg3: memref<80x25xf32, #tpu.memory_space<vmem>>, %arg4: memref<8x4xf32, #tpu.memory_space<vmem>>) attributes {dimension_semantics = [], scalar_prefetch = 0 : i64, scratch_operands = 0 : i64, tpu.core_type = #tpu.core_type<tc>} {
    %c0 = arith.constant 0 : index
    %c0_0 = arith.constant 0 : index
    %0 = vector.load %arg0[%c0, %c0_0] : memref<64x16xf32, #tpu.memory_space<vmem>>, vector<64x16xf32>
    %c0_1 = arith.constant 0 : index
    %c0_2 = arith.constant 0 : index
    %1 = vector.load %arg1[%c0_1, %c0_2] : memref<112x96xf32, #tpu.memory_space<vmem>>, vector<16x96xf32>
    %cst = arith.constant dense<0.000000e+00> : vector<64x96xf32>
    %2 = tpu.matmul %0, %1, %cst {dimension_numbers = #tpu.dot_dimension_numbers<[1], [0], [0], [1], [0, 0, 1, 1], [], []>} : vector<64x16xf32>, vector<16x96xf32>, vector<64x96xf32> -> vector<64x96xf32>
    %c0_3 = arith.constant 0 : index
    %c0_4 = arith.constant 0 : index
    %3 = vector.load %arg2[%c0_3, %c0_4] : memref<4x96xf32, #tpu.memory_space<vmem>>, vector<1x96xf32>
    %4 = vector.broadcast %3 : vector<1x96xf32> to vector<64x96xf32>
    %5 = arith.addf %2, %4 : vector<64x96xf32>
    %6 = vector.extract_strided_slice %5 {offsets = [0, 0], sizes = [8, 96], strides = [1, 1]} : vector<64x96xf32> to vector<8x96xf32>
    %7 = vector.extract_strided_slice %5 {offsets = [8, 0], sizes = [8, 96], strides = [1, 1]} : vector<64x96xf32> to vector<8x96xf32>
    %8 = vector.extract_strided_slice %5 {offsets = [16, 0], sizes = [8, 96], strides = [1, 1]} : vector<64x96xf32> to vector<8x96xf32>
    %9 = vector.extract_strided_slice %5 {offsets = [24, 0], sizes = [8, 96], strides = [1, 1]} : vector<64x96xf32> to vector<8x96xf32>
    %10 = vector.extract_strided_slice %5 {offsets = [32, 0], sizes = [8, 96], strides = [1, 1]} : vector<64x96xf32> to vector<8x96xf32>
    %11 = vector.extract_strided_slice %5 {offsets = [40, 0], sizes = [8, 96], strides = [1, 1]} : vector<64x96xf32> to vector<8x96xf32>
    %12 = vector.extract_strided_slice %5 {offsets = [48, 0], sizes = [8, 96], strides = [1, 1]} : vector<64x96xf32> to vector<8x96xf32>
    %13 = vector.extract_strided_slice %5 {offsets = [56, 0], sizes = [8, 96], strides = [1, 1]} : vector<64x96xf32> to vector<8x96xf32>
    %c16 = arith.constant 16 : index
    %c0_5 = arith.constant 0 : index
    %14 = vector.load %arg1[%c16, %c0_5] : memref<112x96xf32, #tpu.memory_space<vmem>>, vector<32x96xf32>
    %c1 = arith.constant 1 : index
    %c0_6 = arith.constant 0 : index
    %15 = vector.load %arg2[%c1, %c0_6] : memref<4x96xf32, #tpu.memory_space<vmem>>, vector<1x32xf32>
    %16 = vector.shape_cast %15 : vector<1x32xf32> to vector<1x32xf32>
    %17 = vector.broadcast %16 : vector<1x32xf32> to vector<8x32xf32>
    %c48 = arith.constant 48 : index
    %c0_7 = arith.constant 0 : index
    %18 = vector.load %arg1[%c48, %c0_7] : memref<112x96xf32, #tpu.memory_space<vmem>>, vector<32x96xf32>
    %c2 = arith.constant 2 : index
    %c0_8 = arith.constant 0 : index
    %19 = vector.load %arg2[%c2, %c0_8] : memref<4x96xf32, #tpu.memory_space<vmem>>, vector<1x96xf32>
    %20 = vector.shape_cast %19 : vector<1x96xf32> to vector<1x96xf32>
    %21 = vector.broadcast %20 : vector<1x96xf32> to vector<8x96xf32>
    %cst_9 = arith.constant 0.000000e+00 : f32
    %22 = vector.broadcast %cst_9 : f32 to vector<8x32xf32>
    %cst_10 = arith.constant dense<0.000000e+00> : vector<8x96xf32>
    %23 = tpu.matmul %22, %14, %cst_10 {dimension_numbers = #tpu.dot_dimension_numbers<[1], [0], [0], [1], [0, 0, 1, 1], [], []>} : vector<8x32xf32>, vector<32x96xf32>, vector<8x96xf32> -> vector<8x96xf32>
    %24 = vector.extract_strided_slice %6 {offsets = [0, 0], sizes = [8, 64], strides = [1, 1]} : vector<8x96xf32> to vector<8x64xf32>
    %25 = vector.extract_strided_slice %23 {offsets = [0, 0], sizes = [8, 64], strides = [1, 1]} : vector<8x96xf32> to vector<8x64xf32>
    %26 = arith.addf %24, %25 : vector<8x64xf32>
    %27 = arith.negf %26 : vector<8x64xf32>
    %28 = math.exp %27 : vector<8x64xf32>
    %cst_11 = arith.constant 1.000000e+00 : f32
    %29 = vector.broadcast %cst_11 : f32 to vector<8x64xf32>
    %30 = arith.addf %29, %28 : vector<8x64xf32>
    %31 = arith.divf %29, %30 : vector<8x64xf32>
    %32 = vector.extract_strided_slice %31 {offsets = [0, 0], sizes = [8, 32], strides = [1, 1]} : vector<8x64xf32> to vector<8x32xf32>
    %33 = vector.extract_strided_slice %31 {offsets = [0, 32], sizes = [8, 32], strides = [1, 1]} : vector<8x64xf32> to vector<8x32xf32>
    %34 = vector.extract_strided_slice %6 {offsets = [0, 64], sizes = [8, 32], strides = [1, 1]} : vector<8x96xf32> to vector<8x32xf32>
    %35 = vector.extract_strided_slice %23 {offsets = [0, 64], sizes = [8, 32], strides = [1, 1]} : vector<8x96xf32> to vector<8x32xf32>
    %36 = arith.addf %35, %17 : vector<8x32xf32>
    %37 = arith.mulf %32, %36 : vector<8x32xf32>
    %38 = arith.addf %34, %37 : vector<8x32xf32>
    %39 = math.tanh %38 : vector<8x32xf32>
    %cst_12 = arith.constant 1.000000e+00 : f32
    %40 = vector.broadcast %cst_12 : f32 to vector<8x32xf32>
    %41 = arith.subf %40, %33 : vector<8x32xf32>
    %42 = arith.mulf %41, %39 : vector<8x32xf32>
    %43 = arith.mulf %33, %22 : vector<8x32xf32>
    %44 = arith.addf %42, %43 : vector<8x32xf32>
    %cst_13 = arith.constant dense<0.000000e+00> : vector<8x96xf32>
    %45 = tpu.matmul %44, %18, %cst_13 {dimension_numbers = #tpu.dot_dimension_numbers<[1], [0], [0], [1], [0, 0, 1, 1], [], []>} : vector<8x32xf32>, vector<32x96xf32>, vector<8x96xf32> -> vector<8x96xf32>
    %46 = arith.addf %45, %21 : vector<8x96xf32>
    %cst_14 = arith.constant dense<0.000000e+00> : vector<8x96xf32>
    %47 = tpu.matmul %44, %14, %cst_14 {dimension_numbers = #tpu.dot_dimension_numbers<[1], [0], [0], [1], [0, 0, 1, 1], [], []>} : vector<8x32xf32>, vector<32x96xf32>, vector<8x96xf32> -> vector<8x96xf32>
    %48 = vector.extract_strided_slice %7 {offsets = [0, 0], sizes = [8, 64], strides = [1, 1]} : vector<8x96xf32> to vector<8x64xf32>
    %49 = vector.extract_strided_slice %47 {offsets = [0, 0], sizes = [8, 64], strides = [1, 1]} : vector<8x96xf32> to vector<8x64xf32>
    %50 = arith.addf %48, %49 : vector<8x64xf32>
    %51 = arith.negf %50 : vector<8x64xf32>
    %52 = math.exp %51 : vector<8x64xf32>
    %cst_15 = arith.constant 1.000000e+00 : f32
    %53 = vector.broadcast %cst_15 : f32 to vector<8x64xf32>
    %54 = arith.addf %53, %52 : vector<8x64xf32>
    %55 = arith.divf %53, %54 : vector<8x64xf32>
    %56 = vector.extract_strided_slice %55 {offsets = [0, 0], sizes = [8, 32], strides = [1, 1]} : vector<8x64xf32> to vector<8x32xf32>
    %57 = vector.extract_strided_slice %55 {offsets = [0, 32], sizes = [8, 32], strides = [1, 1]} : vector<8x64xf32> to vector<8x32xf32>
    %58 = vector.extract_strided_slice %7 {offsets = [0, 64], sizes = [8, 32], strides = [1, 1]} : vector<8x96xf32> to vector<8x32xf32>
    %59 = vector.extract_strided_slice %47 {offsets = [0, 64], sizes = [8, 32], strides = [1, 1]} : vector<8x96xf32> to vector<8x32xf32>
    %60 = arith.addf %59, %17 : vector<8x32xf32>
    %61 = arith.mulf %56, %60 : vector<8x32xf32>
    %62 = arith.addf %58, %61 : vector<8x32xf32>
    %63 = math.tanh %62 : vector<8x32xf32>
    %cst_16 = arith.constant 1.000000e+00 : f32
    %64 = vector.broadcast %cst_16 : f32 to vector<8x32xf32>
    %65 = arith.subf %64, %57 : vector<8x32xf32>
    %66 = arith.mulf %65, %63 : vector<8x32xf32>
    %67 = arith.mulf %57, %44 : vector<8x32xf32>
    %68 = arith.addf %66, %67 : vector<8x32xf32>
    %cst_17 = arith.constant dense<0.000000e+00> : vector<8x96xf32>
    %69 = tpu.matmul %68, %18, %cst_17 {dimension_numbers = #tpu.dot_dimension_numbers<[1], [0], [0], [1], [0, 0, 1, 1], [], []>} : vector<8x32xf32>, vector<32x96xf32>, vector<8x96xf32> -> vector<8x96xf32>
    %70 = arith.addf %69, %21 : vector<8x96xf32>
    %cst_18 = arith.constant dense<0.000000e+00> : vector<8x96xf32>
    %71 = tpu.matmul %68, %14, %cst_18 {dimension_numbers = #tpu.dot_dimension_numbers<[1], [0], [0], [1], [0, 0, 1, 1], [], []>} : vector<8x32xf32>, vector<32x96xf32>, vector<8x96xf32> -> vector<8x96xf32>
    %72 = vector.extract_strided_slice %8 {offsets = [0, 0], sizes = [8, 64], strides = [1, 1]} : vector<8x96xf32> to vector<8x64xf32>
    %73 = vector.extract_strided_slice %71 {offsets = [0, 0], sizes = [8, 64], strides = [1, 1]} : vector<8x96xf32> to vector<8x64xf32>
    %74 = arith.addf %72, %73 : vector<8x64xf32>
    %75 = arith.negf %74 : vector<8x64xf32>
    %76 = math.exp %75 : vector<8x64xf32>
    %cst_19 = arith.constant 1.000000e+00 : f32
    %77 = vector.broadcast %cst_19 : f32 to vector<8x64xf32>
    %78 = arith.addf %77, %76 : vector<8x64xf32>
    %79 = arith.divf %77, %78 : vector<8x64xf32>
    %80 = vector.extract_strided_slice %79 {offsets = [0, 0], sizes = [8, 32], strides = [1, 1]} : vector<8x64xf32> to vector<8x32xf32>
    %81 = vector.extract_strided_slice %79 {offsets = [0, 32], sizes = [8, 32], strides = [1, 1]} : vector<8x64xf32> to vector<8x32xf32>
    %82 = vector.extract_strided_slice %8 {offsets = [0, 64], sizes = [8, 32], strides = [1, 1]} : vector<8x96xf32> to vector<8x32xf32>
    %83 = vector.extract_strided_slice %71 {offsets = [0, 64], sizes = [8, 32], strides = [1, 1]} : vector<8x96xf32> to vector<8x32xf32>
    %84 = arith.addf %83, %17 : vector<8x32xf32>
    %85 = arith.mulf %80, %84 : vector<8x32xf32>
    %86 = arith.addf %82, %85 : vector<8x32xf32>
    %87 = math.tanh %86 : vector<8x32xf32>
    %cst_20 = arith.constant 1.000000e+00 : f32
    %88 = vector.broadcast %cst_20 : f32 to vector<8x32xf32>
    %89 = arith.subf %88, %81 : vector<8x32xf32>
    %90 = arith.mulf %89, %87 : vector<8x32xf32>
    %91 = arith.mulf %81, %68 : vector<8x32xf32>
    %92 = arith.addf %90, %91 : vector<8x32xf32>
    %cst_21 = arith.constant dense<0.000000e+00> : vector<8x96xf32>
    %93 = tpu.matmul %92, %18, %cst_21 {dimension_numbers = #tpu.dot_dimension_numbers<[1], [0], [0], [1], [0, 0, 1, 1], [], []>} : vector<8x32xf32>, vector<32x96xf32>, vector<8x96xf32> -> vector<8x96xf32>
    %94 = arith.addf %93, %21 : vector<8x96xf32>
    %cst_22 = arith.constant dense<0.000000e+00> : vector<8x96xf32>
    %95 = tpu.matmul %92, %14, %cst_22 {dimension_numbers = #tpu.dot_dimension_numbers<[1], [0], [0], [1], [0, 0, 1, 1], [], []>} : vector<8x32xf32>, vector<32x96xf32>, vector<8x96xf32> -> vector<8x96xf32>
    %96 = vector.extract_strided_slice %9 {offsets = [0, 0], sizes = [8, 64], strides = [1, 1]} : vector<8x96xf32> to vector<8x64xf32>
    %97 = vector.extract_strided_slice %95 {offsets = [0, 0], sizes = [8, 64], strides = [1, 1]} : vector<8x96xf32> to vector<8x64xf32>
    %98 = arith.addf %96, %97 : vector<8x64xf32>
    %99 = arith.negf %98 : vector<8x64xf32>
    %100 = math.exp %99 : vector<8x64xf32>
    %cst_23 = arith.constant 1.000000e+00 : f32
    %101 = vector.broadcast %cst_23 : f32 to vector<8x64xf32>
    %102 = arith.addf %101, %100 : vector<8x64xf32>
    %103 = arith.divf %101, %102 : vector<8x64xf32>
    %104 = vector.extract_strided_slice %103 {offsets = [0, 0], sizes = [8, 32], strides = [1, 1]} : vector<8x64xf32> to vector<8x32xf32>
    %105 = vector.extract_strided_slice %103 {offsets = [0, 32], sizes = [8, 32], strides = [1, 1]} : vector<8x64xf32> to vector<8x32xf32>
    %106 = vector.extract_strided_slice %9 {offsets = [0, 64], sizes = [8, 32], strides = [1, 1]} : vector<8x96xf32> to vector<8x32xf32>
    %107 = vector.extract_strided_slice %95 {offsets = [0, 64], sizes = [8, 32], strides = [1, 1]} : vector<8x96xf32> to vector<8x32xf32>
    %108 = arith.addf %107, %17 : vector<8x32xf32>
    %109 = arith.mulf %104, %108 : vector<8x32xf32>
    %110 = arith.addf %106, %109 : vector<8x32xf32>
    %111 = math.tanh %110 : vector<8x32xf32>
    %cst_24 = arith.constant 1.000000e+00 : f32
    %112 = vector.broadcast %cst_24 : f32 to vector<8x32xf32>
    %113 = arith.subf %112, %105 : vector<8x32xf32>
    %114 = arith.mulf %113, %111 : vector<8x32xf32>
    %115 = arith.mulf %105, %92 : vector<8x32xf32>
    %116 = arith.addf %114, %115 : vector<8x32xf32>
    %cst_25 = arith.constant dense<0.000000e+00> : vector<8x96xf32>
    %117 = tpu.matmul %116, %18, %cst_25 {dimension_numbers = #tpu.dot_dimension_numbers<[1], [0], [0], [1], [0, 0, 1, 1], [], []>} : vector<8x32xf32>, vector<32x96xf32>, vector<8x96xf32> -> vector<8x96xf32>
    %118 = arith.addf %117, %21 : vector<8x96xf32>
    %cst_26 = arith.constant dense<0.000000e+00> : vector<8x96xf32>
    %119 = tpu.matmul %116, %14, %cst_26 {dimension_numbers = #tpu.dot_dimension_numbers<[1], [0], [0], [1], [0, 0, 1, 1], [], []>} : vector<8x32xf32>, vector<32x96xf32>, vector<8x96xf32> -> vector<8x96xf32>
    %120 = vector.extract_strided_slice %10 {offsets = [0, 0], sizes = [8, 64], strides = [1, 1]} : vector<8x96xf32> to vector<8x64xf32>
    %121 = vector.extract_strided_slice %119 {offsets = [0, 0], sizes = [8, 64], strides = [1, 1]} : vector<8x96xf32> to vector<8x64xf32>
    %122 = arith.addf %120, %121 : vector<8x64xf32>
    %123 = arith.negf %122 : vector<8x64xf32>
    %124 = math.exp %123 : vector<8x64xf32>
    %cst_27 = arith.constant 1.000000e+00 : f32
    %125 = vector.broadcast %cst_27 : f32 to vector<8x64xf32>
    %126 = arith.addf %125, %124 : vector<8x64xf32>
    %127 = arith.divf %125, %126 : vector<8x64xf32>
    %128 = vector.extract_strided_slice %127 {offsets = [0, 0], sizes = [8, 32], strides = [1, 1]} : vector<8x64xf32> to vector<8x32xf32>
    %129 = vector.extract_strided_slice %127 {offsets = [0, 32], sizes = [8, 32], strides = [1, 1]} : vector<8x64xf32> to vector<8x32xf32>
    %130 = vector.extract_strided_slice %10 {offsets = [0, 64], sizes = [8, 32], strides = [1, 1]} : vector<8x96xf32> to vector<8x32xf32>
    %131 = vector.extract_strided_slice %119 {offsets = [0, 64], sizes = [8, 32], strides = [1, 1]} : vector<8x96xf32> to vector<8x32xf32>
    %132 = arith.addf %131, %17 : vector<8x32xf32>
    %133 = arith.mulf %128, %132 : vector<8x32xf32>
    %134 = arith.addf %130, %133 : vector<8x32xf32>
    %135 = math.tanh %134 : vector<8x32xf32>
    %cst_28 = arith.constant 1.000000e+00 : f32
    %136 = vector.broadcast %cst_28 : f32 to vector<8x32xf32>
    %137 = arith.subf %136, %129 : vector<8x32xf32>
    %138 = arith.mulf %137, %135 : vector<8x32xf32>
    %139 = arith.mulf %129, %116 : vector<8x32xf32>
    %140 = arith.addf %138, %139 : vector<8x32xf32>
    %cst_29 = arith.constant dense<0.000000e+00> : vector<8x96xf32>
    %141 = tpu.matmul %140, %18, %cst_29 {dimension_numbers = #tpu.dot_dimension_numbers<[1], [0], [0], [1], [0, 0, 1, 1], [], []>} : vector<8x32xf32>, vector<32x96xf32>, vector<8x96xf32> -> vector<8x96xf32>
    %142 = arith.addf %141, %21 : vector<8x96xf32>
    %cst_30 = arith.constant dense<0.000000e+00> : vector<8x96xf32>
    %143 = tpu.matmul %140, %14, %cst_30 {dimension_numbers = #tpu.dot_dimension_numbers<[1], [0], [0], [1], [0, 0, 1, 1], [], []>} : vector<8x32xf32>, vector<32x96xf32>, vector<8x96xf32> -> vector<8x96xf32>
    %144 = vector.extract_strided_slice %11 {offsets = [0, 0], sizes = [8, 64], strides = [1, 1]} : vector<8x96xf32> to vector<8x64xf32>
    %145 = vector.extract_strided_slice %143 {offsets = [0, 0], sizes = [8, 64], strides = [1, 1]} : vector<8x96xf32> to vector<8x64xf32>
    %146 = arith.addf %144, %145 : vector<8x64xf32>
    %147 = arith.negf %146 : vector<8x64xf32>
    %148 = math.exp %147 : vector<8x64xf32>
    %cst_31 = arith.constant 1.000000e+00 : f32
    %149 = vector.broadcast %cst_31 : f32 to vector<8x64xf32>
    %150 = arith.addf %149, %148 : vector<8x64xf32>
    %151 = arith.divf %149, %150 : vector<8x64xf32>
    %152 = vector.extract_strided_slice %151 {offsets = [0, 0], sizes = [8, 32], strides = [1, 1]} : vector<8x64xf32> to vector<8x32xf32>
    %153 = vector.extract_strided_slice %151 {offsets = [0, 32], sizes = [8, 32], strides = [1, 1]} : vector<8x64xf32> to vector<8x32xf32>
    %154 = vector.extract_strided_slice %11 {offsets = [0, 64], sizes = [8, 32], strides = [1, 1]} : vector<8x96xf32> to vector<8x32xf32>
    %155 = vector.extract_strided_slice %143 {offsets = [0, 64], sizes = [8, 32], strides = [1, 1]} : vector<8x96xf32> to vector<8x32xf32>
    %156 = arith.addf %155, %17 : vector<8x32xf32>
    %157 = arith.mulf %152, %156 : vector<8x32xf32>
    %158 = arith.addf %154, %157 : vector<8x32xf32>
    %159 = math.tanh %158 : vector<8x32xf32>
    %cst_32 = arith.constant 1.000000e+00 : f32
    %160 = vector.broadcast %cst_32 : f32 to vector<8x32xf32>
    %161 = arith.subf %160, %153 : vector<8x32xf32>
    %162 = arith.mulf %161, %159 : vector<8x32xf32>
    %163 = arith.mulf %153, %140 : vector<8x32xf32>
    %164 = arith.addf %162, %163 : vector<8x32xf32>
    %cst_33 = arith.constant dense<0.000000e+00> : vector<8x96xf32>
    %165 = tpu.matmul %164, %18, %cst_33 {dimension_numbers = #tpu.dot_dimension_numbers<[1], [0], [0], [1], [0, 0, 1, 1], [], []>} : vector<8x32xf32>, vector<32x96xf32>, vector<8x96xf32> -> vector<8x96xf32>
    %166 = arith.addf %165, %21 : vector<8x96xf32>
    %cst_34 = arith.constant dense<0.000000e+00> : vector<8x96xf32>
    %167 = tpu.matmul %164, %14, %cst_34 {dimension_numbers = #tpu.dot_dimension_numbers<[1], [0], [0], [1], [0, 0, 1, 1], [], []>} : vector<8x32xf32>, vector<32x96xf32>, vector<8x96xf32> -> vector<8x96xf32>
    %168 = vector.extract_strided_slice %12 {offsets = [0, 0], sizes = [8, 64], strides = [1, 1]} : vector<8x96xf32> to vector<8x64xf32>
    %169 = vector.extract_strided_slice %167 {offsets = [0, 0], sizes = [8, 64], strides = [1, 1]} : vector<8x96xf32> to vector<8x64xf32>
    %170 = arith.addf %168, %169 : vector<8x64xf32>
    %171 = arith.negf %170 : vector<8x64xf32>
    %172 = math.exp %171 : vector<8x64xf32>
    %cst_35 = arith.constant 1.000000e+00 : f32
    %173 = vector.broadcast %cst_35 : f32 to vector<8x64xf32>
    %174 = arith.addf %173, %172 : vector<8x64xf32>
    %175 = arith.divf %173, %174 : vector<8x64xf32>
    %176 = vector.extract_strided_slice %175 {offsets = [0, 0], sizes = [8, 32], strides = [1, 1]} : vector<8x64xf32> to vector<8x32xf32>
    %177 = vector.extract_strided_slice %175 {offsets = [0, 32], sizes = [8, 32], strides = [1, 1]} : vector<8x64xf32> to vector<8x32xf32>
    %178 = vector.extract_strided_slice %12 {offsets = [0, 64], sizes = [8, 32], strides = [1, 1]} : vector<8x96xf32> to vector<8x32xf32>
    %179 = vector.extract_strided_slice %167 {offsets = [0, 64], sizes = [8, 32], strides = [1, 1]} : vector<8x96xf32> to vector<8x32xf32>
    %180 = arith.addf %179, %17 : vector<8x32xf32>
    %181 = arith.mulf %176, %180 : vector<8x32xf32>
    %182 = arith.addf %178, %181 : vector<8x32xf32>
    %183 = math.tanh %182 : vector<8x32xf32>
    %cst_36 = arith.constant 1.000000e+00 : f32
    %184 = vector.broadcast %cst_36 : f32 to vector<8x32xf32>
    %185 = arith.subf %184, %177 : vector<8x32xf32>
    %186 = arith.mulf %185, %183 : vector<8x32xf32>
    %187 = arith.mulf %177, %164 : vector<8x32xf32>
    %188 = arith.addf %186, %187 : vector<8x32xf32>
    %cst_37 = arith.constant dense<0.000000e+00> : vector<8x96xf32>
    %189 = tpu.matmul %188, %18, %cst_37 {dimension_numbers = #tpu.dot_dimension_numbers<[1], [0], [0], [1], [0, 0, 1, 1], [], []>} : vector<8x32xf32>, vector<32x96xf32>, vector<8x96xf32> -> vector<8x96xf32>
    %190 = arith.addf %189, %21 : vector<8x96xf32>
    %cst_38 = arith.constant dense<0.000000e+00> : vector<8x96xf32>
    %191 = tpu.matmul %188, %14, %cst_38 {dimension_numbers = #tpu.dot_dimension_numbers<[1], [0], [0], [1], [0, 0, 1, 1], [], []>} : vector<8x32xf32>, vector<32x96xf32>, vector<8x96xf32> -> vector<8x96xf32>
    %192 = vector.extract_strided_slice %13 {offsets = [0, 0], sizes = [8, 64], strides = [1, 1]} : vector<8x96xf32> to vector<8x64xf32>
    %193 = vector.extract_strided_slice %191 {offsets = [0, 0], sizes = [8, 64], strides = [1, 1]} : vector<8x96xf32> to vector<8x64xf32>
    %194 = arith.addf %192, %193 : vector<8x64xf32>
    %195 = arith.negf %194 : vector<8x64xf32>
    %196 = math.exp %195 : vector<8x64xf32>
    %cst_39 = arith.constant 1.000000e+00 : f32
    %197 = vector.broadcast %cst_39 : f32 to vector<8x64xf32>
    %198 = arith.addf %197, %196 : vector<8x64xf32>
    %199 = arith.divf %197, %198 : vector<8x64xf32>
    %200 = vector.extract_strided_slice %199 {offsets = [0, 0], sizes = [8, 32], strides = [1, 1]} : vector<8x64xf32> to vector<8x32xf32>
    %201 = vector.extract_strided_slice %199 {offsets = [0, 32], sizes = [8, 32], strides = [1, 1]} : vector<8x64xf32> to vector<8x32xf32>
    %202 = vector.extract_strided_slice %13 {offsets = [0, 64], sizes = [8, 32], strides = [1, 1]} : vector<8x96xf32> to vector<8x32xf32>
    %203 = vector.extract_strided_slice %191 {offsets = [0, 64], sizes = [8, 32], strides = [1, 1]} : vector<8x96xf32> to vector<8x32xf32>
    %204 = arith.addf %203, %17 : vector<8x32xf32>
    %205 = arith.mulf %200, %204 : vector<8x32xf32>
    %206 = arith.addf %202, %205 : vector<8x32xf32>
    %207 = math.tanh %206 : vector<8x32xf32>
    %cst_40 = arith.constant 1.000000e+00 : f32
    %208 = vector.broadcast %cst_40 : f32 to vector<8x32xf32>
    %209 = arith.subf %208, %201 : vector<8x32xf32>
    %210 = arith.mulf %209, %207 : vector<8x32xf32>
    %211 = arith.mulf %201, %188 : vector<8x32xf32>
    %212 = arith.addf %210, %211 : vector<8x32xf32>
    %cst_41 = arith.constant dense<0.000000e+00> : vector<8x96xf32>
    %213 = tpu.matmul %212, %18, %cst_41 {dimension_numbers = #tpu.dot_dimension_numbers<[1], [0], [0], [1], [0, 0, 1, 1], [], []>} : vector<8x32xf32>, vector<32x96xf32>, vector<8x96xf32> -> vector<8x96xf32>
    %214 = arith.addf %213, %21 : vector<8x96xf32>
    %c80 = arith.constant 80 : index
    %c0_42 = arith.constant 0 : index
    %215 = vector.load %arg1[%c80, %c0_42] : memref<112x96xf32, #tpu.memory_space<vmem>>, vector<32x96xf32>
    %c3 = arith.constant 3 : index
    %c0_43 = arith.constant 0 : index
    %216 = vector.load %arg2[%c3, %c0_43] : memref<4x96xf32, #tpu.memory_space<vmem>>, vector<1x32xf32>
    %217 = vector.shape_cast %216 : vector<1x32xf32> to vector<1x32xf32>
    %218 = vector.broadcast %217 : vector<1x32xf32> to vector<8x32xf32>
    %cst_44 = arith.constant 0.000000e+00 : f32
    %219 = vector.broadcast %cst_44 : f32 to vector<8x32xf32>
    %cst_45 = arith.constant dense<0.000000e+00> : vector<8x96xf32>
    %220 = tpu.matmul %219, %215, %cst_45 {dimension_numbers = #tpu.dot_dimension_numbers<[1], [0], [0], [1], [0, 0, 1, 1], [], []>} : vector<8x32xf32>, vector<32x96xf32>, vector<8x96xf32> -> vector<8x96xf32>
    %221 = vector.extract_strided_slice %46 {offsets = [0, 0], sizes = [8, 64], strides = [1, 1]} : vector<8x96xf32> to vector<8x64xf32>
    %222 = vector.extract_strided_slice %220 {offsets = [0, 0], sizes = [8, 64], strides = [1, 1]} : vector<8x96xf32> to vector<8x64xf32>
    %223 = arith.addf %221, %222 : vector<8x64xf32>
    %224 = arith.negf %223 : vector<8x64xf32>
    %225 = math.exp %224 : vector<8x64xf32>
    %cst_46 = arith.constant 1.000000e+00 : f32
    %226 = vector.broadcast %cst_46 : f32 to vector<8x64xf32>
    %227 = arith.addf %226, %225 : vector<8x64xf32>
    %228 = arith.divf %226, %227 : vector<8x64xf32>
    %229 = vector.extract_strided_slice %228 {offsets = [0, 0], sizes = [8, 32], strides = [1, 1]} : vector<8x64xf32> to vector<8x32xf32>
    %230 = vector.extract_strided_slice %228 {offsets = [0, 32], sizes = [8, 32], strides = [1, 1]} : vector<8x64xf32> to vector<8x32xf32>
    %231 = vector.extract_strided_slice %46 {offsets = [0, 64], sizes = [8, 32], strides = [1, 1]} : vector<8x96xf32> to vector<8x32xf32>
    %232 = vector.extract_strided_slice %220 {offsets = [0, 64], sizes = [8, 32], strides = [1, 1]} : vector<8x96xf32> to vector<8x32xf32>
    %233 = arith.addf %232, %218 : vector<8x32xf32>
    %234 = arith.mulf %229, %233 : vector<8x32xf32>
    %235 = arith.addf %231, %234 : vector<8x32xf32>
    %236 = math.tanh %235 : vector<8x32xf32>
    %cst_47 = arith.constant 1.000000e+00 : f32
    %237 = vector.broadcast %cst_47 : f32 to vector<8x32xf32>
    %238 = arith.subf %237, %230 : vector<8x32xf32>
    %239 = arith.mulf %238, %236 : vector<8x32xf32>
    %240 = arith.mulf %230, %219 : vector<8x32xf32>
    %241 = arith.addf %239, %240 : vector<8x32xf32>
    %cst_48 = arith.constant dense<0.000000e+00> : vector<8x96xf32>
    %242 = tpu.matmul %241, %215, %cst_48 {dimension_numbers = #tpu.dot_dimension_numbers<[1], [0], [0], [1], [0, 0, 1, 1], [], []>} : vector<8x32xf32>, vector<32x96xf32>, vector<8x96xf32> -> vector<8x96xf32>
    %243 = vector.extract_strided_slice %70 {offsets = [0, 0], sizes = [8, 64], strides = [1, 1]} : vector<8x96xf32> to vector<8x64xf32>
    %244 = vector.extract_strided_slice %242 {offsets = [0, 0], sizes = [8, 64], strides = [1, 1]} : vector<8x96xf32> to vector<8x64xf32>
    %245 = arith.addf %243, %244 : vector<8x64xf32>
    %246 = arith.negf %245 : vector<8x64xf32>
    %247 = math.exp %246 : vector<8x64xf32>
    %cst_49 = arith.constant 1.000000e+00 : f32
    %248 = vector.broadcast %cst_49 : f32 to vector<8x64xf32>
    %249 = arith.addf %248, %247 : vector<8x64xf32>
    %250 = arith.divf %248, %249 : vector<8x64xf32>
    %251 = vector.extract_strided_slice %250 {offsets = [0, 0], sizes = [8, 32], strides = [1, 1]} : vector<8x64xf32> to vector<8x32xf32>
    %252 = vector.extract_strided_slice %250 {offsets = [0, 32], sizes = [8, 32], strides = [1, 1]} : vector<8x64xf32> to vector<8x32xf32>
    %253 = vector.extract_strided_slice %70 {offsets = [0, 64], sizes = [8, 32], strides = [1, 1]} : vector<8x96xf32> to vector<8x32xf32>
    %254 = vector.extract_strided_slice %242 {offsets = [0, 64], sizes = [8, 32], strides = [1, 1]} : vector<8x96xf32> to vector<8x32xf32>
    %255 = arith.addf %254, %218 : vector<8x32xf32>
    %256 = arith.mulf %251, %255 : vector<8x32xf32>
    %257 = arith.addf %253, %256 : vector<8x32xf32>
    %258 = math.tanh %257 : vector<8x32xf32>
    %cst_50 = arith.constant 1.000000e+00 : f32
    %259 = vector.broadcast %cst_50 : f32 to vector<8x32xf32>
    %260 = arith.subf %259, %252 : vector<8x32xf32>
    %261 = arith.mulf %260, %258 : vector<8x32xf32>
    %262 = arith.mulf %252, %241 : vector<8x32xf32>
    %263 = arith.addf %261, %262 : vector<8x32xf32>
    %cst_51 = arith.constant dense<0.000000e+00> : vector<8x96xf32>
    %264 = tpu.matmul %263, %215, %cst_51 {dimension_numbers = #tpu.dot_dimension_numbers<[1], [0], [0], [1], [0, 0, 1, 1], [], []>} : vector<8x32xf32>, vector<32x96xf32>, vector<8x96xf32> -> vector<8x96xf32>
    %265 = vector.extract_strided_slice %94 {offsets = [0, 0], sizes = [8, 64], strides = [1, 1]} : vector<8x96xf32> to vector<8x64xf32>
    %266 = vector.extract_strided_slice %264 {offsets = [0, 0], sizes = [8, 64], strides = [1, 1]} : vector<8x96xf32> to vector<8x64xf32>
    %267 = arith.addf %265, %266 : vector<8x64xf32>
    %268 = arith.negf %267 : vector<8x64xf32>
    %269 = math.exp %268 : vector<8x64xf32>
    %cst_52 = arith.constant 1.000000e+00 : f32
    %270 = vector.broadcast %cst_52 : f32 to vector<8x64xf32>
    %271 = arith.addf %270, %269 : vector<8x64xf32>
    %272 = arith.divf %270, %271 : vector<8x64xf32>
    %273 = vector.extract_strided_slice %272 {offsets = [0, 0], sizes = [8, 32], strides = [1, 1]} : vector<8x64xf32> to vector<8x32xf32>
    %274 = vector.extract_strided_slice %272 {offsets = [0, 32], sizes = [8, 32], strides = [1, 1]} : vector<8x64xf32> to vector<8x32xf32>
    %275 = vector.extract_strided_slice %94 {offsets = [0, 64], sizes = [8, 32], strides = [1, 1]} : vector<8x96xf32> to vector<8x32xf32>
    %276 = vector.extract_strided_slice %264 {offsets = [0, 64], sizes = [8, 32], strides = [1, 1]} : vector<8x96xf32> to vector<8x32xf32>
    %277 = arith.addf %276, %218 : vector<8x32xf32>
    %278 = arith.mulf %273, %277 : vector<8x32xf32>
    %279 = arith.addf %275, %278 : vector<8x32xf32>
    %280 = math.tanh %279 : vector<8x32xf32>
    %cst_53 = arith.constant 1.000000e+00 : f32
    %281 = vector.broadcast %cst_53 : f32 to vector<8x32xf32>
    %282 = arith.subf %281, %274 : vector<8x32xf32>
    %283 = arith.mulf %282, %280 : vector<8x32xf32>
    %284 = arith.mulf %274, %263 : vector<8x32xf32>
    %285 = arith.addf %283, %284 : vector<8x32xf32>
    %cst_54 = arith.constant dense<0.000000e+00> : vector<8x96xf32>
    %286 = tpu.matmul %285, %215, %cst_54 {dimension_numbers = #tpu.dot_dimension_numbers<[1], [0], [0], [1], [0, 0, 1, 1], [], []>} : vector<8x32xf32>, vector<32x96xf32>, vector<8x96xf32> -> vector<8x96xf32>
    %287 = vector.extract_strided_slice %118 {offsets = [0, 0], sizes = [8, 64], strides = [1, 1]} : vector<8x96xf32> to vector<8x64xf32>
    %288 = vector.extract_strided_slice %286 {offsets = [0, 0], sizes = [8, 64], strides = [1, 1]} : vector<8x96xf32> to vector<8x64xf32>
    %289 = arith.addf %287, %288 : vector<8x64xf32>
    %290 = arith.negf %289 : vector<8x64xf32>
    %291 = math.exp %290 : vector<8x64xf32>
    %cst_55 = arith.constant 1.000000e+00 : f32
    %292 = vector.broadcast %cst_55 : f32 to vector<8x64xf32>
    %293 = arith.addf %292, %291 : vector<8x64xf32>
    %294 = arith.divf %292, %293 : vector<8x64xf32>
    %295 = vector.extract_strided_slice %294 {offsets = [0, 0], sizes = [8, 32], strides = [1, 1]} : vector<8x64xf32> to vector<8x32xf32>
    %296 = vector.extract_strided_slice %294 {offsets = [0, 32], sizes = [8, 32], strides = [1, 1]} : vector<8x64xf32> to vector<8x32xf32>
    %297 = vector.extract_strided_slice %118 {offsets = [0, 64], sizes = [8, 32], strides = [1, 1]} : vector<8x96xf32> to vector<8x32xf32>
    %298 = vector.extract_strided_slice %286 {offsets = [0, 64], sizes = [8, 32], strides = [1, 1]} : vector<8x96xf32> to vector<8x32xf32>
    %299 = arith.addf %298, %218 : vector<8x32xf32>
    %300 = arith.mulf %295, %299 : vector<8x32xf32>
    %301 = arith.addf %297, %300 : vector<8x32xf32>
    %302 = math.tanh %301 : vector<8x32xf32>
    %cst_56 = arith.constant 1.000000e+00 : f32
    %303 = vector.broadcast %cst_56 : f32 to vector<8x32xf32>
    %304 = arith.subf %303, %296 : vector<8x32xf32>
    %305 = arith.mulf %304, %302 : vector<8x32xf32>
    %306 = arith.mulf %296, %285 : vector<8x32xf32>
    %307 = arith.addf %305, %306 : vector<8x32xf32>
    %cst_57 = arith.constant dense<0.000000e+00> : vector<8x96xf32>
    %308 = tpu.matmul %307, %215, %cst_57 {dimension_numbers = #tpu.dot_dimension_numbers<[1], [0], [0], [1], [0, 0, 1, 1], [], []>} : vector<8x32xf32>, vector<32x96xf32>, vector<8x96xf32> -> vector<8x96xf32>
    %309 = vector.extract_strided_slice %142 {offsets = [0, 0], sizes = [8, 64], strides = [1, 1]} : vector<8x96xf32> to vector<8x64xf32>
    %310 = vector.extract_strided_slice %308 {offsets = [0, 0], sizes = [8, 64], strides = [1, 1]} : vector<8x96xf32> to vector<8x64xf32>
    %311 = arith.addf %309, %310 : vector<8x64xf32>
    %312 = arith.negf %311 : vector<8x64xf32>
    %313 = math.exp %312 : vector<8x64xf32>
    %cst_58 = arith.constant 1.000000e+00 : f32
    %314 = vector.broadcast %cst_58 : f32 to vector<8x64xf32>
    %315 = arith.addf %314, %313 : vector<8x64xf32>
    %316 = arith.divf %314, %315 : vector<8x64xf32>
    %317 = vector.extract_strided_slice %316 {offsets = [0, 0], sizes = [8, 32], strides = [1, 1]} : vector<8x64xf32> to vector<8x32xf32>
    %318 = vector.extract_strided_slice %316 {offsets = [0, 32], sizes = [8, 32], strides = [1, 1]} : vector<8x64xf32> to vector<8x32xf32>
    %319 = vector.extract_strided_slice %142 {offsets = [0, 64], sizes = [8, 32], strides = [1, 1]} : vector<8x96xf32> to vector<8x32xf32>
    %320 = vector.extract_strided_slice %308 {offsets = [0, 64], sizes = [8, 32], strides = [1, 1]} : vector<8x96xf32> to vector<8x32xf32>
    %321 = arith.addf %320, %218 : vector<8x32xf32>
    %322 = arith.mulf %317, %321 : vector<8x32xf32>
    %323 = arith.addf %319, %322 : vector<8x32xf32>
    %324 = math.tanh %323 : vector<8x32xf32>
    %cst_59 = arith.constant 1.000000e+00 : f32
    %325 = vector.broadcast %cst_59 : f32 to vector<8x32xf32>
    %326 = arith.subf %325, %318 : vector<8x32xf32>
    %327 = arith.mulf %326, %324 : vector<8x32xf32>
    %328 = arith.mulf %318, %307 : vector<8x32xf32>
    %329 = arith.addf %327, %328 : vector<8x32xf32>
    %cst_60 = arith.constant dense<0.000000e+00> : vector<8x96xf32>
    %330 = tpu.matmul %329, %215, %cst_60 {dimension_numbers = #tpu.dot_dimension_numbers<[1], [0], [0], [1], [0, 0, 1, 1], [], []>} : vector<8x32xf32>, vector<32x96xf32>, vector<8x96xf32> -> vector<8x96xf32>
    %331 = vector.extract_strided_slice %166 {offsets = [0, 0], sizes = [8, 64], strides = [1, 1]} : vector<8x96xf32> to vector<8x64xf32>
    %332 = vector.extract_strided_slice %330 {offsets = [0, 0], sizes = [8, 64], strides = [1, 1]} : vector<8x96xf32> to vector<8x64xf32>
    %333 = arith.addf %331, %332 : vector<8x64xf32>
    %334 = arith.negf %333 : vector<8x64xf32>
    %335 = math.exp %334 : vector<8x64xf32>
    %cst_61 = arith.constant 1.000000e+00 : f32
    %336 = vector.broadcast %cst_61 : f32 to vector<8x64xf32>
    %337 = arith.addf %336, %335 : vector<8x64xf32>
    %338 = arith.divf %336, %337 : vector<8x64xf32>
    %339 = vector.extract_strided_slice %338 {offsets = [0, 0], sizes = [8, 32], strides = [1, 1]} : vector<8x64xf32> to vector<8x32xf32>
    %340 = vector.extract_strided_slice %338 {offsets = [0, 32], sizes = [8, 32], strides = [1, 1]} : vector<8x64xf32> to vector<8x32xf32>
    %341 = vector.extract_strided_slice %166 {offsets = [0, 64], sizes = [8, 32], strides = [1, 1]} : vector<8x96xf32> to vector<8x32xf32>
    %342 = vector.extract_strided_slice %330 {offsets = [0, 64], sizes = [8, 32], strides = [1, 1]} : vector<8x96xf32> to vector<8x32xf32>
    %343 = arith.addf %342, %218 : vector<8x32xf32>
    %344 = arith.mulf %339, %343 : vector<8x32xf32>
    %345 = arith.addf %341, %344 : vector<8x32xf32>
    %346 = math.tanh %345 : vector<8x32xf32>
    %cst_62 = arith.constant 1.000000e+00 : f32
    %347 = vector.broadcast %cst_62 : f32 to vector<8x32xf32>
    %348 = arith.subf %347, %340 : vector<8x32xf32>
    %349 = arith.mulf %348, %346 : vector<8x32xf32>
    %350 = arith.mulf %340, %329 : vector<8x32xf32>
    %351 = arith.addf %349, %350 : vector<8x32xf32>
    %cst_63 = arith.constant dense<0.000000e+00> : vector<8x96xf32>
    %352 = tpu.matmul %351, %215, %cst_63 {dimension_numbers = #tpu.dot_dimension_numbers<[1], [0], [0], [1], [0, 0, 1, 1], [], []>} : vector<8x32xf32>, vector<32x96xf32>, vector<8x96xf32> -> vector<8x96xf32>
    %353 = vector.extract_strided_slice %190 {offsets = [0, 0], sizes = [8, 64], strides = [1, 1]} : vector<8x96xf32> to vector<8x64xf32>
    %354 = vector.extract_strided_slice %352 {offsets = [0, 0], sizes = [8, 64], strides = [1, 1]} : vector<8x96xf32> to vector<8x64xf32>
    %355 = arith.addf %353, %354 : vector<8x64xf32>
    %356 = arith.negf %355 : vector<8x64xf32>
    %357 = math.exp %356 : vector<8x64xf32>
    %cst_64 = arith.constant 1.000000e+00 : f32
    %358 = vector.broadcast %cst_64 : f32 to vector<8x64xf32>
    %359 = arith.addf %358, %357 : vector<8x64xf32>
    %360 = arith.divf %358, %359 : vector<8x64xf32>
    %361 = vector.extract_strided_slice %360 {offsets = [0, 0], sizes = [8, 32], strides = [1, 1]} : vector<8x64xf32> to vector<8x32xf32>
    %362 = vector.extract_strided_slice %360 {offsets = [0, 32], sizes = [8, 32], strides = [1, 1]} : vector<8x64xf32> to vector<8x32xf32>
    %363 = vector.extract_strided_slice %190 {offsets = [0, 64], sizes = [8, 32], strides = [1, 1]} : vector<8x96xf32> to vector<8x32xf32>
    %364 = vector.extract_strided_slice %352 {offsets = [0, 64], sizes = [8, 32], strides = [1, 1]} : vector<8x96xf32> to vector<8x32xf32>
    %365 = arith.addf %364, %218 : vector<8x32xf32>
    %366 = arith.mulf %361, %365 : vector<8x32xf32>
    %367 = arith.addf %363, %366 : vector<8x32xf32>
    %368 = math.tanh %367 : vector<8x32xf32>
    %cst_65 = arith.constant 1.000000e+00 : f32
    %369 = vector.broadcast %cst_65 : f32 to vector<8x32xf32>
    %370 = arith.subf %369, %362 : vector<8x32xf32>
    %371 = arith.mulf %370, %368 : vector<8x32xf32>
    %372 = arith.mulf %362, %351 : vector<8x32xf32>
    %373 = arith.addf %371, %372 : vector<8x32xf32>
    %cst_66 = arith.constant dense<0.000000e+00> : vector<8x96xf32>
    %374 = tpu.matmul %373, %215, %cst_66 {dimension_numbers = #tpu.dot_dimension_numbers<[1], [0], [0], [1], [0, 0, 1, 1], [], []>} : vector<8x32xf32>, vector<32x96xf32>, vector<8x96xf32> -> vector<8x96xf32>
    %375 = vector.extract_strided_slice %214 {offsets = [0, 0], sizes = [8, 64], strides = [1, 1]} : vector<8x96xf32> to vector<8x64xf32>
    %376 = vector.extract_strided_slice %374 {offsets = [0, 0], sizes = [8, 64], strides = [1, 1]} : vector<8x96xf32> to vector<8x64xf32>
    %377 = arith.addf %375, %376 : vector<8x64xf32>
    %378 = arith.negf %377 : vector<8x64xf32>
    %379 = math.exp %378 : vector<8x64xf32>
    %cst_67 = arith.constant 1.000000e+00 : f32
    %380 = vector.broadcast %cst_67 : f32 to vector<8x64xf32>
    %381 = arith.addf %380, %379 : vector<8x64xf32>
    %382 = arith.divf %380, %381 : vector<8x64xf32>
    %383 = vector.extract_strided_slice %382 {offsets = [0, 0], sizes = [8, 32], strides = [1, 1]} : vector<8x64xf32> to vector<8x32xf32>
    %384 = vector.extract_strided_slice %382 {offsets = [0, 32], sizes = [8, 32], strides = [1, 1]} : vector<8x64xf32> to vector<8x32xf32>
    %385 = vector.extract_strided_slice %214 {offsets = [0, 64], sizes = [8, 32], strides = [1, 1]} : vector<8x96xf32> to vector<8x32xf32>
    %386 = vector.extract_strided_slice %374 {offsets = [0, 64], sizes = [8, 32], strides = [1, 1]} : vector<8x96xf32> to vector<8x32xf32>
    %387 = arith.addf %386, %218 : vector<8x32xf32>
    %388 = arith.mulf %383, %387 : vector<8x32xf32>
    %389 = arith.addf %385, %388 : vector<8x32xf32>
    %390 = math.tanh %389 : vector<8x32xf32>
    %cst_68 = arith.constant 1.000000e+00 : f32
    %391 = vector.broadcast %cst_68 : f32 to vector<8x32xf32>
    %392 = arith.subf %391, %384 : vector<8x32xf32>
    %393 = arith.mulf %392, %390 : vector<8x32xf32>
    %394 = arith.mulf %384, %373 : vector<8x32xf32>
    %395 = arith.addf %393, %394 : vector<8x32xf32>
    %c0_69 = arith.constant 0 : index
    %c0_70 = arith.constant 0 : index
    %396 = vector.load %arg3[%c0_69, %c0_70] : memref<80x25xf32, #tpu.memory_space<vmem>>, vector<32x25xf32>
    %c32 = arith.constant 32 : index
    %c0_71 = arith.constant 0 : index
    %397 = vector.load %arg3[%c32, %c0_71] : memref<80x25xf32, #tpu.memory_space<vmem>>, vector<1x25xf32>
    %c40 = arith.constant 40 : index
    %c0_72 = arith.constant 0 : index
    %398 = vector.load %arg3[%c40, %c0_72] : memref<80x25xf32, #tpu.memory_space<vmem>>, vector<25x25xf32>
    %c72 = arith.constant 72 : index
    %c0_73 = arith.constant 0 : index
    %399 = vector.load %arg3[%c72, %c0_73] : memref<80x25xf32, #tpu.memory_space<vmem>>, vector<1x25xf32>
    %cst_74 = arith.constant dense<0.000000e+00> : vector<8x25xf32>
    %400 = tpu.matmul %395, %396, %cst_74 {dimension_numbers = #tpu.dot_dimension_numbers<[1], [0], [0], [1], [0, 0, 1, 1], [], []>} : vector<8x32xf32>, vector<32x25xf32>, vector<8x25xf32> -> vector<8x25xf32>
    %401 = vector.broadcast %397 : vector<1x25xf32> to vector<8x25xf32>
    %402 = arith.addf %400, %401 : vector<8x25xf32>
    %cst_75 = arith.constant 0.000000e+00 : f32
    %403 = vector.broadcast %cst_75 : f32 to vector<8x25xf32>
    %404 = arith.maximumf %402, %403 : vector<8x25xf32>
    %cst_76 = arith.constant dense<0.000000e+00> : vector<8x25xf32>
    %405 = tpu.matmul %404, %398, %cst_76 {dimension_numbers = #tpu.dot_dimension_numbers<[1], [0], [0], [1], [0, 0, 1, 1], [], []>} : vector<8x25xf32>, vector<25x25xf32>, vector<8x25xf32> -> vector<8x25xf32>
    %406 = vector.broadcast %399 : vector<1x25xf32> to vector<8x25xf32>
    %407 = arith.addf %405, %406 : vector<8x25xf32>
    %408 = vector.extract_strided_slice %407 {offsets = [0, 0], sizes = [8, 4], strides = [1, 1]} : vector<8x25xf32> to vector<8x4xf32>
    %c0_77 = arith.constant 0 : index
    %c0_78 = arith.constant 0 : index
    %409 = vector.load %arg4[%c0_77, %c0_78] : memref<8x4xf32, #tpu.memory_space<vmem>>, vector<8x4xf32>
    tpu.vector_store %arg4[%c0_77, %c0_78], %408 {strides = array<i32>} : memref<8x4xf32, #tpu.memory_space<vmem>>, vector<8x4xf32>,
    return
  }
}

</mosaic_0001>

<llo_original>
// kernel: gru_model_forward.1
$region0: #{gru_model_forward.1}
  #allocation0 [shape = 'u32[]', space=smem, size = 0x4, offset = 0x4, fixed_abs, tag = 'smem constant byte address 0x4 - core index']
  #allocation1 [shape = 'u32[144,128]{1,0:T(1,128)}', space=vmem, size = 0x12000, scoped, tag = 'internal scratch']
  %s0 = inlined_call_operand.vmem [shape: f32[64,16], index: 0, kind: input, shape index: {}]
  %s1 = inlined_call_operand.vmem [shape: f32[112,96], index: 1, kind: input, shape index: {}]
  %s2 = inlined_call_operand.vmem [shape: f32[4,96], index: 2, kind: input, shape index: {}]
  %s3 = inlined_call_operand.vmem [shape: f32[80,25], index: 3, kind: input, shape index: {}]
  %s4 = inlined_call_operand.vmem [shape: f32[8,4], index: 4, kind: output, shape index: {}]
  %s5 = sld [smem:[#allocation0]]
  $region26: #{gru_model_forward.1} parent=0
    _
  %s7 = ssub.s32 1, %s5
  %s8 = scalar_select 0, %s7, %s5
  // Predicated region
  $region2: #{gru_model_forward.1} parent=0 // pred_check
    _
  $region3: #{gru_model_forward.1} parent=0 // pred_check_branch
    %10 = sbr.rel (0) target = $region5
  $region4: #{gru_model_forward.1} parent=0 // pred_region
    _
  $region5: #{gru_model_forward.1} parent=0 // pred_fallthru
    _
  // Predicated region
  $region6: #{gru_model_forward.1} parent=0 // pred_check
    _
  $region7: #{gru_model_forward.1} parent=0 // pred_check_branch
    %12 = sbr.rel (0) target = $region9
  $region8: #{gru_model_forward.1} parent=0 // pred_region
    _
  $region9: #{gru_model_forward.1} parent=0 // pred_fallthru
    _
  // Predicated region
  $region10: #{gru_model_forward.1} parent=0 // pred_check
    _
  $region11: #{gru_model_forward.1} parent=0 // pred_check_branch
    %14 = sbr.rel (0) target = $region13
  $region12: #{gru_model_forward.1} parent=0 // pred_region
    _
  $region13: #{gru_model_forward.1} parent=0 // pred_fallthru
    _
  // Predicated region
  $region14: #{gru_model_forward.1} parent=0 // pred_check
    _
  $region15: #{gru_model_forward.1} parent=0 // pred_check_branch
    %16 = sbr.rel (0) target = $region17
  $region16: #{gru_model_forward.1} parent=0 // pred_region
    _
  $region17: #{gru_model_forward.1} parent=0 // pred_fallthru
    _
  %v17 = vld [vmem:[%s0] sm:$0xff]
  %v18 = vld [vmem:[%s0 + $0x8] sm:$0xff]
  %v19 = vld [vmem:[%s0 + $0x10] sm:$0xff]
  %v20 = vld [vmem:[%s0 + $0x18] sm:$0xff]
  %v21 = vld [vmem:[%s0 + $0x20] sm:$0xff]
  %v22 = vld [vmem:[%s0 + $0x28] sm:$0xff]
  %v23 = vld [vmem:[%s0 + $0x30] sm:$0xff]
  %v24 = vld [vmem:[%s0 + $0x38] sm:$0xff]
  %v25 = vld [vmem:[%s1] sm:$0xff]
  %v26 = vld [vmem:[%s1 + $0x8] sm:$0xff]
  %v27 = vld [vmem:[%s2] sm:$0x1]
  %v28 = vlaneseq
  %v29 = vshrl.u32 %v28, 7
  %v30 = vsub.s32 0, %v29
  %v31 = vrot.slane %v27, %v30
  %vm32 = vcmask 130048
  %v34 = vsel %vm32, %v17, 0
  %v37 = vsel %vm32, %v18, 0
  %v40 = vsel %vm32, %v19, 0
  %v43 = vsel %vm32, %v20, 0
  %v46 = vsel %vm32, %v21, 0
  %v49 = vsel %vm32, %v22, 0
  %v52 = vsel %vm32, %v23, 0
  %v55 = vsel %vm32, %v24, 0
  %57 = vmatprep.subr.mxu0 0.0
  %58 = vmatpush1.msra.mxu0 %v25
  %59 = vmatprep.subr.mxu0 0.0
  %60 = vmatpush1.msra.mxu0 %v26
  %61 = vmatprep.subr.mxu0 0.0
  %62 = vmatpush1.msra.mxu0 0.0
  %63 = vmatprep.subr.mxu0 0.0
  %64 = vmatpush1.msra.mxu0 0.0
  %65 = vmatprep.subr.mxu0 0.0
  %66 = vmatpush1.msra.mxu0 0.0
  %67 = vmatprep.subr.mxu0 0.0
  %68 = vmatpush1.msra.mxu0 0.0
  %69 = vmatprep.subr.mxu0 0.0
  %70 = vmatpush1.msra.mxu0 0.0
  %71 = vmatprep.subr.mxu0 0.0
  %72 = vmatpush1.msra.mxu0 0.0
  %73 = vmatprep.subr.mxu0 0.0
  %74 = vmatpush1.msra.mxu0 0.0
  %75 = vmatprep.subr.mxu0 0.0
  %76 = vmatpush1.msra.mxu0 0.0
  %77 = vmatprep.subr.mxu0 0.0
  %78 = vmatpush1.msra.mxu0 0.0
  %79 = vmatprep.subr.mxu0 0.0
  %80 = vmatpush1.msra.mxu0 0.0
  %81 = vmatprep.subr.mxu0 0.0
  %82 = vmatpush1.msra.mxu0 0.0
  %83 = vmatprep.subr.mxu0 0.0
  %84 = vmatpush1.msra.mxu0 0.0
  %85 = vmatprep.subr.mxu0 0.0
  %86 = vmatpush1.msra.mxu0 0.0
  %87 = vmatprep.subr.mxu0 0.0
  %88 = vmatpush1.msra.mxu0 0.0
  %89 = vmatprep.subr.mxu0 0.0
  %90 = vmatpush1.msra.mxu0 0.0
  %91 = vmatprep.subr.mxu0 0.0
  %92 = vmatpush1.msra.mxu0 0.0
  %93 = vmatprep.subr.mxu0 0.0
  %94 = vmatpush1.msra.mxu0 0.0
  %95 = vmatprep.subr.mxu0 0.0
  %96 = vmatpush1.msra.mxu0 0.0
  %97 = vmatprep.subr.mxu0 0.0
  %98 = vmatpush1.msra.mxu0 0.0
  %99 = vmatprep.subr.mxu0 0.0
  %100 = vmatpush1.msra.mxu0 0.0
  %101 = vmatprep.subr.mxu0 0.0
  %102 = vmatpush1.msra.mxu0 0.0
  %103 = vmatprep.subr.mxu0 0.0
  %104 = vmatpush1.msra.mxu0 0.0
  %105 = vmatprep.subr.mxu0 0.0
  %106 = vmatpush1.msra.mxu0 0.0
  %107 = vmatprep.subr.mxu0 0.0
  %108 = vmatpush1.msra.mxu0 0.0
  %109 = vmatprep.subr.mxu0 0.0
  %110 = vmatpush1.msra.mxu0 0.0
  %111 = vmatprep.subr.mxu0 0.0
  %112 = vmatpush1.msra.mxu0 0.0
  %113 = vmatprep.subr.mxu0 0.0
  %114 = vmatpush1.msra.mxu0 0.0
  %115 = vmatprep.subr.mxu0 0.0
  %116 = vmatpush1.msra.mxu0 0.0
  %117 = vmatprep.subr.mxu0 0.0
  %118 = vmatpush1.msra.mxu0 0.0
  %119 = vmatprep.subr.mxu0 0.0
  %120 = vmatpush1.msra.mxu0 0.0
  %121 = vmatprep.mubr.f32.mxu0 0.0
  %122 = vmatmul.mubr.f32.gmra.mrb[0].mxu0 %v34
  %v123 = vpop.f32.mrb[0].mxu0
  %v124 = vadd.f32 %v31, %v123
  %v125 = vpop.f32.mrb[0].mxu0
  %126 = vmatprep.mubr.f32.mxu0 0.0
  %127 = vmatmul.mubr.f32.gmra.mrb[0].mxu0 %v37
  %v128 = vpop.f32.mrb[0].mxu0
  %v129 = vadd.f32 %v31, %v128
  %v130 = vpop.f32.mrb[0].mxu0
  %131 = vmatprep.mubr.f32.mxu0 0.0
  %132 = vmatmul.mubr.f32.gmra.mrb[0].mxu0 %v40
  %v133 = vpop.f32.mrb[0].mxu0
  %v134 = vadd.f32 %v31, %v133
  %v135 = vpop.f32.mrb[0].mxu0
  %136 = vmatprep.mubr.f32.mxu0 0.0
  %137 = vmatmul.mubr.f32.gmra.mrb[0].mxu0 %v43
  %v138 = vpop.f32.mrb[0].mxu0
  %v139 = vadd.f32 %v31, %v138
  %v140 = vpop.f32.mrb[0].mxu0
  %141 = vmatprep.mubr.f32.mxu0 0.0
  %142 = vmatmul.mubr.f32.gmra.mrb[0].mxu0 %v46
  %v143 = vpop.f32.mrb[0].mxu0
  %v144 = vadd.f32 %v31, %v143
  %v145 = vpop.f32.mrb[0].mxu0
  %146 = vmatprep.mubr.f32.mxu0 0.0
  %147 = vmatmul.mubr.f32.gmra.mrb[0].mxu0 %v49
  %v148 = vpop.f32.mrb[0].mxu0
  %v149 = vadd.f32 %v31, %v148
  %v150 = vpop.f32.mrb[0].mxu0
  %151 = vmatprep.mubr.f32.mxu0 0.0
  %152 = vmatmul.mubr.f32.gmra.mrb[0].mxu0 %v52
  %v153 = vpop.f32.mrb[0].mxu0
  %v154 = vadd.f32 %v31, %v153
  %v155 = vpop.f32.mrb[0].mxu0
  %156 = vmatprep.mubr.f32.mxu0 0.0
  %157 = vmatmul.mubr.f32.gmra.mrb[0].mxu0 %v55
  %v158 = vpop.f32.mrb[0].mxu0
  %v159 = vadd.f32 %v31, %v158
  %v160 = vpop.f32.mrb[0].mxu0
  %161 = vdwg.mxu0
  %v162 = vld [vmem:[%s1 + $0x10] sm:$0xff]
  %v163 = vld [vmem:[%s1 + $0x18] sm:$0xff]
  %v164 = vld [vmem:[%s1 + $0x20] sm:$0xff]
  %v165 = vld [vmem:[%s1 + $0x28] sm:$0xff]
  %v166 = vld [vmem:[%s2 + $0x1] sm:$0x1]
  %v167 = vlaneseq
  %v168 = vshrl.u32 %v167, 7
  %v169 = vsub.s32 0, %v168
  %v170 = vrot.slane %v166, %v169
  %v171 = vld [vmem:[%s1 + $0x30] sm:$0xff]
  %v172 = vld [vmem:[%s1 + $0x38] sm:$0xff]
  %v173 = vld [vmem:[%s1 + $0x40] sm:$0xff]
  %v174 = vld [vmem:[%s1 + $0x48] sm:$0xff]
  %v175 = vld [vmem:[%s2 + $0x2] sm:$0x1]
  %v176 = vlaneseq
  %v177 = vshrl.u32 %v176, 7
  %v178 = vsub.s32 0, %v177
  %v179 = vrot.slane %v175, %v178
  %vm180 = vcmask 261120
  %v182 = vsel %vm180, 0.0, 0
  %184 = vmatprep.subr.mxu0 0.0
  %185 = vmatpush1.msra.mxu0 %v162
  %186 = vmatprep.subr.mxu0 0.0
  %187 = vmatpush1.msra.mxu0 %v163
  %188 = vmatprep.subr.mxu0 0.0
  %189 = vmatpush1.msra.mxu0 %v164
  %190 = vmatprep.subr.mxu0 0.0
  %191 = vmatpush1.msra.mxu0 %v165
  %192 = vmatprep.subr.mxu0 0.0
  %193 = vmatpush1.msra.mxu0 0.0
  %194 = vmatprep.subr.mxu0 0.0
  %195 = vmatpush1.msra.mxu0 0.0
  %196 = vmatprep.subr.mxu0 0.0
  %197 = vmatpush1.msra.mxu0 0.0
  %198 = vmatprep.subr.mxu0 0.0
  %199 = vmatpush1.msra.mxu0 0.0
  %200 = vmatprep.subr.mxu0 0.0
  %201 = vmatpush1.msra.mxu0 0.0
  %202 = vmatprep.subr.mxu0 0.0
  %203 = vmatpush1.msra.mxu0 0.0
  %204 = vmatprep.subr.mxu0 0.0
  %205 = vmatpush1.msra.mxu0 0.0
  %206 = vmatprep.subr.mxu0 0.0
  %207 = vmatpush1.msra.mxu0 0.0
  %208 = vmatprep.subr.mxu0 0.0
  %209 = vmatpush1.msra.mxu0 0.0
  %210 = vmatprep.subr.mxu0 0.0
  %211 = vmatpush1.msra.mxu0 0.0
  %212 = vmatprep.subr.mxu0 0.0
  %213 = vmatpush1.msra.mxu0 0.0
  %214 = vmatprep.subr.mxu0 0.0
  %215 = vmatpush1.msra.mxu0 0.0
  %216 = vmatprep.subr.mxu0 0.0
  %217 = vmatpush1.msra.mxu0 0.0
  %218 = vmatprep.subr.mxu0 0.0
  %219 = vmatpush1.msra.mxu0 0.0
  %220 = vmatprep.subr.mxu0 0.0
  %221 = vmatpush1.msra.mxu0 0.0
  %222 = vmatprep.subr.mxu0 0.0
  %223 = vmatpush1.msra.mxu0 0.0
  %224 = vmatprep.subr.mxu0 0.0
  %225 = vmatpush1.msra.mxu0 0.0
  %226 = vmatprep.subr.mxu0 0.0
  %227 = vmatpush1.msra.mxu0 0.0
  %228 = vmatprep.subr.mxu0 0.0
  %229 = vmatpush1.msra.mxu0 0.0
  %230 = vmatprep.subr.mxu0 0.0
  %231 = vmatpush1.msra.mxu0 0.0
  %232 = vmatprep.subr.mxu0 0.0
  %233 = vmatpush1.msra.mxu0 0.0
  %234 = vmatprep.subr.mxu0 0.0
  %235 = vmatpush1.msra.mxu0 0.0
  %236 = vmatprep.subr.mxu0 0.0
  %237 = vmatpush1.msra.mxu0 0.0
  %238 = vmatprep.subr.mxu0 0.0
  %239 = vmatpush1.msra.mxu0 0.0
  %240 = vmatprep.subr.mxu0 0.0
  %241 = vmatpush1.msra.mxu0 0.0
  %242 = vmatprep.subr.mxu0 0.0
  %243 = vmatpush1.msra.mxu0 0.0
  %244 = vmatprep.subr.mxu0 0.0
  %245 = vmatpush1.msra.mxu0 0.0
  %246 = vmatprep.subr.mxu0 0.0
  %247 = vmatpush1.msra.mxu0 0.0
  %248 = vmatprep.mubr.f32.mxu0 0.0
  %249 = vmatmul.mubr.f32.gmra.mrb[0].mxu0 %v182
  %v250 = vpop.f32.mrb[0].mxu0
  %v251 = vadd.f32 0.0, %v250
  %v252 = vpop.f32.mrb[0].mxu0
  %253 = vdwg.mxu0
  %v254 = vadd.f32 %v124, %v251
  %v255 = vxor.u32 %v254, 2147483648
  %v256 = vmul.f32 %v255, 1.442695
  %v257 = vpow.pop %v256
  %v258 = vadd.f32 %v257, 1.0
  %v259 = vrcp.pop %v258
  %v260 = vmul.f32 1.0, %v259
  %262 = vrot.lane.b32.xlu0 %v170, 64
  %v263 = vpop.permute.xlu0 %262
  %v265 = vadd.f32 %v251, %v263
  %267 = vrot.lane.b32.xlu0 %v265, 64
  %v268 = vpop.permute.xlu0 %267
  %v270 = vmul.f32 %v260, %v268
  %272 = vrot.lane.b32.xlu0 %v270, 64
  %v273 = vpop.permute.xlu0 %272
  %v275 = vadd.f32 %v124, %v273
  %v276 = vtanh.pop %v275
  %v277 = vsub.f32 1.0, %v260
  %279 = vrot.lane.b32.xlu0 %v276, 96
  %v280 = vpop.permute.xlu0 %279
  %v282 = vmul.f32 %v277, %v280
  %v283 = vmul.f32 %v260, 0.0
  %v284 = vadd.f32 %v282, %v283
  %286 = vrot.lane.b32.xlu0 %v284, 96
  %v287 = vpop.permute.xlu0 %286
  %v288 = vsel %vm180, %v287, 0
  %290 = vmatprep.subr.mxu0 0.0
  %291 = vmatpush1.msra.mxu0 %v171
  %292 = vmatprep.subr.mxu0 0.0
  %293 = vmatpush1.msra.mxu0 %v172
  %294 = vmatprep.subr.mxu0 0.0
  %295 = vmatpush1.msra.mxu0 %v173
  %296 = vmatprep.subr.mxu0 0.0
  %297 = vmatpush1.msra.mxu0 %v174
  %298 = vmatprep.subr.mxu0 0.0
  %299 = vmatpush1.msra.mxu0 0.0
  %300 = vmatprep.subr.mxu0 0.0
  %301 = vmatpush1.msra.mxu0 0.0
  %302 = vmatprep.subr.mxu0 0.0
  %303 = vmatpush1.msra.mxu0 0.0
  %304 = vmatprep.subr.mxu0 0.0
  %305 = vmatpush1.msra.mxu0 0.0
  %306 = vmatprep.subr.mxu0 0.0
  %307 = vmatpush1.msra.mxu0 0.0
  %308 = vmatprep.subr.mxu0 0.0
  %309 = vmatpush1.msra.mxu0 0.0
  %310 = vmatprep.subr.mxu0 0.0
  %311 = vmatpush1.msra.mxu0 0.0
  %312 = vmatprep.subr.mxu0 0.0
  %313 = vmatpush1.msra.mxu0 0.0
  %314 = vmatprep.subr.mxu0 0.0
  %315 = vmatpush1.msra.mxu0 0.0
  %316 = vmatprep.subr.mxu0 0.0
  %317 = vmatpush1.msra.mxu0 0.0
  %318 = vmatprep.subr.mxu0 0.0
  %319 = vmatpush1.msra.mxu0 0.0
  %320 = vmatprep.subr.mxu0 0.0
  %321 = vmatpush1.msra.mxu0 0.0
  %322 = vmatprep.subr.mxu0 0.0
  %323 = vmatpush1.msra.mxu0 0.0
  %324 = vmatprep.subr.mxu0 0.0
  %325 = vmatpush1.msra.mxu0 0.0
  %326 = vmatprep.subr.mxu0 0.0
  %327 = vmatpush1.msra.mxu0 0.0
  %328 = vmatprep.subr.mxu0 0.0
  %329 = vmatpush1.msra.mxu0 0.0
  %330 = vmatprep.subr.mxu0 0.0
  %331 = vmatpush1.msra.mxu0 0.0
  %332 = vmatprep.subr.mxu0 0.0
  %333 = vmatpush1.msra.mxu0 0.0
  %334 = vmatprep.subr.mxu0 0.0
  %335 = vmatpush1.msra.mxu0 0.0
  %336 = vmatprep.subr.mxu0 0.0
  %337 = vmatpush1.msra.mxu0 0.0
  %338 = vmatprep.subr.mxu0 0.0
  %339 = vmatpush1.msra.mxu0 0.0
  %340 = vmatprep.subr.mxu0 0.0
  %341 = vmatpush1.msra.mxu0 0.0
  %342 = vmatprep.subr.mxu0 0.0
  %343 = vmatpush1.msra.mxu0 0.0
  %344 = vmatprep.subr.mxu0 0.0
  %345 = vmatpush1.msra.mxu0 0.0
  %346 = vmatprep.subr.mxu0 0.0
  %347 = vmatpush1.msra.mxu0 0.0
  %348 = vmatprep.subr.mxu0 0.0
  %349 = vmatpush1.msra.mxu0 0.0
  %350 = vmatprep.subr.mxu0 0.0
  %351 = vmatpush1.msra.mxu0 0.0
  %352 = vmatprep.subr.mxu0 0.0
  %353 = vmatpush1.msra.mxu0 0.0
  %354 = vmatprep.mubr.f32.mxu0 0.0
  %355 = vmatmul.mubr.f32.gmra.mrb[0].mxu0 %v288
  %v356 = vpop.f32.mrb[0].mxu0
  %v357 = vadd.f32 %v179, %v356
  %v358 = vpop.f32.mrb[0].mxu0
  %359 = vdwg.mxu0
  %360 = vmatprep.subr.mxu0 0.0
  %361 = vmatpush1.msra.mxu0 %v162
  %362 = vmatprep.subr.mxu0 0.0
  %363 = vmatpush1.msra.mxu0 %v163
  %364 = vmatprep.subr.mxu0 0.0
  %365 = vmatpush1.msra.mxu0 %v164
  %366 = vmatprep.subr.mxu0 0.0
  %367 = vmatpush1.msra.mxu0 %v165
  %368 = vmatprep.subr.mxu0 0.0
  %369 = vmatpush1.msra.mxu0 0.0
  %370 = vmatprep.subr.mxu0 0.0
  %371 = vmatpush1.msra.mxu0 0.0
  %372 = vmatprep.subr.mxu0 0.0
  %373 = vmatpush1.msra.mxu0 0.0
  %374 = vmatprep.subr.mxu0 0.0
  %375 = vmatpush1.msra.mxu0 0.0
  %376 = vmatprep.subr.mxu0 0.0
  %377 = vmatpush1.msra.mxu0 0.0
  %378 = vmatprep.subr.mxu0 0.0
  %379 = vmatpush1.msra.mxu0 0.0
  %380 = vmatprep.subr.mxu0 0.0
  %381 = vmatpush1.msra.mxu0 0.0
  %382 = vmatprep.subr.mxu0 0.0
  %383 = vmatpush1.msra.mxu0 0.0
  %384 = vmatprep.subr.mxu0 0.0
  %385 = vmatpush1.msra.mxu0 0.0
  %386 = vmatprep.subr.mxu0 0.0
  %387 = vmatpush1.msra.mxu0 0.0
  %388 = vmatprep.subr.mxu0 0.0
  %389 = vmatpush1.msra.mxu0 0.0
  %390 = vmatprep.subr.mxu0 0.0
  %391 = vmatpush1.msra.mxu0 0.0
  %392 = vmatprep.subr.mxu0 0.0
  %393 = vmatpush1.msra.mxu0 0.0
  %394 = vmatprep.subr.mxu0 0.0
  %395 = vmatpush1.msra.mxu0 0.0
  %396 = vmatprep.subr.mxu0 0.0
  %397 = vmatpush1.msra.mxu0 0.0
  %398 = vmatprep.subr.mxu0 0.0
  %399 = vmatpush1.msra.mxu0 0.0
  %400 = vmatprep.subr.mxu0 0.0
  %401 = vmatpush1.msra.mxu0 0.0
  %402 = vmatprep.subr.mxu0 0.0
  %403 = vmatpush1.msra.mxu0 0.0
  %404 = vmatprep.subr.mxu0 0.0
  %405 = vmatpush1.msra.mxu0 0.0
  %406 = vmatprep.subr.mxu0 0.0
  %407 = vmatpush1.msra.mxu0 0.0
  %408 = vmatprep.subr.mxu0 0.0
  %409 = vmatpush1.msra.mxu0 0.0
  %410 = vmatprep.subr.mxu0 0.0
  %411 = vmatpush1.msra.mxu0 0.0
  %412 = vmatprep.subr.mxu0 0.0
  %413 = vmatpush1.msra.mxu0 0.0
  %414 = vmatprep.subr.mxu0 0.0
  %415 = vmatpush1.msra.mxu0 0.0
  %416 = vmatprep.subr.mxu0 0.0
  %417 = vmatpush1.msra.mxu0 0.0
  %418 = vmatprep.subr.mxu0 0.0
  %419 = vmatpush1.msra.mxu0 0.0
  %420 = vmatprep.subr.mxu0 0.0
  %421 = vmatpush1.msra.mxu0 0.0
  %422 = vmatprep.subr.mxu0 0.0
  %423 = vmatpush1.msra.mxu0 0.0
  %424 = vmatprep.mubr.f32.mxu0 0.0
  %425 = vmatmul.mubr.f32.gmra.mrb[0].mxu0 %v288
  %v426 = vpop.f32.mrb[0].mxu0
  %v427 = vadd.f32 0.0, %v426
  %v428 = vpop.f32.mrb[0].mxu0
  %429 = vdwg.mxu0
  %v430 = vadd.f32 %v129, %v427
  %v431 = vxor.u32 %v430, 2147483648
  %v432 = vmul.f32 %v431, 1.442695
  %v433 = vpow.pop %v432
  %v434 = vadd.f32 %v433, 1.0
  %v435 = vrcp.pop %v434
  %v436 = vmul.f32 1.0, %v435
  %v437 = vadd.f32 %v427, %v263
  %439 = vrot.lane.b32.xlu0 %v437, 64
  %v440 = vpop.permute.xlu0 %439
  %v442 = vmul.f32 %v436, %v440
  %444 = vrot.lane.b32.xlu0 %v442, 64
  %v445 = vpop.permute.xlu0 %444
  %v447 = vadd.f32 %v129, %v445
  %v448 = vtanh.pop %v447
  %v449 = vsub.f32 1.0, %v436
  %451 = vrot.lane.b32.xlu0 %v448, 96
  %v452 = vpop.permute.xlu0 %451
  %v454 = vmul.f32 %v449, %v452
  %v455 = vmul.f32 %v436, %v284
  %v456 = vadd.f32 %v454, %v455
  %458 = vrot.lane.b32.xlu0 %v456, 96
  %v459 = vpop.permute.xlu0 %458
  %v460 = vsel %vm180, %v459, 0
  %462 = vmatprep.subr.mxu0 0.0
  %463 = vmatpush1.msra.mxu0 %v171
  %464 = vmatprep.subr.mxu0 0.0
  %465 = vmatpush1.msra.mxu0 %v172
  %466 = vmatprep.subr.mxu0 0.0
  %467 = vmatpush1.msra.mxu0 %v173
  %468 = vmatprep.subr.mxu0 0.0
  %469 = vmatpush1.msra.mxu0 %v174
  %470 = vmatprep.subr.mxu0 0.0
  %471 = vmatpush1.msra.mxu0 0.0
  %472 = vmatprep.subr.mxu0 0.0
  %473 = vmatpush1.msra.mxu0 0.0
  %474 = vmatprep.subr.mxu0 0.0
  %475 = vmatpush1.msra.mxu0 0.0
  %476 = vmatprep.subr.mxu0 0.0
  %477 = vmatpush1.msra.mxu0 0.0
  %478 = vmatprep.subr.mxu0 0.0
  %479 = vmatpush1.msra.mxu0 0.0
  %480 = vmatprep.subr.mxu0 0.0
  %481 = vmatpush1.msra.mxu0 0.0
  %482 = vmatprep.subr.mxu0 0.0
  %483 = vmatpush1.msra.mxu0 0.0
  %484 = vmatprep.subr.mxu0 0.0
  %485 = vmatpush1.msra.mxu0 0.0
  %486 = vmatprep.subr.mxu0 0.0
  %487 = vmatpush1.msra.mxu0 0.0
  %488 = vmatprep.subr.mxu0 0.0
  %489 = vmatpush1.msra.mxu0 0.0
  %490 = vmatprep.subr.mxu0 0.0
  %491 = vmatpush1.msra.mxu0 0.0
  %492 = vmatprep.subr.mxu0 0.0
  %493 = vmatpush1.msra.mxu0 0.0
  %494 = vmatprep.subr.mxu0 0.0
  %495 = vmatpush1.msra.mxu0 0.0
  %496 = vmatprep.subr.mxu0 0.0
  %497 = vmatpush1.msra.mxu0 0.0
  %498 = vmatprep.subr.mxu0 0.0
  %499 = vmatpush1.msra.mxu0 0.0
  %500 = vmatprep.subr.mxu0 0.0
  %501 = vmatpush1.msra.mxu0 0.0
  %502 = vmatprep.subr.mxu0 0.0
  %503 = vmatpush1.msra.mxu0 0.0
  %504 = vmatprep.subr.mxu0 0.0
  %505 = vmatpush1.msra.mxu0 0.0
  %506 = vmatprep.subr.mxu0 0.0
  %507 = vmatpush1.msra.mxu0 0.0
  %508 = vmatprep.subr.mxu0 0.0
  %509 = vmatpush1.msra.mxu0 0.0
  %510 = vmatprep.subr.mxu0 0.0
  %511 = vmatpush1.msra.mxu0 0.0
  %512 = vmatprep.subr.mxu0 0.0
  %513 = vmatpush1.msra.mxu0 0.0
  %514 = vmatprep.subr.mxu0 0.0
  %515 = vmatpush1.msra.mxu0 0.0
  %516 = vmatprep.subr.mxu0 0.0
  %517 = vmatpush1.msra.mxu0 0.0
  %518 = vmatprep.subr.mxu0 0.0
  %519 = vmatpush1.msra.mxu0 0.0
  %520 = vmatprep.subr.mxu0 0.0
  %521 = vmatpush1.msra.mxu0 0.0
  %522 = vmatprep.subr.mxu0 0.0
  %523 = vmatpush1.msra.mxu0 0.0
  %524 = vmatprep.subr.mxu0 0.0
  %525 = vmatpush1.msra.mxu0 0.0
  %526 = vmatprep.mubr.f32.mxu0 0.0
  %527 = vmatmul.mubr.f32.gmra.mrb[0].mxu0 %v460
  %v528 = vpop.f32.mrb[0].mxu0
  %v529 = vadd.f32 %v179, %v528
  %v530 = vpop.f32.mrb[0].mxu0
  %531 = vdwg.mxu0
  %532 = vmatprep.subr.mxu0 0.0
  %533 = vmatpush1.msra.mxu0 %v162
  %534 = vmatprep.subr.mxu0 0.0
  %535 = vmatpush1.msra.mxu0 %v163
  %536 = vmatprep.subr.mxu0 0.0
  %537 = vmatpush1.msra.mxu0 %v164
  %538 = vmatprep.subr.mxu0 0.0
  %539 = vmatpush1.msra.mxu0 %v165
  %540 = vmatprep.subr.mxu0 0.0
  %541 = vmatpush1.msra.mxu0 0.0
  %542 = vmatprep.subr.mxu0 0.0
  %543 = vmatpush1.msra.mxu0 0.0
  %544 = vmatprep.subr.mxu0 0.0
  %545 = vmatpush1.msra.mxu0 0.0
  %546 = vmatprep.subr.mxu0 0.0
  %547 = vmatpush1.msra.mxu0 0.0
  %548 = vmatprep.subr.mxu0 0.0
  %549 = vmatpush1.msra.mxu0 0.0
  %550 = vmatprep.subr.mxu0 0.0
  %551 = vmatpush1.msra.mxu0 0.0
  %552 = vmatprep.subr.mxu0 0.0
  %553 = vmatpush1.msra.mxu0 0.0
  %554 = vmatprep.subr.mxu0 0.0
  %555 = vmatpush1.msra.mxu0 0.0
  %556 = vmatprep.subr.mxu0 0.0
  %557 = vmatpush1.msra.mxu0 0.0
  %558 = vmatprep.subr.mxu0 0.0
  %559 = vmatpush1.msra.mxu0 0.0
  %560 = vmatprep.subr.mxu0 0.0
  %561 = vmatpush1.msra.mxu0 0.0
  %562 = vmatprep.subr.mxu0 0.0
  %563 = vmatpush1.msra.mxu0 0.0
  %564 = vmatprep.subr.mxu0 0.0
  %565 = vmatpush1.msra.mxu0 0.0
  %566 = vmatprep.subr.mxu0 0.0
  %567 = vmatpush1.msra.mxu0 0.0
  %568 = vmatprep.subr.mxu0 0.0
  %569 = vmatpush1.msra.mxu0 0.0
  %570 = vmatprep.subr.mxu0 0.0
  %571 = vmatpush1.msra.mxu0 0.0
  %572 = vmatprep.subr.mxu0 0.0
  %573 = vmatpush1.msra.mxu0 0.0
  %574 = vmatprep.subr.mxu0 0.0
  %575 = vmatpush1.msra.mxu0 0.0
  %576 = vmatprep.subr.mxu0 0.0
  %577 = vmatpush1.msra.mxu0 0.0
  %578 = vmatprep.subr.mxu0 0.0
  %579 = vmatpush1.msra.mxu0 0.0
  %580 = vmatprep.subr.mxu0 0.0
  %581 = vmatpush1.msra.mxu0 0.0
  %582 = vmatprep.subr.mxu0 0.0
  %583 = vmatpush1.msra.mxu0 0.0
  %584 = vmatprep.subr.mxu0 0.0
  %585 = vmatpush1.msra.mxu0 0.0
  %586 = vmatprep.subr.mxu0 0.0
  %587 = vmatpush1.msra.mxu0 0.0
  %588 = vmatprep.subr.mxu0 0.0
  %589 = vmatpush1.msra.mxu0 0.0
  %590 = vmatprep.subr.mxu0 0.0
  %591 = vmatpush1.msra.mxu0 0.0
  %592 = vmatprep.subr.mxu0 0.0
  %593 = vmatpush1.msra.mxu0 0.0
  %594 = vmatprep.subr.mxu0 0.0
  %595 = vmatpush1.msra.mxu0 0.0
  %596 = vmatprep.mubr.f32.mxu0 0.0
  %597 = vmatmul.mubr.f32.gmra.mrb[0].mxu0 %v460
  %v598 = vpop.f32.mrb[0].mxu0
  %v599 = vadd.f32 0.0, %v598
  %v600 = vpop.f32.mrb[0].mxu0
  %601 = vdwg.mxu0
  %v602 = vadd.f32 %v134, %v599
  %v603 = vxor.u32 %v602, 2147483648
  %v604 = vmul.f32 %v603, 1.442695
  %v605 = vpow.pop %v604
  %v606 = vadd.f32 %v605, 1.0
  %v607 = vrcp.pop %v606
  %v608 = vmul.f32 1.0, %v607
  %v609 = vadd.f32 %v599, %v263
  %611 = vrot.lane.b32.xlu0 %v609, 64
  %v612 = vpop.permute.xlu0 %611
  %v614 = vmul.f32 %v608, %v612
  %616 = vrot.lane.b32.xlu0 %v614, 64
  %v617 = vpop.permute.xlu0 %616
  %v619 = vadd.f32 %v134, %v617
  %v620 = vtanh.pop %v619
  %v621 = vsub.f32 1.0, %v608
  %623 = vrot.lane.b32.xlu0 %v620, 96
  %v624 = vpop.permute.xlu0 %623
  %v626 = vmul.f32 %v621, %v624
  %v627 = vmul.f32 %v608, %v456
  %v628 = vadd.f32 %v626, %v627
  %630 = vrot.lane.b32.xlu0 %v628, 96
  %v631 = vpop.permute.xlu0 %630
  %v632 = vsel %vm180, %v631, 0
  %634 = vmatprep.subr.mxu0 0.0
  %635 = vmatpush1.msra.mxu0 %v171
  %636 = vmatprep.subr.mxu0 0.0
  %637 = vmatpush1.msra.mxu0 %v172
  %638 = vmatprep.subr.mxu0 0.0
  %639 = vmatpush1.msra.mxu0 %v173
  %640 = vmatprep.subr.mxu0 0.0
  %641 = vmatpush1.msra.mxu0 %v174
  %642 = vmatprep.subr.mxu0 0.0
  %643 = vmatpush1.msra.mxu0 0.0
  %644 = vmatprep.subr.mxu0 0.0
  %645 = vmatpush1.msra.mxu0 0.0
  %646 = vmatprep.subr.mxu0 0.0
  %647 = vmatpush1.msra.mxu0 0.0
  %648 = vmatprep.subr.mxu0 0.0
  %649 = vmatpush1.msra.mxu0 0.0
  %650 = vmatprep.subr.mxu0 0.0
  %651 = vmatpush1.msra.mxu0 0.0
  %652 = vmatprep.subr.mxu0 0.0
  %653 = vmatpush1.msra.mxu0 0.0
  %654 = vmatprep.subr.mxu0 0.0
  %655 = vmatpush1.msra.mxu0 0.0
  %656 = vmatprep.subr.mxu0 0.0
  %657 = vmatpush1.msra.mxu0 0.0
  %658 = vmatprep.subr.mxu0 0.0
  %659 = vmatpush1.msra.mxu0 0.0
  %660 = vmatprep.subr.mxu0 0.0
  %661 = vmatpush1.msra.mxu0 0.0
  %662 = vmatprep.subr.mxu0 0.0
  %663 = vmatpush1.msra.mxu0 0.0
  %664 = vmatprep.subr.mxu0 0.0
  %665 = vmatpush1.msra.mxu0 0.0
  %666 = vmatprep.subr.mxu0 0.0
  %667 = vmatpush1.msra.mxu0 0.0
  %668 = vmatprep.subr.mxu0 0.0
  %669 = vmatpush1.msra.mxu0 0.0
  %670 = vmatprep.subr.mxu0 0.0
  %671 = vmatpush1.msra.mxu0 0.0
  %672 = vmatprep.subr.mxu0 0.0
  %673 = vmatpush1.msra.mxu0 0.0
  %674 = vmatprep.subr.mxu0 0.0
  %675 = vmatpush1.msra.mxu0 0.0
  %676 = vmatprep.subr.mxu0 0.0
  %677 = vmatpush1.msra.mxu0 0.0
  %678 = vmatprep.subr.mxu0 0.0
  %679 = vmatpush1.msra.mxu0 0.0
  %680 = vmatprep.subr.mxu0 0.0
  %681 = vmatpush1.msra.mxu0 0.0
  %682 = vmatprep.subr.mxu0 0.0
  %683 = vmatpush1.msra.mxu0 0.0
  %684 = vmatprep.subr.mxu0 0.0
  %685 = vmatpush1.msra.mxu0 0.0
  %686 = vmatprep.subr.mxu0 0.0
  %687 = vmatpush1.msra.mxu0 0.0
  %688 = vmatprep.subr.mxu0 0.0
  %689 = vmatpush1.msra.mxu0 0.0
  %690 = vmatprep.subr.mxu0 0.0
  %691 = vmatpush1.msra.mxu0 0.0
  %692 = vmatprep.subr.mxu0 0.0
  %693 = vmatpush1.msra.mxu0 0.0
  %694 = vmatprep.subr.mxu0 0.0
  %695 = vmatpush1.msra.mxu0 0.0
  %696 = vmatprep.subr.mxu0 0.0
  %697 = vmatpush1.msra.mxu0 0.0
  %698 = vmatprep.mubr.f32.mxu0 0.0
  %699 = vmatmul.mubr.f32.gmra.mrb[0].mxu0 %v632
  %v700 = vpop.f32.mrb[0].mxu0
  %v701 = vadd.f32 %v179, %v700
  %v702 = vpop.f32.mrb[0].mxu0
  %703 = vdwg.mxu0
  %704 = vmatprep.subr.mxu0 0.0
  %705 = vmatpush1.msra.mxu0 %v162
  %706 = vmatprep.subr.mxu0 0.0
  %707 = vmatpush1.msra.mxu0 %v163
  %708 = vmatprep.subr.mxu0 0.0
  %709 = vmatpush1.msra.mxu0 %v164
  %710 = vmatprep.subr.mxu0 0.0
  %711 = vmatpush1.msra.mxu0 %v165
  %712 = vmatprep.subr.mxu0 0.0
  %713 = vmatpush1.msra.mxu0 0.0
  %714 = vmatprep.subr.mxu0 0.0
  %715 = vmatpush1.msra.mxu0 0.0
  %716 = vmatprep.subr.mxu0 0.0
  %717 = vmatpush1.msra.mxu0 0.0
  %718 = vmatprep.subr.mxu0 0.0
  %719 = vmatpush1.msra.mxu0 0.0
  %720 = vmatprep.subr.mxu0 0.0
  %721 = vmatpush1.msra.mxu0 0.0
  %722 = vmatprep.subr.mxu0 0.0
  %723 = vmatpush1.msra.mxu0 0.0
  %724 = vmatprep.subr.mxu0 0.0
  %725 = vmatpush1.msra.mxu0 0.0
  %726 = vmatprep.subr.mxu0 0.0
  %727 = vmatpush1.msra.mxu0 0.0
  %728 = vmatprep.subr.mxu0 0.0
  %729 = vmatpush1.msra.mxu0 0.0
  %730 = vmatprep.subr.mxu0 0.0
  %731 = vmatpush1.msra.mxu0 0.0
  %732 = vmatprep.subr.mxu0 0.0
  %733 = vmatpush1.msra.mxu0 0.0
  %734 = vmatprep.subr.mxu0 0.0
  %735 = vmatpush1.msra.mxu0 0.0
  %736 = vmatprep.subr.mxu0 0.0
  %737 = vmatpush1.msra.mxu0 0.0
  %738 = vmatprep.subr.mxu0 0.0
  %739 = vmatpush1.msra.mxu0 0.0
  %740 = vmatprep.subr.mxu0 0.0
  %741 = vmatpush1.msra.mxu0 0.0
  %742 = vmatprep.subr.mxu0 0.0
  %743 = vmatpush1.msra.mxu0 0.0
  %744 = vmatprep.subr.mxu0 0.0
  %745 = vmatpush1.msra.mxu0 0.0
  %746 = vmatprep.subr.mxu0 0.0
  %747 = vmatpush1.msra.mxu0 0.0
  %748 = vmatprep.subr.mxu0 0.0
  %749 = vmatpush1.msra.mxu0 0.0
  %750 = vmatprep.subr.mxu0 0.0
  %751 = vmatpush1.msra.mxu0 0.0
  %752 = vmatprep.subr.mxu0 0.0
  %753 = vmatpush1.msra.mxu0 0.0
  %754 = vmatprep.subr.mxu0 0.0
  %755 = vmatpush1.msra.mxu0 0.0
  %756 = vmatprep.subr.mxu0 0.0
  %757 = vmatpush1.msra.mxu0 0.0
  %758 = vmatprep.subr.mxu0 0.0
  %759 = vmatpush1.msra.mxu0 0.0
  %760 = vmatprep.subr.mxu0 0.0
  %761 = vmatpush1.msra.mxu0 0.0
  %762 = vmatprep.subr.mxu0 0.0
  %763 = vmatpush1.msra.mxu0 0.0
  %764 = vmatprep.subr.mxu0 0.0
  %765 = vmatpush1.msra.mxu0 0.0
  %766 = vmatprep.subr.mxu0 0.0
  %767 = vmatpush1.msra.mxu0 0.0
  %768 = vmatprep.mubr.f32.mxu0 0.0
  %769 = vmatmul.mubr.f32.gmra.mrb[0].mxu0 %v632
  %v770 = vpop.f32.mrb[0].mxu0
  %v771 = vadd.f32 0.0, %v770
  %v772 = vpop.f32.mrb[0].mxu0
  %773 = vdwg.mxu0
  %v774 = vadd.f32 %v139, %v771
  %v775 = vxor.u32 %v774, 2147483648
  %v776 = vmul.f32 %v775, 1.442695
  %v777 = vpow.pop %v776
  %v778 = vadd.f32 %v777, 1.0
  %v779 = vrcp.pop %v778
  %v780 = vmul.f32 1.0, %v779
  %v781 = vadd.f32 %v771, %v263
  %783 = vrot.lane.b32.xlu0 %v781, 64
  %v784 = vpop.permute.xlu0 %783
  %v786 = vmul.f32 %v780, %v784
  %788 = vrot.lane.b32.xlu0 %v786, 64
  %v789 = vpop.permute.xlu0 %788
  %v791 = vadd.f32 %v139, %v789
  %v792 = vtanh.pop %v791
  %v793 = vsub.f32 1.0, %v780
  %795 = vrot.lane.b32.xlu0 %v792, 96
  %v796 = vpop.permute.xlu0 %795
  %v798 = vmul.f32 %v793, %v796
  %v799 = vmul.f32 %v780, %v628
  %v800 = vadd.f32 %v798, %v799
  %802 = vrot.lane.b32.xlu0 %v800, 96
  %v803 = vpop.permute.xlu0 %802
  %v804 = vsel %vm180, %v803, 0
  %806 = vmatprep.subr.mxu0 0.0
  %807 = vmatpush1.msra.mxu0 %v171
  %808 = vmatprep.subr.mxu0 0.0
  %809 = vmatpush1.msra.mxu0 %v172
  %810 = vmatprep.subr.mxu0 0.0
  %811 = vmatpush1.msra.mxu0 %v173
  %812 = vmatprep.subr.mxu0 0.0
  %813 = vmatpush1.msra.mxu0 %v174
  %814 = vmatprep.subr.mxu0 0.0
  %815 = vmatpush1.msra.mxu0 0.0
  %816 = vmatprep.subr.mxu0 0.0
  %817 = vmatpush1.msra.mxu0 0.0
  %818 = vmatprep.subr.mxu0 0.0
  %819 = vmatpush1.msra.mxu0 0.0
  %820 = vmatprep.subr.mxu0 0.0
  %821 = vmatpush1.msra.mxu0 0.0
  %822 = vmatprep.subr.mxu0 0.0
  %823 = vmatpush1.msra.mxu0 0.0
  %824 = vmatprep.subr.mxu0 0.0
  %825 = vmatpush1.msra.mxu0 0.0
  %826 = vmatprep.subr.mxu0 0.0
  %827 = vmatpush1.msra.mxu0 0.0
  %828 = vmatprep.subr.mxu0 0.0
  %829 = vmatpush1.msra.mxu0 0.0
  %830 = vmatprep.subr.mxu0 0.0
  %831 = vmatpush1.msra.mxu0 0.0
  %832 = vmatprep.subr.mxu0 0.0
  %833 = vmatpush1.msra.mxu0 0.0
  %834 = vmatprep.subr.mxu0 0.0
  %835 = vmatpush1.msra.mxu0 0.0
  %836 = vmatprep.subr.mxu0 0.0
  %837 = vmatpush1.msra.mxu0 0.0
  %838 = vmatprep.subr.mxu0 0.0
  %839 = vmatpush1.msra.mxu0 0.0
  %840 = vmatprep.subr.mxu0 0.0
  %841 = vmatpush1.msra.mxu0 0.0
  %842 = vmatprep.subr.mxu0 0.0
  %843 = vmatpush1.msra.mxu0 0.0
  %844 = vmatprep.subr.mxu0 0.0
  %845 = vmatpush1.msra.mxu0 0.0
  %846 = vmatprep.subr.mxu0 0.0
  %847 = vmatpush1.msra.mxu0 0.0
  %848 = vmatprep.subr.mxu0 0.0
  %849 = vmatpush1.msra.mxu0 0.0
  %850 = vmatprep.subr.mxu0 0.0
  %851 = vmatpush1.msra.mxu0 0.0
  %852 = vmatprep.subr.mxu0 0.0
  %853 = vmatpush1.msra.mxu0 0.0
  %854 = vmatprep.subr.mxu0 0.0
  %855 = vmatpush1.msra.mxu0 0.0
  %856 = vmatprep.subr.mxu0 0.0
  %857 = vmatpush1.msra.mxu0 0.0
  %858 = vmatprep.subr.mxu0 0.0
  %859 = vmatpush1.msra.mxu0 0.0
  %860 = vmatprep.subr.mxu0 0.0
  %861 = vmatpush1.msra.mxu0 0.0
  %862 = vmatprep.subr.mxu0 0.0
  %863 = vmatpush1.msra.mxu0 0.0
  %864 = vmatprep.subr.mxu0 0.0
  %865 = vmatpush1.msra.mxu0 0.0
  %866 = vmatprep.subr.mxu0 0.0
  %867 = vmatpush1.msra.mxu0 0.0
  %868 = vmatprep.subr.mxu0 0.0
  %869 = vmatpush1.msra.mxu0 0.0
  %870 = vmatprep.mubr.f32.mxu0 0.0
  %871 = vmatmul.mubr.f32.gmra.mrb[0].mxu0 %v804
  %v872 = vpop.f32.mrb[0].mxu0
  %v873 = vadd.f32 %v179, %v872
  %v874 = vpop.f32.mrb[0].mxu0
  %875 = vdwg.mxu0
  %876 = vmatprep.subr.mxu0 0.0
  %877 = vmatpush1.msra.mxu0 %v162
  %878 = vmatprep.subr.mxu0 0.0
  %879 = vmatpush1.msra.mxu0 %v163
  %880 = vmatprep.subr.mxu0 0.0
  %881 = vmatpush1.msra.mxu0 %v164
  %882 = vmatprep.subr.mxu0 0.0
  %883 = vmatpush1.msra.mxu0 %v165
  %884 = vmatprep.subr.mxu0 0.0
  %885 = vmatpush1.msra.mxu0 0.0
  %886 = vmatprep.subr.mxu0 0.0
  %887 = vmatpush1.msra.mxu0 0.0
  %888 = vmatprep.subr.mxu0 0.0
  %889 = vmatpush1.msra.mxu0 0.0
  %890 = vmatprep.subr.mxu0 0.0
  %891 = vmatpush1.msra.mxu0 0.0
  %892 = vmatprep.subr.mxu0 0.0
  %893 = vmatpush1.msra.mxu0 0.0
  %894 = vmatprep.subr.mxu0 0.0
  %895 = vmatpush1.msra.mxu0 0.0
  %896 = vmatprep.subr.mxu0 0.0
  %897 = vmatpush1.msra.mxu0 0.0
  %898 = vmatprep.subr.mxu0 0.0
  %899 = vmatpush1.msra.mxu0 0.0
  %900 = vmatprep.subr.mxu0 0.0
  %901 = vmatpush1.msra.mxu0 0.0
  %902 = vmatprep.subr.mxu0 0.0
  %903 = vmatpush1.msra.mxu0 0.0
  %904 = vmatprep.subr.mxu0 0.0
  %905 = vmatpush1.msra.mxu0 0.0
  %906 = vmatprep.subr.mxu0 0.0
  %907 = vmatpush1.msra.mxu0 0.0
  %908 = vmatprep.subr.mxu0 0.0
  %909 = vmatpush1.msra.mxu0 0.0
  %910 = vmatprep.subr.mxu0 0.0
  %911 = vmatpush1.msra.mxu0 0.0
  %912 = vmatprep.subr.mxu0 0.0
  %913 = vmatpush1.msra.mxu0 0.0
  %914 = vmatprep.subr.mxu0 0.0
  %915 = vmatpush1.msra.mxu0 0.0
  %916 = vmatprep.subr.mxu0 0.0
  %917 = vmatpush1.msra.mxu0 0.0
  %918 = vmatprep.subr.mxu0 0.0
  %919 = vmatpush1.msra.mxu0 0.0
  %920 = vmatprep.subr.mxu0 0.0
  %921 = vmatpush1.msra.mxu0 0.0
  %922 = vmatprep.subr.mxu0 0.0
  %923 = vmatpush1.msra.mxu0 0.0
  %924 = vmatprep.subr.mxu0 0.0
  %925 = vmatpush1.msra.mxu0 0.0
  %926 = vmatprep.subr.mxu0 0.0
  %927 = vmatpush1.msra.mxu0 0.0
  %928 = vmatprep.subr.mxu0 0.0
  %929 = vmatpush1.msra.mxu0 0.0
  %930 = vmatprep.subr.mxu0 0.0
  %931 = vmatpush1.msra.mxu0 0.0
  %932 = vmatprep.subr.mxu0 0.0
  %933 = vmatpush1.msra.mxu0 0.0
  %934 = vmatprep.subr.mxu0 0.0
  %935 = vmatpush1.msra.mxu0 0.0
  %936 = vmatprep.subr.mxu0 0.0
  %937 = vmatpush1.msra.mxu0 0.0
  %938 = vmatprep.subr.mxu0 0.0
  %939 = vmatpush1.msra.mxu0 0.0
  %940 = vmatprep.mubr.f32.mxu0 0.0
  %941 = vmatmul.mubr.f32.gmra.mrb[0].mxu0 %v804
  %v942 = vpop.f32.mrb[0].mxu0
  %v943 = vadd.f32 0.0, %v942
  %v944 = vpop.f32.mrb[0].mxu0
  %945 = vdwg.mxu0
  %v946 = vadd.f32 %v144, %v943
  %v947 = vxor.u32 %v946, 2147483648
  %v948 = vmul.f32 %v947, 1.442695
  %v949 = vpow.pop %v948
  %v950 = vadd.f32 %v949, 1.0
  %v951 = vrcp.pop %v950
  %v952 = vmul.f32 1.0, %v951
  %v953 = vadd.f32 %v943, %v263
  %955 = vrot.lane.b32.xlu0 %v953, 64
  %v956 = vpop.permute.xlu0 %955
  %v958 = vmul.f32 %v952, %v956
  %960 = vrot.lane.b32.xlu0 %v958, 64
  %v961 = vpop.permute.xlu0 %960
  %v963 = vadd.f32 %v144, %v961
  %v964 = vtanh.pop %v963
  %v965 = vsub.f32 1.0, %v952
  %967 = vrot.lane.b32.xlu0 %v964, 96
  %v968 = vpop.permute.xlu0 %967
  %v970 = vmul.f32 %v965, %v968
  %v971 = vmul.f32 %v952, %v800
  %v972 = vadd.f32 %v970, %v971
  %974 = vrot.lane.b32.xlu0 %v972, 96
  %v975 = vpop.permute.xlu0 %974
  %v976 = vsel %vm180, %v975, 0
  %978 = vmatprep.subr.mxu0 0.0
  %979 = vmatpush1.msra.mxu0 %v171
  %980 = vmatprep.subr.mxu0 0.0
  %981 = vmatpush1.msra.mxu0 %v172
  %982 = vmatprep.subr.mxu0 0.0
  %983 = vmatpush1.msra.mxu0 %v173
  %984 = vmatprep.subr.mxu0 0.0
  %985 = vmatpush1.msra.mxu0 %v174
  %986 = vmatprep.subr.mxu0 0.0
  %987 = vmatpush1.msra.mxu0 0.0
  %988 = vmatprep.subr.mxu0 0.0
  %989 = vmatpush1.msra.mxu0 0.0
  %990 = vmatprep.subr.mxu0 0.0
  %991 = vmatpush1.msra.mxu0 0.0
  %992 = vmatprep.subr.mxu0 0.0
  %993 = vmatpush1.msra.mxu0 0.0
  %994 = vmatprep.subr.mxu0 0.0
  %995 = vmatpush1.msra.mxu0 0.0
  %996 = vmatprep.subr.mxu0 0.0
  %997 = vmatpush1.msra.mxu0 0.0
  %998 = vmatprep.subr.mxu0 0.0
  %999 = vmatpush1.msra.mxu0 0.0
  %1000 = vmatprep.subr.mxu0 0.0
  %1001 = vmatpush1.msra.mxu0 0.0
  %1002 = vmatprep.subr.mxu0 0.0
  %1003 = vmatpush1.msra.mxu0 0.0
  %1004 = vmatprep.subr.mxu0 0.0
  %1005 = vmatpush1.msra.mxu0 0.0
  %1006 = vmatprep.subr.mxu0 0.0
  %1007 = vmatpush1.msra.mxu0 0.0
  %1008 = vmatprep.subr.mxu0 0.0
  %1009 = vmatpush1.msra.mxu0 0.0
  %1010 = vmatprep.subr.mxu0 0.0
  %1011 = vmatpush1.msra.mxu0 0.0
  %1012 = vmatprep.subr.mxu0 0.0
  %1013 = vmatpush1.msra.mxu0 0.0
  %1014 = vmatprep.subr.mxu0 0.0
  %1015 = vmatpush1.msra.mxu0 0.0
  %1016 = vmatprep.subr.mxu0 0.0
  %1017 = vmatpush1.msra.mxu0 0.0
  %1018 = vmatprep.subr.mxu0 0.0
  %1019 = vmatpush1.msra.mxu0 0.0
  %1020 = vmatprep.subr.mxu0 0.0
  %1021 = vmatpush1.msra.mxu0 0.0
  %1022 = vmatprep.subr.mxu0 0.0
  %1023 = vmatpush1.msra.mxu0 0.0
  %1024 = vmatprep.subr.mxu0 0.0
  %1025 = vmatpush1.msra.mxu0 0.0
  %1026 = vmatprep.subr.mxu0 0.0
  %1027 = vmatpush1.msra.mxu0 0.0
  %1028 = vmatprep.subr.mxu0 0.0
  %1029 = vmatpush1.msra.mxu0 0.0
  %1030 = vmatprep.subr.mxu0 0.0
  %1031 = vmatpush1.msra.mxu0 0.0
  %1032 = vmatprep.subr.mxu0 0.0
  %1033 = vmatpush1.msra.mxu0 0.0
  %1034 = vmatprep.subr.mxu0 0.0
  %1035 = vmatpush1.msra.mxu0 0.0
  %1036 = vmatprep.subr.mxu0 0.0
  %1037 = vmatpush1.msra.mxu0 0.0
  %1038 = vmatprep.subr.mxu0 0.0
  %1039 = vmatpush1.msra.mxu0 0.0
  %1040 = vmatprep.subr.mxu0 0.0
  %1041 = vmatpush1.msra.mxu0 0.0
  %1042 = vmatprep.mubr.f32.mxu0 0.0
  %1043 = vmatmul.mubr.f32.gmra.mrb[0].mxu0 %v976
  %v1044 = vpop.f32.mrb[0].mxu0
  %v1045 = vadd.f32 %v179, %v1044
  %v1046 = vpop.f32.mrb[0].mxu0
  %1047 = vdwg.mxu0
  %1048 = vmatprep.subr.mxu0 0.0
  %1049 = vmatpush1.msra.mxu0 %v162
  %1050 = vmatprep.subr.mxu0 0.0
  %1051 = vmatpush1.msra.mxu0 %v163
  %1052 = vmatprep.subr.mxu0 0.0
  %1053 = vmatpush1.msra.mxu0 %v164
  %1054 = vmatprep.subr.mxu0 0.0
  %1055 = vmatpush1.msra.mxu0 %v165
  %1056 = vmatprep.subr.mxu0 0.0
  %1057 = vmatpush1.msra.mxu0 0.0
  %1058 = vmatprep.subr.mxu0 0.0
  %1059 = vmatpush1.msra.mxu0 0.0
  %1060 = vmatprep.subr.mxu0 0.0
  %1061 = vmatpush1.msra.mxu0 0.0
  %1062 = vmatprep.subr.mxu0 0.0
  %1063 = vmatpush1.msra.mxu0 0.0
  %1064 = vmatprep.subr.mxu0 0.0
  %1065 = vmatpush1.msra.mxu0 0.0
  %1066 = vmatprep.subr.mxu0 0.0
  %1067 = vmatpush1.msra.mxu0 0.0
  %1068 = vmatprep.subr.mxu0 0.0
  %1069 = vmatpush1.msra.mxu0 0.0
  %1070 = vmatprep.subr.mxu0 0.0
  %1071 = vmatpush1.msra.mxu0 0.0
  %1072 = vmatprep.subr.mxu0 0.0
  %1073 = vmatpush1.msra.mxu0 0.0
  %1074 = vmatprep.subr.mxu0 0.0
  %1075 = vmatpush1.msra.mxu0 0.0
  %1076 = vmatprep.subr.mxu0 0.0
  %1077 = vmatpush1.msra.mxu0 0.0
  %1078 = vmatprep.subr.mxu0 0.0
  %1079 = vmatpush1.msra.mxu0 0.0
  %1080 = vmatprep.subr.mxu0 0.0
  %1081 = vmatpush1.msra.mxu0 0.0
  %1082 = vmatprep.subr.mxu0 0.0
  %1083 = vmatpush1.msra.mxu0 0.0
  %1084 = vmatprep.subr.mxu0 0.0
  %1085 = vmatpush1.msra.mxu0 0.0
  %1086 = vmatprep.subr.mxu0 0.0
  %1087 = vmatpush1.msra.mxu0 0.0
  %1088 = vmatprep.subr.mxu0 0.0
  %1089 = vmatpush1.msra.mxu0 0.0
  %1090 = vmatprep.subr.mxu0 0.0
  %1091 = vmatpush1.msra.mxu0 0.0
  %1092 = vmatprep.subr.mxu0 0.0
  %1093 = vmatpush1.msra.mxu0 0.0
  %1094 = vmatprep.subr.mxu0 0.0
  %1095 = vmatpush1.msra.mxu0 0.0
  %1096 = vmatprep.subr.mxu0 0.0
  %1097 = vmatpush1.msra.mxu0 0.0
  %1098 = vmatprep.subr.mxu0 0.0
  %1099 = vmatpush1.msra.mxu0 0.0
  %1100 = vmatprep.subr.mxu0 0.0
  %1101 = vmatpush1.msra.mxu0 0.0
  %1102 = vmatprep.subr.mxu0 0.0
  %1103 = vmatpush1.msra.mxu0 0.0
  %1104 = vmatprep.subr.mxu0 0.0
  %1105 = vmatpush1.msra.mxu0 0.0
  %1106 = vmatprep.subr.mxu0 0.0
  %1107 = vmatpush1.msra.mxu0 0.0
  %1108 = vmatprep.subr.mxu0 0.0
  %1109 = vmatpush1.msra.mxu0 0.0
  %1110 = vmatprep.subr.mxu0 0.0
  %1111 = vmatpush1.msra.mxu0 0.0
  %1112 = vmatprep.mubr.f32.mxu0 0.0
  %1113 = vmatmul.mubr.f32.gmra.mrb[0].mxu0 %v976
  %v1114 = vpop.f32.mrb[0].mxu0
  %v1115 = vadd.f32 0.0, %v1114
  %v1116 = vpop.f32.mrb[0].mxu0
  %1117 = vdwg.mxu0
  %v1118 = vadd.f32 %v149, %v1115
  %v1119 = vxor.u32 %v1118, 2147483648
  %v1120 = vmul.f32 %v1119, 1.442695
  %v1121 = vpow.pop %v1120
  %v1122 = vadd.f32 %v1121, 1.0
  %v1123 = vrcp.pop %v1122
  %v1124 = vmul.f32 1.0, %v1123
  %v1125 = vadd.f32 %v1115, %v263
  %1127 = vrot.lane.b32.xlu0 %v1125, 64
  %v1128 = vpop.permute.xlu0 %1127
  %v1130 = vmul.f32 %v1124, %v1128
  %1132 = vrot.lane.b32.xlu0 %v1130, 64
  %v1133 = vpop.permute.xlu0 %1132
  %v1135 = vadd.f32 %v149, %v1133
  %v1136 = vtanh.pop %v1135
  %v1137 = vsub.f32 1.0, %v1124
  %1139 = vrot.lane.b32.xlu0 %v1136, 96
  %v1140 = vpop.permute.xlu0 %1139
  %v1142 = vmul.f32 %v1137, %v1140
  %v1143 = vmul.f32 %v1124, %v972
  %v1144 = vadd.f32 %v1142, %v1143
  %1146 = vrot.lane.b32.xlu0 %v1144, 96
  %v1147 = vpop.permute.xlu0 %1146
  %v1148 = vsel %vm180, %v1147, 0
  %1150 = vmatprep.subr.mxu0 0.0
  %1151 = vmatpush1.msra.mxu0 %v171
  %1152 = vmatprep.subr.mxu0 0.0
  %1153 = vmatpush1.msra.mxu0 %v172
  %1154 = vmatprep.subr.mxu0 0.0
  %1155 = vmatpush1.msra.mxu0 %v173
  %1156 = vmatprep.subr.mxu0 0.0
  %1157 = vmatpush1.msra.mxu0 %v174
  %1158 = vmatprep.subr.mxu0 0.0
  %1159 = vmatpush1.msra.mxu0 0.0
  %1160 = vmatprep.subr.mxu0 0.0
  %1161 = vmatpush1.msra.mxu0 0.0
  %1162 = vmatprep.subr.mxu0 0.0
  %1163 = vmatpush1.msra.mxu0 0.0
  %1164 = vmatprep.subr.mxu0 0.0
  %1165 = vmatpush1.msra.mxu0 0.0
  %1166 = vmatprep.subr.mxu0 0.0
  %1167 = vmatpush1.msra.mxu0 0.0
  %1168 = vmatprep.subr.mxu0 0.0
  %1169 = vmatpush1.msra.mxu0 0.0
  %1170 = vmatprep.subr.mxu0 0.0
  %1171 = vmatpush1.msra.mxu0 0.0
  %1172 = vmatprep.subr.mxu0 0.0
  %1173 = vmatpush1.msra.mxu0 0.0
  %1174 = vmatprep.subr.mxu0 0.0
  %1175 = vmatpush1.msra.mxu0 0.0
  %1176 = vmatprep.subr.mxu0 0.0
  %1177 = vmatpush1.msra.mxu0 0.0
  %1178 = vmatprep.subr.mxu0 0.0
  %1179 = vmatpush1.msra.mxu0 0.0
  %1180 = vmatprep.subr.mxu0 0.0
  %1181 = vmatpush1.msra.mxu0 0.0
  %1182 = vmatprep.subr.mxu0 0.0
  %1183 = vmatpush1.msra.mxu0 0.0
  %1184 = vmatprep.subr.mxu0 0.0
  %1185 = vmatpush1.msra.mxu0 0.0
  %1186 = vmatprep.subr.mxu0 0.0
  %1187 = vmatpush1.msra.mxu0 0.0
  %1188 = vmatprep.subr.mxu0 0.0
  %1189 = vmatpush1.msra.mxu0 0.0
  %1190 = vmatprep.subr.mxu0 0.0
  %1191 = vmatpush1.msra.mxu0 0.0
  %1192 = vmatprep.subr.mxu0 0.0
  %1193 = vmatpush1.msra.mxu0 0.0
  %1194 = vmatprep.subr.mxu0 0.0
  %1195 = vmatpush1.msra.mxu0 0.0
  %1196 = vmatprep.subr.mxu0 0.0
  %1197 = vmatpush1.msra.mxu0 0.0
  %1198 = vmatprep.subr.mxu0 0.0
  %1199 = vmatpush1.msra.mxu0 0.0
  %1200 = vmatprep.subr.mxu0 0.0
  %1201 = vmatpush1.msra.mxu0 0.0
  %1202 = vmatprep.subr.mxu0 0.0
  %1203 = vmatpush1.msra.mxu0 0.0
  %1204 = vmatprep.subr.mxu0 0.0
  %1205 = vmatpush1.msra.mxu0 0.0
  %1206 = vmatprep.subr.mxu0 0.0
  %1207 = vmatpush1.msra.mxu0 0.0
  %1208 = vmatprep.subr.mxu0 0.0
  %1209 = vmatpush1.msra.mxu0 0.0
  %1210 = vmatprep.subr.mxu0 0.0
  %1211 = vmatpush1.msra.mxu0 0.0
  %1212 = vmatprep.subr.mxu0 0.0
  %1213 = vmatpush1.msra.mxu0 0.0
  %1214 = vmatprep.mubr.f32.mxu0 0.0
  %1215 = vmatmul.mubr.f32.gmra.mrb[0].mxu0 %v1148
  %v1216 = vpop.f32.mrb[0].mxu0
  %v1217 = vadd.f32 %v179, %v1216
  %v1218 = vpop.f32.mrb[0].mxu0
  %1219 = vdwg.mxu0
  %1220 = vmatprep.subr.mxu0 0.0
  %1221 = vmatpush1.msra.mxu0 %v162
  %1222 = vmatprep.subr.mxu0 0.0
  %1223 = vmatpush1.msra.mxu0 %v163
  %1224 = vmatprep.subr.mxu0 0.0
  %1225 = vmatpush1.msra.mxu0 %v164
  %1226 = vmatprep.subr.mxu0 0.0
  %1227 = vmatpush1.msra.mxu0 %v165
  %1228 = vmatprep.subr.mxu0 0.0
  %1229 = vmatpush1.msra.mxu0 0.0
  %1230 = vmatprep.subr.mxu0 0.0
  %1231 = vmatpush1.msra.mxu0 0.0
  %1232 = vmatprep.subr.mxu0 0.0
  %1233 = vmatpush1.msra.mxu0 0.0
  %1234 = vmatprep.subr.mxu0 0.0
  %1235 = vmatpush1.msra.mxu0 0.0
  %1236 = vmatprep.subr.mxu0 0.0
  %1237 = vmatpush1.msra.mxu0 0.0
  %1238 = vmatprep.subr.mxu0 0.0
  %1239 = vmatpush1.msra.mxu0 0.0
  %1240 = vmatprep.subr.mxu0 0.0
  %1241 = vmatpush1.msra.mxu0 0.0
  %1242 = vmatprep.subr.mxu0 0.0
  %1243 = vmatpush1.msra.mxu0 0.0
  %1244 = vmatprep.subr.mxu0 0.0
  %1245 = vmatpush1.msra.mxu0 0.0
  %1246 = vmatprep.subr.mxu0 0.0
  %1247 = vmatpush1.msra.mxu0 0.0
  %1248 = vmatprep.subr.mxu0 0.0
  %1249 = vmatpush1.msra.mxu0 0.0
  %1250 = vmatprep.subr.mxu0 0.0
  %1251 = vmatpush1.msra.mxu0 0.0
  %1252 = vmatprep.subr.mxu0 0.0
  %1253 = vmatpush1.msra.mxu0 0.0
  %1254 = vmatprep.subr.mxu0 0.0
  %1255 = vmatpush1.msra.mxu0 0.0
  %1256 = vmatprep.subr.mxu0 0.0
  %1257 = vmatpush1.msra.mxu0 0.0
  %1258 = vmatprep.subr.mxu0 0.0
  %1259 = vmatpush1.msra.mxu0 0.0
  %1260 = vmatprep.subr.mxu0 0.0
  %1261 = vmatpush1.msra.mxu0 0.0
  %1262 = vmatprep.subr.mxu0 0.0
  %1263 = vmatpush1.msra.mxu0 0.0
  %1264 = vmatprep.subr.mxu0 0.0
  %1265 = vmatpush1.msra.mxu0 0.0
  %1266 = vmatprep.subr.mxu0 0.0
  %1267 = vmatpush1.msra.mxu0 0.0
  %1268 = vmatprep.subr.mxu0 0.0
  %1269 = vmatpush1.msra.mxu0 0.0
  %1270 = vmatprep.subr.mxu0 0.0
  %1271 = vmatpush1.msra.mxu0 0.0
  %1272 = vmatprep.subr.mxu0 0.0
  %1273 = vmatpush1.msra.mxu0 0.0
  %1274 = vmatprep.subr.mxu0 0.0
  %1275 = vmatpush1.msra.mxu0 0.0
  %1276 = vmatprep.subr.mxu0 0.0
  %1277 = vmatpush1.msra.mxu0 0.0
  %1278 = vmatprep.subr.mxu0 0.0
  %1279 = vmatpush1.msra.mxu0 0.0
  %1280 = vmatprep.subr.mxu0 0.0
  %1281 = vmatpush1.msra.mxu0 0.0
  %1282 = vmatprep.subr.mxu0 0.0
  %1283 = vmatpush1.msra.mxu0 0.0
  %1284 = vmatprep.mubr.f32.mxu0 0.0
  %1285 = vmatmul.mubr.f32.gmra.mrb[0].mxu0 %v1148
  %v1286 = vpop.f32.mrb[0].mxu0
  %v1287 = vadd.f32 0.0, %v1286
  %v1288 = vpop.f32.mrb[0].mxu0
  %1289 = vdwg.mxu0
  %v1290 = vadd.f32 %v154, %v1287
  %v1291 = vxor.u32 %v1290, 2147483648
  %v1292 = vmul.f32 %v1291, 1.442695
  %v1293 = vpow.pop %v1292
  %v1294 = vadd.f32 %v1293, 1.0
  %v1295 = vrcp.pop %v1294
  %v1296 = vmul.f32 1.0, %v1295
  %v1297 = vadd.f32 %v1287, %v263
  %1299 = vrot.lane.b32.xlu0 %v1297, 64
  %v1300 = vpop.permute.xlu0 %1299
  %v1302 = vmul.f32 %v1296, %v1300
  %1304 = vrot.lane.b32.xlu0 %v1302, 64
  %v1305 = vpop.permute.xlu0 %1304
  %v1307 = vadd.f32 %v154, %v1305
  %v1308 = vtanh.pop %v1307
  %v1309 = vsub.f32 1.0, %v1296
  %1311 = vrot.lane.b32.xlu0 %v1308, 96
  %v1312 = vpop.permute.xlu0 %1311
  %v1314 = vmul.f32 %v1309, %v1312
  %v1315 = vmul.f32 %v1296, %v1144
  %v1316 = vadd.f32 %v1314, %v1315
  %1318 = vrot.lane.b32.xlu0 %v1316, 96
  %v1319 = vpop.permute.xlu0 %1318
  %v1320 = vsel %vm180, %v1319, 0
  %1322 = vmatprep.subr.mxu0 0.0
  %1323 = vmatpush1.msra.mxu0 %v171
  %1324 = vmatprep.subr.mxu0 0.0
  %1325 = vmatpush1.msra.mxu0 %v172
  %1326 = vmatprep.subr.mxu0 0.0
  %1327 = vmatpush1.msra.mxu0 %v173
  %1328 = vmatprep.subr.mxu0 0.0
  %1329 = vmatpush1.msra.mxu0 %v174
  %1330 = vmatprep.subr.mxu0 0.0
  %1331 = vmatpush1.msra.mxu0 0.0
  %1332 = vmatprep.subr.mxu0 0.0
  %1333 = vmatpush1.msra.mxu0 0.0
  %1334 = vmatprep.subr.mxu0 0.0
  %1335 = vmatpush1.msra.mxu0 0.0
  %1336 = vmatprep.subr.mxu0 0.0
  %1337 = vmatpush1.msra.mxu0 0.0
  %1338 = vmatprep.subr.mxu0 0.0
  %1339 = vmatpush1.msra.mxu0 0.0
  %1340 = vmatprep.subr.mxu0 0.0
  %1341 = vmatpush1.msra.mxu0 0.0
  %1342 = vmatprep.subr.mxu0 0.0
  %1343 = vmatpush1.msra.mxu0 0.0
  %1344 = vmatprep.subr.mxu0 0.0
  %1345 = vmatpush1.msra.mxu0 0.0
  %1346 = vmatprep.subr.mxu0 0.0
  %1347 = vmatpush1.msra.mxu0 0.0
  %1348 = vmatprep.subr.mxu0 0.0
  %1349 = vmatpush1.msra.mxu0 0.0
  %1350 = vmatprep.subr.mxu0 0.0
  %1351 = vmatpush1.msra.mxu0 0.0
  %1352 = vmatprep.subr.mxu0 0.0
  %1353 = vmatpush1.msra.mxu0 0.0
  %1354 = vmatprep.subr.mxu0 0.0
  %1355 = vmatpush1.msra.mxu0 0.0
  %1356 = vmatprep.subr.mxu0 0.0
  %1357 = vmatpush1.msra.mxu0 0.0
  %1358 = vmatprep.subr.mxu0 0.0
  %1359 = vmatpush1.msra.mxu0 0.0
  %1360 = vmatprep.subr.mxu0 0.0
  %1361 = vmatpush1.msra.mxu0 0.0
  %1362 = vmatprep.subr.mxu0 0.0
  %1363 = vmatpush1.msra.mxu0 0.0
  %1364 = vmatprep.subr.mxu0 0.0
  %1365 = vmatpush1.msra.mxu0 0.0
  %1366 = vmatprep.subr.mxu0 0.0
  %1367 = vmatpush1.msra.mxu0 0.0
  %1368 = vmatprep.subr.mxu0 0.0
  %1369 = vmatpush1.msra.mxu0 0.0
  %1370 = vmatprep.subr.mxu0 0.0
  %1371 = vmatpush1.msra.mxu0 0.0
  %1372 = vmatprep.subr.mxu0 0.0
  %1373 = vmatpush1.msra.mxu0 0.0
  %1374 = vmatprep.subr.mxu0 0.0
  %1375 = vmatpush1.msra.mxu0 0.0
  %1376 = vmatprep.subr.mxu0 0.0
  %1377 = vmatpush1.msra.mxu0 0.0
  %1378 = vmatprep.subr.mxu0 0.0
  %1379 = vmatpush1.msra.mxu0 0.0
  %1380 = vmatprep.subr.mxu0 0.0
  %1381 = vmatpush1.msra.mxu0 0.0
  %1382 = vmatprep.subr.mxu0 0.0
  %1383 = vmatpush1.msra.mxu0 0.0
  %1384 = vmatprep.subr.mxu0 0.0
  %1385 = vmatpush1.msra.mxu0 0.0
  %1386 = vmatprep.mubr.f32.mxu0 0.0
  %1387 = vmatmul.mubr.f32.gmra.mrb[0].mxu0 %v1320
  %v1388 = vpop.f32.mrb[0].mxu0
  %v1389 = vadd.f32 %v179, %v1388
  %v1390 = vpop.f32.mrb[0].mxu0
  %1391 = vdwg.mxu0
  %1392 = vmatprep.subr.mxu0 0.0
  %1393 = vmatpush1.msra.mxu0 %v162
  %1394 = vmatprep.subr.mxu0 0.0
  %1395 = vmatpush1.msra.mxu0 %v163
  %1396 = vmatprep.subr.mxu0 0.0
  %1397 = vmatpush1.msra.mxu0 %v164
  %1398 = vmatprep.subr.mxu0 0.0
  %1399 = vmatpush1.msra.mxu0 %v165
  %1400 = vmatprep.subr.mxu0 0.0
  %1401 = vmatpush1.msra.mxu0 0.0
  %1402 = vmatprep.subr.mxu0 0.0
  %1403 = vmatpush1.msra.mxu0 0.0
  %1404 = vmatprep.subr.mxu0 0.0
  %1405 = vmatpush1.msra.mxu0 0.0
  %1406 = vmatprep.subr.mxu0 0.0
  %1407 = vmatpush1.msra.mxu0 0.0
  %1408 = vmatprep.subr.mxu0 0.0
  %1409 = vmatpush1.msra.mxu0 0.0
  %1410 = vmatprep.subr.mxu0 0.0
  %1411 = vmatpush1.msra.mxu0 0.0
  %1412 = vmatprep.subr.mxu0 0.0
  %1413 = vmatpush1.msra.mxu0 0.0
  %1414 = vmatprep.subr.mxu0 0.0
  %1415 = vmatpush1.msra.mxu0 0.0
  %1416 = vmatprep.subr.mxu0 0.0
  %1417 = vmatpush1.msra.mxu0 0.0
  %1418 = vmatprep.subr.mxu0 0.0
  %1419 = vmatpush1.msra.mxu0 0.0
  %1420 = vmatprep.subr.mxu0 0.0
  %1421 = vmatpush1.msra.mxu0 0.0
  %1422 = vmatprep.subr.mxu0 0.0
  %1423 = vmatpush1.msra.mxu0 0.0
  %1424 = vmatprep.subr.mxu0 0.0
  %1425 = vmatpush1.msra.mxu0 0.0
  %1426 = vmatprep.subr.mxu0 0.0
  %1427 = vmatpush1.msra.mxu0 0.0
  %1428 = vmatprep.subr.mxu0 0.0
  %1429 = vmatpush1.msra.mxu0 0.0
  %1430 = vmatprep.subr.mxu0 0.0
  %1431 = vmatpush1.msra.mxu0 0.0
  %1432 = vmatprep.subr.mxu0 0.0
  %1433 = vmatpush1.msra.mxu0 0.0
  %1434 = vmatprep.subr.mxu0 0.0
  %1435 = vmatpush1.msra.mxu0 0.0
  %1436 = vmatprep.subr.mxu0 0.0
  %1437 = vmatpush1.msra.mxu0 0.0
  %1438 = vmatprep.subr.mxu0 0.0
  %1439 = vmatpush1.msra.mxu0 0.0
  %1440 = vmatprep.subr.mxu0 0.0
  %1441 = vmatpush1.msra.mxu0 0.0
  %1442 = vmatprep.subr.mxu0 0.0
  %1443 = vmatpush1.msra.mxu0 0.0
  %1444 = vmatprep.subr.mxu0 0.0
  %1445 = vmatpush1.msra.mxu0 0.0
  %1446 = vmatprep.subr.mxu0 0.0
  %1447 = vmatpush1.msra.mxu0 0.0
  %1448 = vmatprep.subr.mxu0 0.0
  %1449 = vmatpush1.msra.mxu0 0.0
  %1450 = vmatprep.subr.mxu0 0.0
  %1451 = vmatpush1.msra.mxu0 0.0
  %1452 = vmatprep.subr.mxu0 0.0
  %1453 = vmatpush1.msra.mxu0 0.0
  %1454 = vmatprep.subr.mxu0 0.0
  %1455 = vmatpush1.msra.mxu0 0.0
  %1456 = vmatprep.mubr.f32.mxu0 0.0
  %1457 = vmatmul.mubr.f32.gmra.mrb[0].mxu0 %v1320
  %v1458 = vpop.f32.mrb[0].mxu0
  %v1459 = vadd.f32 0.0, %v1458
  %v1460 = vpop.f32.mrb[0].mxu0
  %1461 = vdwg.mxu0
  %v1462 = vadd.f32 %v159, %v1459
  %v1463 = vxor.u32 %v1462, 2147483648
  %v1464 = vmul.f32 %v1463, 1.442695
  %v1465 = vpow.pop %v1464
  %v1466 = vadd.f32 %v1465, 1.0
  %v1467 = vrcp.pop %v1466
  %v1468 = vmul.f32 1.0, %v1467
  %v1469 = vadd.f32 %v1459, %v263
  %1471 = vrot.lane.b32.xlu0 %v1469, 64
  %v1472 = vpop.permute.xlu0 %1471
  %v1474 = vmul.f32 %v1468, %v1472
  %1476 = vrot.lane.b32.xlu0 %v1474, 64
  %v1477 = vpop.permute.xlu0 %1476
  %v1479 = vadd.f32 %v159, %v1477
  %v1480 = vtanh.pop %v1479
  %v1481 = vsub.f32 1.0, %v1468
  %1483 = vrot.lane.b32.xlu0 %v1480, 96
  %v1484 = vpop.permute.xlu0 %1483
  %v1486 = vmul.f32 %v1481, %v1484
  %v1487 = vmul.f32 %v1468, %v1316
  %v1488 = vadd.f32 %v1486, %v1487
  %1490 = vrot.lane.b32.xlu0 %v1488, 96
  %v1491 = vpop.permute.xlu0 %1490
  %v1492 = vsel %vm180, %v1491, 0
  %1494 = vmatprep.subr.mxu0 0.0
  %1495 = vmatpush1.msra.mxu0 %v171
  %1496 = vmatprep.subr.mxu0 0.0
  %1497 = vmatpush1.msra.mxu0 %v172
  %1498 = vmatprep.subr.mxu0 0.0
  %1499 = vmatpush1.msra.mxu0 %v173
  %1500 = vmatprep.subr.mxu0 0.0
  %1501 = vmatpush1.msra.mxu0 %v174
  %1502 = vmatprep.subr.mxu0 0.0
  %1503 = vmatpush1.msra.mxu0 0.0
  %1504 = vmatprep.subr.mxu0 0.0
  %1505 = vmatpush1.msra.mxu0 0.0
  %1506 = vmatprep.subr.mxu0 0.0
  %1507 = vmatpush1.msra.mxu0 0.0
  %1508 = vmatprep.subr.mxu0 0.0
  %1509 = vmatpush1.msra.mxu0 0.0
  %1510 = vmatprep.subr.mxu0 0.0
  %1511 = vmatpush1.msra.mxu0 0.0
  %1512 = vmatprep.subr.mxu0 0.0
  %1513 = vmatpush1.msra.mxu0 0.0
  %1514 = vmatprep.subr.mxu0 0.0
  %1515 = vmatpush1.msra.mxu0 0.0
  %1516 = vmatprep.subr.mxu0 0.0
  %1517 = vmatpush1.msra.mxu0 0.0
  %1518 = vmatprep.subr.mxu0 0.0
  %1519 = vmatpush1.msra.mxu0 0.0
  %1520 = vmatprep.subr.mxu0 0.0
  %1521 = vmatpush1.msra.mxu0 0.0
  %1522 = vmatprep.subr.mxu0 0.0
  %1523 = vmatpush1.msra.mxu0 0.0
  %1524 = vmatprep.subr.mxu0 0.0
  %1525 = vmatpush1.msra.mxu0 0.0
  %1526 = vmatprep.subr.mxu0 0.0
  %1527 = vmatpush1.msra.mxu0 0.0
  %1528 = vmatprep.subr.mxu0 0.0
  %1529 = vmatpush1.msra.mxu0 0.0
  %1530 = vmatprep.subr.mxu0 0.0
  %1531 = vmatpush1.msra.mxu0 0.0
  %1532 = vmatprep.subr.mxu0 0.0
  %1533 = vmatpush1.msra.mxu0 0.0
  %1534 = vmatprep.subr.mxu0 0.0
  %1535 = vmatpush1.msra.mxu0 0.0
  %1536 = vmatprep.subr.mxu0 0.0
  %1537 = vmatpush1.msra.mxu0 0.0
  %1538 = vmatprep.subr.mxu0 0.0
  %1539 = vmatpush1.msra.mxu0 0.0
  %1540 = vmatprep.subr.mxu0 0.0
  %1541 = vmatpush1.msra.mxu0 0.0
  %1542 = vmatprep.subr.mxu0 0.0
  %1543 = vmatpush1.msra.mxu0 0.0
  %1544 = vmatprep.subr.mxu0 0.0
  %1545 = vmatpush1.msra.mxu0 0.0
  %1546 = vmatprep.subr.mxu0 0.0
  %1547 = vmatpush1.msra.mxu0 0.0
  %1548 = vmatprep.subr.mxu0 0.0
  %1549 = vmatpush1.msra.mxu0 0.0
  %1550 = vmatprep.subr.mxu0 0.0
  %1551 = vmatpush1.msra.mxu0 0.0
  %1552 = vmatprep.subr.mxu0 0.0
  %1553 = vmatpush1.msra.mxu0 0.0
  %1554 = vmatprep.subr.mxu0 0.0
  %1555 = vmatpush1.msra.mxu0 0.0
  %1556 = vmatprep.subr.mxu0 0.0
  %1557 = vmatpush1.msra.mxu0 0.0
  %1558 = vmatprep.mubr.f32.mxu0 0.0
  %1559 = vmatmul.mubr.f32.gmra.mrb[0].mxu0 %v1492
  %v1560 = vpop.f32.mrb[0].mxu0
  %v1561 = vadd.f32 %v179, %v1560
  %v1562 = vpop.f32.mrb[0].mxu0
  %1563 = vdwg.mxu0
  %v1564 = vld [vmem:[%s1 + $0x50] sm:$0xff]
  %v1565 = vld [vmem:[%s1 + $0x58] sm:$0xff]
  %v1566 = vld [vmem:[%s1 + $0x60] sm:$0xff]
  %v1567 = vld [vmem:[%s1 + $0x68] sm:$0xff]
  %v1568 = vld [vmem:[%s2 + $0x3] sm:$0x1]
  %v1569 = vlaneseq
  %v1570 = vshrl.u32 %v1569, 7
  %v1571 = vsub.s32 0, %v1570
  %v1572 = vrot.slane %v1568, %v1571
  %1573 = vmatprep.subr.mxu0 0.0
  %1574 = vmatpush1.msra.mxu0 %v1564
  %1575 = vmatprep.subr.mxu0 0.0
  %1576 = vmatpush1.msra.mxu0 %v1565
  %1577 = vmatprep.subr.mxu0 0.0
  %1578 = vmatpush1.msra.mxu0 %v1566
  %1579 = vmatprep.subr.mxu0 0.0
  %1580 = vmatpush1.msra.mxu0 %v1567
  %1581 = vmatprep.subr.mxu0 0.0
  %1582 = vmatpush1.msra.mxu0 0.0
  %1583 = vmatprep.subr.mxu0 0.0
  %1584 = vmatpush1.msra.mxu0 0.0
  %1585 = vmatprep.subr.mxu0 0.0
  %1586 = vmatpush1.msra.mxu0 0.0
  %1587 = vmatprep.subr.mxu0 0.0
  %1588 = vmatpush1.msra.mxu0 0.0
  %1589 = vmatprep.subr.mxu0 0.0
  %1590 = vmatpush1.msra.mxu0 0.0
  %1591 = vmatprep.subr.mxu0 0.0
  %1592 = vmatpush1.msra.mxu0 0.0
  %1593 = vmatprep.subr.mxu0 0.0
  %1594 = vmatpush1.msra.mxu0 0.0
  %1595 = vmatprep.subr.mxu0 0.0
  %1596 = vmatpush1.msra.mxu0 0.0
  %1597 = vmatprep.subr.mxu0 0.0
  %1598 = vmatpush1.msra.mxu0 0.0
  %1599 = vmatprep.subr.mxu0 0.0
  %1600 = vmatpush1.msra.mxu0 0.0
  %1601 = vmatprep.subr.mxu0 0.0
  %1602 = vmatpush1.msra.mxu0 0.0
  %1603 = vmatprep.subr.mxu0 0.0
  %1604 = vmatpush1.msra.mxu0 0.0
  %1605 = vmatprep.subr.mxu0 0.0
  %1606 = vmatpush1.msra.mxu0 0.0
  %1607 = vmatprep.subr.mxu0 0.0
  %1608 = vmatpush1.msra.mxu0 0.0
  %1609 = vmatprep.subr.mxu0 0.0
  %1610 = vmatpush1.msra.mxu0 0.0
  %1611 = vmatprep.subr.mxu0 0.0
  %1612 = vmatpush1.msra.mxu0 0.0
  %1613 = vmatprep.subr.mxu0 0.0
  %1614 = vmatpush1.msra.mxu0 0.0
  %1615 = vmatprep.subr.mxu0 0.0
  %1616 = vmatpush1.msra.mxu0 0.0
  %1617 = vmatprep.subr.mxu0 0.0
  %1618 = vmatpush1.msra.mxu0 0.0
  %1619 = vmatprep.subr.mxu0 0.0
  %1620 = vmatpush1.msra.mxu0 0.0
  %1621 = vmatprep.subr.mxu0 0.0
  %1622 = vmatpush1.msra.mxu0 0.0
  %1623 = vmatprep.subr.mxu0 0.0
  %1624 = vmatpush1.msra.mxu0 0.0
  %1625 = vmatprep.subr.mxu0 0.0
  %1626 = vmatpush1.msra.mxu0 0.0
  %1627 = vmatprep.subr.mxu0 0.0
  %1628 = vmatpush1.msra.mxu0 0.0
  %1629 = vmatprep.subr.mxu0 0.0
  %1630 = vmatpush1.msra.mxu0 0.0
  %1631 = vmatprep.subr.mxu0 0.0
  %1632 = vmatpush1.msra.mxu0 0.0
  %1633 = vmatprep.subr.mxu0 0.0
  %1634 = vmatpush1.msra.mxu0 0.0
  %1635 = vmatprep.subr.mxu0 0.0
  %1636 = vmatpush1.msra.mxu0 0.0
  %1637 = vmatprep.mubr.f32.mxu0 0.0
  %1638 = vmatmul.mubr.f32.gmra.mrb[0].mxu0 %v182
  %v1639 = vpop.f32.mrb[0].mxu0
  %v1640 = vadd.f32 0.0, %v1639
  %v1641 = vpop.f32.mrb[0].mxu0
  %1642 = vdwg.mxu0
  %v1643 = vadd.f32 %v357, %v1640
  %v1644 = vxor.u32 %v1643, 2147483648
  %v1645 = vmul.f32 %v1644, 1.442695
  %v1646 = vpow.pop %v1645
  %v1647 = vadd.f32 %v1646, 1.0
  %v1648 = vrcp.pop %v1647
  %v1649 = vmul.f32 1.0, %v1648
  %1651 = vrot.lane.b32.xlu0 %v1572, 64
  %v1652 = vpop.permute.xlu0 %1651
  %v1654 = vadd.f32 %v1640, %v1652
  %1656 = vrot.lane.b32.xlu0 %v1654, 64
  %v1657 = vpop.permute.xlu0 %1656
  %v1659 = vmul.f32 %v1649, %v1657
  %1661 = vrot.lane.b32.xlu0 %v1659, 64
  %v1662 = vpop.permute.xlu0 %1661
  %v1664 = vadd.f32 %v357, %v1662
  %v1665 = vtanh.pop %v1664
  %v1666 = vsub.f32 1.0, %v1649
  %1668 = vrot.lane.b32.xlu0 %v1665, 96
  %v1669 = vpop.permute.xlu0 %1668
  %v1671 = vmul.f32 %v1666, %v1669
  %v1672 = vmul.f32 %v1649, 0.0
  %v1673 = vadd.f32 %v1671, %v1672
  %1675 = vrot.lane.b32.xlu0 %v1673, 96
  %v1676 = vpop.permute.xlu0 %1675
  %v1677 = vsel %vm180, %v1676, 0
  %1679 = vmatprep.subr.mxu0 0.0
  %1680 = vmatpush1.msra.mxu0 %v1564
  %1681 = vmatprep.subr.mxu0 0.0
  %1682 = vmatpush1.msra.mxu0 %v1565
  %1683 = vmatprep.subr.mxu0 0.0
  %1684 = vmatpush1.msra.mxu0 %v1566
  %1685 = vmatprep.subr.mxu0 0.0
  %1686 = vmatpush1.msra.mxu0 %v1567
  %1687 = vmatprep.subr.mxu0 0.0
  %1688 = vmatpush1.msra.mxu0 0.0
  %1689 = vmatprep.subr.mxu0 0.0
  %1690 = vmatpush1.msra.mxu0 0.0
  %1691 = vmatprep.subr.mxu0 0.0
  %1692 = vmatpush1.msra.mxu0 0.0
  %1693 = vmatprep.subr.mxu0 0.0
  %1694 = vmatpush1.msra.mxu0 0.0
  %1695 = vmatprep.subr.mxu0 0.0
  %1696 = vmatpush1.msra.mxu0 0.0
  %1697 = vmatprep.subr.mxu0 0.0
  %1698 = vmatpush1.msra.mxu0 0.0
  %1699 = vmatprep.subr.mxu0 0.0
  %1700 = vmatpush1.msra.mxu0 0.0
  %1701 = vmatprep.subr.mxu0 0.0
  %1702 = vmatpush1.msra.mxu0 0.0
  %1703 = vmatprep.subr.mxu0 0.0
  %1704 = vmatpush1.msra.mxu0 0.0
  %1705 = vmatprep.subr.mxu0 0.0
  %1706 = vmatpush1.msra.mxu0 0.0
  %1707 = vmatprep.subr.mxu0 0.0
  %1708 = vmatpush1.msra.mxu0 0.0
  %1709 = vmatprep.subr.mxu0 0.0
  %1710 = vmatpush1.msra.mxu0 0.0
  %1711 = vmatprep.subr.mxu0 0.0
  %1712 = vmatpush1.msra.mxu0 0.0
  %1713 = vmatprep.subr.mxu0 0.0
  %1714 = vmatpush1.msra.mxu0 0.0
  %1715 = vmatprep.subr.mxu0 0.0
  %1716 = vmatpush1.msra.mxu0 0.0
  %1717 = vmatprep.subr.mxu0 0.0
  %1718 = vmatpush1.msra.mxu0 0.0
  %1719 = vmatprep.subr.mxu0 0.0
  %1720 = vmatpush1.msra.mxu0 0.0
  %1721 = vmatprep.subr.mxu0 0.0
  %1722 = vmatpush1.msra.mxu0 0.0
  %1723 = vmatprep.subr.mxu0 0.0
  %1724 = vmatpush1.msra.mxu0 0.0
  %1725 = vmatprep.subr.mxu0 0.0
  %1726 = vmatpush1.msra.mxu0 0.0
  %1727 = vmatprep.subr.mxu0 0.0
  %1728 = vmatpush1.msra.mxu0 0.0
  %1729 = vmatprep.subr.mxu0 0.0
  %1730 = vmatpush1.msra.mxu0 0.0
  %1731 = vmatprep.subr.mxu0 0.0
  %1732 = vmatpush1.msra.mxu0 0.0
  %1733 = vmatprep.subr.mxu0 0.0
  %1734 = vmatpush1.msra.mxu0 0.0
  %1735 = vmatprep.subr.mxu0 0.0
  %1736 = vmatpush1.msra.mxu0 0.0
  %1737 = vmatprep.subr.mxu0 0.0
  %1738 = vmatpush1.msra.mxu0 0.0
  %1739 = vmatprep.subr.mxu0 0.0
  %1740 = vmatpush1.msra.mxu0 0.0
  %1741 = vmatprep.subr.mxu0 0.0
  %1742 = vmatpush1.msra.mxu0 0.0
  %1743 = vmatprep.mubr.f32.mxu0 0.0
  %1744 = vmatmul.mubr.f32.gmra.mrb[0].mxu0 %v1677
  %v1745 = vpop.f32.mrb[0].mxu0
  %v1746 = vadd.f32 0.0, %v1745
  %v1747 = vpop.f32.mrb[0].mxu0
  %1748 = vdwg.mxu0
  %v1749 = vadd.f32 %v529, %v1746
  %v1750 = vxor.u32 %v1749, 2147483648
  %v1751 = vmul.f32 %v1750, 1.442695
  %v1752 = vpow.pop %v1751
  %v1753 = vadd.f32 %v1752, 1.0
  %v1754 = vrcp.pop %v1753
  %v1755 = vmul.f32 1.0, %v1754
  %v1756 = vadd.f32 %v1746, %v1652
  %1758 = vrot.lane.b32.xlu0 %v1756, 64
  %v1759 = vpop.permute.xlu0 %1758
  %v1761 = vmul.f32 %v1755, %v1759
  %1763 = vrot.lane.b32.xlu0 %v1761, 64
  %v1764 = vpop.permute.xlu0 %1763
  %v1766 = vadd.f32 %v529, %v1764
  %v1767 = vtanh.pop %v1766
  %v1768 = vsub.f32 1.0, %v1755
  %1770 = vrot.lane.b32.xlu0 %v1767, 96
  %v1771 = vpop.permute.xlu0 %1770
  %v1773 = vmul.f32 %v1768, %v1771
  %v1774 = vmul.f32 %v1755, %v1673
  %v1775 = vadd.f32 %v1773, %v1774
  %1777 = vrot.lane.b32.xlu0 %v1775, 96
  %v1778 = vpop.permute.xlu0 %1777
  %v1779 = vsel %vm180, %v1778, 0
  %1781 = vmatprep.subr.mxu0 0.0
  %1782 = vmatpush1.msra.mxu0 %v1564
  %1783 = vmatprep.subr.mxu0 0.0
  %1784 = vmatpush1.msra.mxu0 %v1565
  %1785 = vmatprep.subr.mxu0 0.0
  %1786 = vmatpush1.msra.mxu0 %v1566
  %1787 = vmatprep.subr.mxu0 0.0
  %1788 = vmatpush1.msra.mxu0 %v1567
  %1789 = vmatprep.subr.mxu0 0.0
  %1790 = vmatpush1.msra.mxu0 0.0
  %1791 = vmatprep.subr.mxu0 0.0
  %1792 = vmatpush1.msra.mxu0 0.0
  %1793 = vmatprep.subr.mxu0 0.0
  %1794 = vmatpush1.msra.mxu0 0.0
  %1795 = vmatprep.subr.mxu0 0.0
  %1796 = vmatpush1.msra.mxu0 0.0
  %1797 = vmatprep.subr.mxu0 0.0
  %1798 = vmatpush1.msra.mxu0 0.0
  %1799 = vmatprep.subr.mxu0 0.0
  %1800 = vmatpush1.msra.mxu0 0.0
  %1801 = vmatprep.subr.mxu0 0.0
  %1802 = vmatpush1.msra.mxu0 0.0
  %1803 = vmatprep.subr.mxu0 0.0
  %1804 = vmatpush1.msra.mxu0 0.0
  %1805 = vmatprep.subr.mxu0 0.0
  %1806 = vmatpush1.msra.mxu0 0.0
  %1807 = vmatprep.subr.mxu0 0.0
  %1808 = vmatpush1.msra.mxu0 0.0
  %1809 = vmatprep.subr.mxu0 0.0
  %1810 = vmatpush1.msra.mxu0 0.0
  %1811 = vmatprep.subr.mxu0 0.0
  %1812 = vmatpush1.msra.mxu0 0.0
  %1813 = vmatprep.subr.mxu0 0.0
  %1814 = vmatpush1.msra.mxu0 0.0
  %1815 = vmatprep.subr.mxu0 0.0
  %1816 = vmatpush1.msra.mxu0 0.0
  %1817 = vmatprep.subr.mxu0 0.0
  %1818 = vmatpush1.msra.mxu0 0.0
  %1819 = vmatprep.subr.mxu0 0.0
  %1820 = vmatpush1.msra.mxu0 0.0
  %1821 = vmatprep.subr.mxu0 0.0
  %1822 = vmatpush1.msra.mxu0 0.0
  %1823 = vmatprep.subr.mxu0 0.0
  %1824 = vmatpush1.msra.mxu0 0.0
  %1825 = vmatprep.subr.mxu0 0.0
  %1826 = vmatpush1.msra.mxu0 0.0
  %1827 = vmatprep.subr.mxu0 0.0
  %1828 = vmatpush1.msra.mxu0 0.0
  %1829 = vmatprep.subr.mxu0 0.0
  %1830 = vmatpush1.msra.mxu0 0.0
  %1831 = vmatprep.subr.mxu0 0.0
  %1832 = vmatpush1.msra.mxu0 0.0
  %1833 = vmatprep.subr.mxu0 0.0
  %1834 = vmatpush1.msra.mxu0 0.0
  %1835 = vmatprep.subr.mxu0 0.0
  %1836 = vmatpush1.msra.mxu0 0.0
  %1837 = vmatprep.subr.mxu0 0.0
  %1838 = vmatpush1.msra.mxu0 0.0
  %1839 = vmatprep.subr.mxu0 0.0
  %1840 = vmatpush1.msra.mxu0 0.0
  %1841 = vmatprep.subr.mxu0 0.0
  %1842 = vmatpush1.msra.mxu0 0.0
  %1843 = vmatprep.subr.mxu0 0.0
  %1844 = vmatpush1.msra.mxu0 0.0
  %1845 = vmatprep.mubr.f32.mxu0 0.0
  %1846 = vmatmul.mubr.f32.gmra.mrb[0].mxu0 %v1779
  %v1847 = vpop.f32.mrb[0].mxu0
  %v1848 = vadd.f32 0.0, %v1847
  %v1849 = vpop.f32.mrb[0].mxu0
  %1850 = vdwg.mxu0
  %v1851 = vadd.f32 %v701, %v1848
  %v1852 = vxor.u32 %v1851, 2147483648
  %v1853 = vmul.f32 %v1852, 1.442695
  %v1854 = vpow.pop %v1853
  %v1855 = vadd.f32 %v1854, 1.0
  %v1856 = vrcp.pop %v1855
  %v1857 = vmul.f32 1.0, %v1856
  %v1858 = vadd.f32 %v1848, %v1652
  %1860 = vrot.lane.b32.xlu0 %v1858, 64
  %v1861 = vpop.permute.xlu0 %1860
  %v1863 = vmul.f32 %v1857, %v1861
  %1865 = vrot.lane.b32.xlu0 %v1863, 64
  %v1866 = vpop.permute.xlu0 %1865
  %v1868 = vadd.f32 %v701, %v1866
  %v1869 = vtanh.pop %v1868
  %v1870 = vsub.f32 1.0, %v1857
  %1872 = vrot.lane.b32.xlu0 %v1869, 96
  %v1873 = vpop.permute.xlu0 %1872
  %v1875 = vmul.f32 %v1870, %v1873
  %v1876 = vmul.f32 %v1857, %v1775
  %v1877 = vadd.f32 %v1875, %v1876
  %1879 = vrot.lane.b32.xlu0 %v1877, 96
  %v1880 = vpop.permute.xlu0 %1879
  %v1881 = vsel %vm180, %v1880, 0
  %1883 = vmatprep.subr.mxu0 0.0
  %1884 = vmatpush1.msra.mxu0 %v1564
  %1885 = vmatprep.subr.mxu0 0.0
  %1886 = vmatpush1.msra.mxu0 %v1565
  %1887 = vmatprep.subr.mxu0 0.0
  %1888 = vmatpush1.msra.mxu0 %v1566
  %1889 = vmatprep.subr.mxu0 0.0
  %1890 = vmatpush1.msra.mxu0 %v1567
  %1891 = vmatprep.subr.mxu0 0.0
  %1892 = vmatpush1.msra.mxu0 0.0
  %1893 = vmatprep.subr.mxu0 0.0
  %1894 = vmatpush1.msra.mxu0 0.0
  %1895 = vmatprep.subr.mxu0 0.0
  %1896 = vmatpush1.msra.mxu0 0.0
  %1897 = vmatprep.subr.mxu0 0.0
  %1898 = vmatpush1.msra.mxu0 0.0
  %1899 = vmatprep.subr.mxu0 0.0
  %1900 = vmatpush1.msra.mxu0 0.0
  %1901 = vmatprep.subr.mxu0 0.0
  %1902 = vmatpush1.msra.mxu0 0.0
  %1903 = vmatprep.subr.mxu0 0.0
  %1904 = vmatpush1.msra.mxu0 0.0
  %1905 = vmatprep.subr.mxu0 0.0
  %1906 = vmatpush1.msra.mxu0 0.0
  %1907 = vmatprep.subr.mxu0 0.0
  %1908 = vmatpush1.msra.mxu0 0.0
  %1909 = vmatprep.subr.mxu0 0.0
  %1910 = vmatpush1.msra.mxu0 0.0
  %1911 = vmatprep.subr.mxu0 0.0
  %1912 = vmatpush1.msra.mxu0 0.0
  %1913 = vmatprep.subr.mxu0 0.0
  %1914 = vmatpush1.msra.mxu0 0.0
  %1915 = vmatprep.subr.mxu0 0.0
  %1916 = vmatpush1.msra.mxu0 0.0
  %1917 = vmatprep.subr.mxu0 0.0
  %1918 = vmatpush1.msra.mxu0 0.0
  %1919 = vmatprep.subr.mxu0 0.0
  %1920 = vmatpush1.msra.mxu0 0.0
  %1921 = vmatprep.subr.mxu0 0.0
  %1922 = vmatpush1.msra.mxu0 0.0
  %1923 = vmatprep.subr.mxu0 0.0
  %1924 = vmatpush1.msra.mxu0 0.0
  %1925 = vmatprep.subr.mxu0 0.0
  %1926 = vmatpush1.msra.mxu0 0.0
  %1927 = vmatprep.subr.mxu0 0.0
  %1928 = vmatpush1.msra.mxu0 0.0
  %1929 = vmatprep.subr.mxu0 0.0
  %1930 = vmatpush1.msra.mxu0 0.0
  %1931 = vmatprep.subr.mxu0 0.0
  %1932 = vmatpush1.msra.mxu0 0.0
  %1933 = vmatprep.subr.mxu0 0.0
  %1934 = vmatpush1.msra.mxu0 0.0
  %1935 = vmatprep.subr.mxu0 0.0
  %1936 = vmatpush1.msra.mxu0 0.0
  %1937 = vmatprep.subr.mxu0 0.0
  %1938 = vmatpush1.msra.mxu0 0.0
  %1939 = vmatprep.subr.mxu0 0.0
  %1940 = vmatpush1.msra.mxu0 0.0
  %1941 = vmatprep.subr.mxu0 0.0
  %1942 = vmatpush1.msra.mxu0 0.0
  %1943 = vmatprep.subr.mxu0 0.0
  %1944 = vmatpush1.msra.mxu0 0.0
  %1945 = vmatprep.subr.mxu0 0.0
  %1946 = vmatpush1.msra.mxu0 0.0
  %1947 = vmatprep.mubr.f32.mxu0 0.0
  %1948 = vmatmul.mubr.f32.gmra.mrb[0].mxu0 %v1881
  %v1949 = vpop.f32.mrb[0].mxu0
  %v1950 = vadd.f32 0.0, %v1949
  %v1951 = vpop.f32.mrb[0].mxu0
  %1952 = vdwg.mxu0
  %v1953 = vadd.f32 %v873, %v1950
  %v1954 = vxor.u32 %v1953, 2147483648
  %v1955 = vmul.f32 %v1954, 1.442695
  %v1956 = vpow.pop %v1955
  %v1957 = vadd.f32 %v1956, 1.0
  %v1958 = vrcp.pop %v1957
  %v1959 = vmul.f32 1.0, %v1958
  %v1960 = vadd.f32 %v1950, %v1652
  %1962 = vrot.lane.b32.xlu0 %v1960, 64
  %v1963 = vpop.permute.xlu0 %1962
  %v1965 = vmul.f32 %v1959, %v1963
  %1967 = vrot.lane.b32.xlu0 %v1965, 64
  %v1968 = vpop.permute.xlu0 %1967
  %v1970 = vadd.f32 %v873, %v1968
  %v1971 = vtanh.pop %v1970
  %v1972 = vsub.f32 1.0, %v1959
  %1974 = vrot.lane.b32.xlu0 %v1971, 96
  %v1975 = vpop.permute.xlu0 %1974
  %v1977 = vmul.f32 %v1972, %v1975
  %v1978 = vmul.f32 %v1959, %v1877
  %v1979 = vadd.f32 %v1977, %v1978
  %1981 = vrot.lane.b32.xlu0 %v1979, 96
  %v1982 = vpop.permute.xlu0 %1981
  %v1983 = vsel %vm180, %v1982, 0
  %1985 = vmatprep.subr.mxu0 0.0
  %1986 = vmatpush1.msra.mxu0 %v1564
  %1987 = vmatprep.subr.mxu0 0.0
  %1988 = vmatpush1.msra.mxu0 %v1565
  %1989 = vmatprep.subr.mxu0 0.0
  %1990 = vmatpush1.msra.mxu0 %v1566
  %1991 = vmatprep.subr.mxu0 0.0
  %1992 = vmatpush1.msra.mxu0 %v1567
  %1993 = vmatprep.subr.mxu0 0.0
  %1994 = vmatpush1.msra.mxu0 0.0
  %1995 = vmatprep.subr.mxu0 0.0
  %1996 = vmatpush1.msra.mxu0 0.0
  %1997 = vmatprep.subr.mxu0 0.0
  %1998 = vmatpush1.msra.mxu0 0.0
  %1999 = vmatprep.subr.mxu0 0.0
  %2000 = vmatpush1.msra.mxu0 0.0
  %2001 = vmatprep.subr.mxu0 0.0
  %2002 = vmatpush1.msra.mxu0 0.0
  %2003 = vmatprep.subr.mxu0 0.0
  %2004 = vmatpush1.msra.mxu0 0.0
  %2005 = vmatprep.subr.mxu0 0.0
  %2006 = vmatpush1.msra.mxu0 0.0
  %2007 = vmatprep.subr.mxu0 0.0
  %2008 = vmatpush1.msra.mxu0 0.0
  %2009 = vmatprep.subr.mxu0 0.0
  %2010 = vmatpush1.msra.mxu0 0.0
  %2011 = vmatprep.subr.mxu0 0.0
  %2012 = vmatpush1.msra.mxu0 0.0
  %2013 = vmatprep.subr.mxu0 0.0
  %2014 = vmatpush1.msra.mxu0 0.0
  %2015 = vmatprep.subr.mxu0 0.0
  %2016 = vmatpush1.msra.mxu0 0.0
  %2017 = vmatprep.subr.mxu0 0.0
  %2018 = vmatpush1.msra.mxu0 0.0
  %2019 = vmatprep.subr.mxu0 0.0
  %2020 = vmatpush1.msra.mxu0 0.0
  %2021 = vmatprep.subr.mxu0 0.0
  %2022 = vmatpush1.msra.mxu0 0.0
  %2023 = vmatprep.subr.mxu0 0.0
  %2024 = vmatpush1.msra.mxu0 0.0
  %2025 = vmatprep.subr.mxu0 0.0
  %2026 = vmatpush1.msra.mxu0 0.0
  %2027 = vmatprep.subr.mxu0 0.0
  %2028 = vmatpush1.msra.mxu0 0.0
  %2029 = vmatprep.subr.mxu0 0.0
  %2030 = vmatpush1.msra.mxu0 0.0
  %2031 = vmatprep.subr.mxu0 0.0
  %2032 = vmatpush1.msra.mxu0 0.0
  %2033 = vmatprep.subr.mxu0 0.0
  %2034 = vmatpush1.msra.mxu0 0.0
  %2035 = vmatprep.subr.mxu0 0.0
  %2036 = vmatpush1.msra.mxu0 0.0
  %2037 = vmatprep.subr.mxu0 0.0
  %2038 = vmatpush1.msra.mxu0 0.0
  %2039 = vmatprep.subr.mxu0 0.0
  %2040 = vmatpush1.msra.mxu0 0.0
  %2041 = vmatprep.subr.mxu0 0.0
  %2042 = vmatpush1.msra.mxu0 0.0
  %2043 = vmatprep.subr.mxu0 0.0
  %2044 = vmatpush1.msra.mxu0 0.0
  %2045 = vmatprep.subr.mxu0 0.0
  %2046 = vmatpush1.msra.mxu0 0.0
  %2047 = vmatprep.subr.mxu0 0.0
  %2048 = vmatpush1.msra.mxu0 0.0
  %2049 = vmatprep.mubr.f32.mxu0 0.0
  %2050 = vmatmul.mubr.f32.gmra.mrb[0].mxu0 %v1983
  %v2051 = vpop.f32.mrb[0].mxu0
  %v2052 = vadd.f32 0.0, %v2051
  %v2053 = vpop.f32.mrb[0].mxu0
  %2054 = vdwg.mxu0
  %v2055 = vadd.f32 %v1045, %v2052
  %v2056 = vxor.u32 %v2055, 2147483648
  %v2057 = vmul.f32 %v2056, 1.442695
  %v2058 = vpow.pop %v2057
  %v2059 = vadd.f32 %v2058, 1.0
  %v2060 = vrcp.pop %v2059
  %v2061 = vmul.f32 1.0, %v2060
  %v2062 = vadd.f32 %v2052, %v1652
  %2064 = vrot.lane.b32.xlu0 %v2062, 64
  %v2065 = vpop.permute.xlu0 %2064
  %v2067 = vmul.f32 %v2061, %v2065
  %2069 = vrot.lane.b32.xlu0 %v2067, 64
  %v2070 = vpop.permute.xlu0 %2069
  %v2072 = vadd.f32 %v1045, %v2070
  %v2073 = vtanh.pop %v2072
  %v2074 = vsub.f32 1.0, %v2061
  %2076 = vrot.lane.b32.xlu0 %v2073, 96
  %v2077 = vpop.permute.xlu0 %2076
  %v2079 = vmul.f32 %v2074, %v2077
  %v2080 = vmul.f32 %v2061, %v1979
  %v2081 = vadd.f32 %v2079, %v2080
  %2083 = vrot.lane.b32.xlu0 %v2081, 96
  %v2084 = vpop.permute.xlu0 %2083
  %v2085 = vsel %vm180, %v2084, 0
  %2087 = vmatprep.subr.mxu0 0.0
  %2088 = vmatpush1.msra.mxu0 %v1564
  %2089 = vmatprep.subr.mxu0 0.0
  %2090 = vmatpush1.msra.mxu0 %v1565
  %2091 = vmatprep.subr.mxu0 0.0
  %2092 = vmatpush1.msra.mxu0 %v1566
  %2093 = vmatprep.subr.mxu0 0.0
  %2094 = vmatpush1.msra.mxu0 %v1567
  %2095 = vmatprep.subr.mxu0 0.0
  %2096 = vmatpush1.msra.mxu0 0.0
  %2097 = vmatprep.subr.mxu0 0.0
  %2098 = vmatpush1.msra.mxu0 0.0
  %2099 = vmatprep.subr.mxu0 0.0
  %2100 = vmatpush1.msra.mxu0 0.0
  %2101 = vmatprep.subr.mxu0 0.0
  %2102 = vmatpush1.msra.mxu0 0.0
  %2103 = vmatprep.subr.mxu0 0.0
  %2104 = vmatpush1.msra.mxu0 0.0
  %2105 = vmatprep.subr.mxu0 0.0
  %2106 = vmatpush1.msra.mxu0 0.0
  %2107 = vmatprep.subr.mxu0 0.0
  %2108 = vmatpush1.msra.mxu0 0.0
  %2109 = vmatprep.subr.mxu0 0.0
  %2110 = vmatpush1.msra.mxu0 0.0
  %2111 = vmatprep.subr.mxu0 0.0
  %2112 = vmatpush1.msra.mxu0 0.0
  %2113 = vmatprep.subr.mxu0 0.0
  %2114 = vmatpush1.msra.mxu0 0.0
  %2115 = vmatprep.subr.mxu0 0.0
  %2116 = vmatpush1.msra.mxu0 0.0
  %2117 = vmatprep.subr.mxu0 0.0
  %2118 = vmatpush1.msra.mxu0 0.0
  %2119 = vmatprep.subr.mxu0 0.0
  %2120 = vmatpush1.msra.mxu0 0.0
  %2121 = vmatprep.subr.mxu0 0.0
  %2122 = vmatpush1.msra.mxu0 0.0
  %2123 = vmatprep.subr.mxu0 0.0
  %2124 = vmatpush1.msra.mxu0 0.0
  %2125 = vmatprep.subr.mxu0 0.0
  %2126 = vmatpush1.msra.mxu0 0.0
  %2127 = vmatprep.subr.mxu0 0.0
  %2128 = vmatpush1.msra.mxu0 0.0
  %2129 = vmatprep.subr.mxu0 0.0
  %2130 = vmatpush1.msra.mxu0 0.0
  %2131 = vmatprep.subr.mxu0 0.0
  %2132 = vmatpush1.msra.mxu0 0.0
  %2133 = vmatprep.subr.mxu0 0.0
  %2134 = vmatpush1.msra.mxu0 0.0
  %2135 = vmatprep.subr.mxu0 0.0
  %2136 = vmatpush1.msra.mxu0 0.0
  %2137 = vmatprep.subr.mxu0 0.0
  %2138 = vmatpush1.msra.mxu0 0.0
  %2139 = vmatprep.subr.mxu0 0.0
  %2140 = vmatpush1.msra.mxu0 0.0
  %2141 = vmatprep.subr.mxu0 0.0
  %2142 = vmatpush1.msra.mxu0 0.0
  %2143 = vmatprep.subr.mxu0 0.0
  %2144 = vmatpush1.msra.mxu0 0.0
  %2145 = vmatprep.subr.mxu0 0.0
  %2146 = vmatpush1.msra.mxu0 0.0
  %2147 = vmatprep.subr.mxu0 0.0
  %2148 = vmatpush1.msra.mxu0 0.0
  %2149 = vmatprep.subr.mxu0 0.0
  %2150 = vmatpush1.msra.mxu0 0.0
  %2151 = vmatprep.mubr.f32.mxu0 0.0
  %2152 = vmatmul.mubr.f32.gmra.mrb[0].mxu0 %v2085
  %v2153 = vpop.f32.mrb[0].mxu0
  %v2154 = vadd.f32 0.0, %v2153
  %v2155 = vpop.f32.mrb[0].mxu0
  %2156 = vdwg.mxu0
  %v2157 = vadd.f32 %v1217, %v2154
  %v2158 = vxor.u32 %v2157, 2147483648
  %v2159 = vmul.f32 %v2158, 1.442695
  %v2160 = vpow.pop %v2159
  %v2161 = vadd.f32 %v2160, 1.0
  %v2162 = vrcp.pop %v2161
  %v2163 = vmul.f32 1.0, %v2162
  %v2164 = vadd.f32 %v2154, %v1652
  %2166 = vrot.lane.b32.xlu0 %v2164, 64
  %v2167 = vpop.permute.xlu0 %2166
  %v2169 = vmul.f32 %v2163, %v2167
  %2171 = vrot.lane.b32.xlu0 %v2169, 64
  %v2172 = vpop.permute.xlu0 %2171
  %v2174 = vadd.f32 %v1217, %v2172
  %v2175 = vtanh.pop %v2174
  %v2176 = vsub.f32 1.0, %v2163
  %2178 = vrot.lane.b32.xlu0 %v2175, 96
  %v2179 = vpop.permute.xlu0 %2178
  %v2181 = vmul.f32 %v2176, %v2179
  %v2182 = vmul.f32 %v2163, %v2081
  %v2183 = vadd.f32 %v2181, %v2182
  %2185 = vrot.lane.b32.xlu0 %v2183, 96
  %v2186 = vpop.permute.xlu0 %2185
  %v2187 = vsel %vm180, %v2186, 0
  %2189 = vmatprep.subr.mxu0 0.0
  %2190 = vmatpush1.msra.mxu0 %v1564
  %2191 = vmatprep.subr.mxu0 0.0
  %2192 = vmatpush1.msra.mxu0 %v1565
  %2193 = vmatprep.subr.mxu0 0.0
  %2194 = vmatpush1.msra.mxu0 %v1566
  %2195 = vmatprep.subr.mxu0 0.0
  %2196 = vmatpush1.msra.mxu0 %v1567
  %2197 = vmatprep.subr.mxu0 0.0
  %2198 = vmatpush1.msra.mxu0 0.0
  %2199 = vmatprep.subr.mxu0 0.0
  %2200 = vmatpush1.msra.mxu0 0.0
  %2201 = vmatprep.subr.mxu0 0.0
  %2202 = vmatpush1.msra.mxu0 0.0
  %2203 = vmatprep.subr.mxu0 0.0
  %2204 = vmatpush1.msra.mxu0 0.0
  %2205 = vmatprep.subr.mxu0 0.0
  %2206 = vmatpush1.msra.mxu0 0.0
  %2207 = vmatprep.subr.mxu0 0.0
  %2208 = vmatpush1.msra.mxu0 0.0
  %2209 = vmatprep.subr.mxu0 0.0
  %2210 = vmatpush1.msra.mxu0 0.0
  %2211 = vmatprep.subr.mxu0 0.0
  %2212 = vmatpush1.msra.mxu0 0.0
  %2213 = vmatprep.subr.mxu0 0.0
  %2214 = vmatpush1.msra.mxu0 0.0
  %2215 = vmatprep.subr.mxu0 0.0
  %2216 = vmatpush1.msra.mxu0 0.0
  %2217 = vmatprep.subr.mxu0 0.0
  %2218 = vmatpush1.msra.mxu0 0.0
  %2219 = vmatprep.subr.mxu0 0.0
  %2220 = vmatpush1.msra.mxu0 0.0
  %2221 = vmatprep.subr.mxu0 0.0
  %2222 = vmatpush1.msra.mxu0 0.0
  %2223 = vmatprep.subr.mxu0 0.0
  %2224 = vmatpush1.msra.mxu0 0.0
  %2225 = vmatprep.subr.mxu0 0.0
  %2226 = vmatpush1.msra.mxu0 0.0
  %2227 = vmatprep.subr.mxu0 0.0
  %2228 = vmatpush1.msra.mxu0 0.0
  %2229 = vmatprep.subr.mxu0 0.0
  %2230 = vmatpush1.msra.mxu0 0.0
  %2231 = vmatprep.subr.mxu0 0.0
  %2232 = vmatpush1.msra.mxu0 0.0
  %2233 = vmatprep.subr.mxu0 0.0
  %2234 = vmatpush1.msra.mxu0 0.0
  %2235 = vmatprep.subr.mxu0 0.0
  %2236 = vmatpush1.msra.mxu0 0.0
  %2237 = vmatprep.subr.mxu0 0.0
  %2238 = vmatpush1.msra.mxu0 0.0
  %2239 = vmatprep.subr.mxu0 0.0
  %2240 = vmatpush1.msra.mxu0 0.0
  %2241 = vmatprep.subr.mxu0 0.0
  %2242 = vmatpush1.msra.mxu0 0.0
  %2243 = vmatprep.subr.mxu0 0.0
  %2244 = vmatpush1.msra.mxu0 0.0
  %2245 = vmatprep.subr.mxu0 0.0
  %2246 = vmatpush1.msra.mxu0 0.0
  %2247 = vmatprep.subr.mxu0 0.0
  %2248 = vmatpush1.msra.mxu0 0.0
  %2249 = vmatprep.subr.mxu0 0.0
  %2250 = vmatpush1.msra.mxu0 0.0
  %2251 = vmatprep.subr.mxu0 0.0
  %2252 = vmatpush1.msra.mxu0 0.0
  %2253 = vmatprep.mubr.f32.mxu0 0.0
  %2254 = vmatmul.mubr.f32.gmra.mrb[0].mxu0 %v2187
  %v2255 = vpop.f32.mrb[0].mxu0
  %v2256 = vadd.f32 0.0, %v2255
  %v2257 = vpop.f32.mrb[0].mxu0
  %2258 = vdwg.mxu0
  %v2259 = vadd.f32 %v1389, %v2256
  %v2260 = vxor.u32 %v2259, 2147483648
  %v2261 = vmul.f32 %v2260, 1.442695
  %v2262 = vpow.pop %v2261
  %v2263 = vadd.f32 %v2262, 1.0
  %v2264 = vrcp.pop %v2263
  %v2265 = vmul.f32 1.0, %v2264
  %v2266 = vadd.f32 %v2256, %v1652
  %2268 = vrot.lane.b32.xlu0 %v2266, 64
  %v2269 = vpop.permute.xlu0 %2268
  %v2271 = vmul.f32 %v2265, %v2269
  %2273 = vrot.lane.b32.xlu0 %v2271, 64
  %v2274 = vpop.permute.xlu0 %2273
  %v2276 = vadd.f32 %v1389, %v2274
  %v2277 = vtanh.pop %v2276
  %v2278 = vsub.f32 1.0, %v2265
  %2280 = vrot.lane.b32.xlu0 %v2277, 96
  %v2281 = vpop.permute.xlu0 %2280
  %v2283 = vmul.f32 %v2278, %v2281
  %v2284 = vmul.f32 %v2265, %v2183
  %v2285 = vadd.f32 %v2283, %v2284
  %2287 = vrot.lane.b32.xlu0 %v2285, 96
  %v2288 = vpop.permute.xlu0 %2287
  %v2289 = vsel %vm180, %v2288, 0
  %2291 = vmatprep.subr.mxu0 0.0
  %2292 = vmatpush1.msra.mxu0 %v1564
  %2293 = vmatprep.subr.mxu0 0.0
  %2294 = vmatpush1.msra.mxu0 %v1565
  %2295 = vmatprep.subr.mxu0 0.0
  %2296 = vmatpush1.msra.mxu0 %v1566
  %2297 = vmatprep.subr.mxu0 0.0
  %2298 = vmatpush1.msra.mxu0 %v1567
  %2299 = vmatprep.subr.mxu0 0.0
  %2300 = vmatpush1.msra.mxu0 0.0
  %2301 = vmatprep.subr.mxu0 0.0
  %2302 = vmatpush1.msra.mxu0 0.0
  %2303 = vmatprep.subr.mxu0 0.0
  %2304 = vmatpush1.msra.mxu0 0.0
  %2305 = vmatprep.subr.mxu0 0.0
  %2306 = vmatpush1.msra.mxu0 0.0
  %2307 = vmatprep.subr.mxu0 0.0
  %2308 = vmatpush1.msra.mxu0 0.0
  %2309 = vmatprep.subr.mxu0 0.0
  %2310 = vmatpush1.msra.mxu0 0.0
  %2311 = vmatprep.subr.mxu0 0.0
  %2312 = vmatpush1.msra.mxu0 0.0
  %2313 = vmatprep.subr.mxu0 0.0
  %2314 = vmatpush1.msra.mxu0 0.0
  %2315 = vmatprep.subr.mxu0 0.0
  %2316 = vmatpush1.msra.mxu0 0.0
  %2317 = vmatprep.subr.mxu0 0.0
  %2318 = vmatpush1.msra.mxu0 0.0
  %2319 = vmatprep.subr.mxu0 0.0
  %2320 = vmatpush1.msra.mxu0 0.0
  %2321 = vmatprep.subr.mxu0 0.0
  %2322 = vmatpush1.msra.mxu0 0.0
  %2323 = vmatprep.subr.mxu0 0.0
  %2324 = vmatpush1.msra.mxu0 0.0
  %2325 = vmatprep.subr.mxu0 0.0
  %2326 = vmatpush1.msra.mxu0 0.0
  %2327 = vmatprep.subr.mxu0 0.0
  %2328 = vmatpush1.msra.mxu0 0.0
  %2329 = vmatprep.subr.mxu0 0.0
  %2330 = vmatpush1.msra.mxu0 0.0
  %2331 = vmatprep.subr.mxu0 0.0
  %2332 = vmatpush1.msra.mxu0 0.0
  %2333 = vmatprep.subr.mxu0 0.0
  %2334 = vmatpush1.msra.mxu0 0.0
  %2335 = vmatprep.subr.mxu0 0.0
  %2336 = vmatpush1.msra.mxu0 0.0
  %2337 = vmatprep.subr.mxu0 0.0
  %2338 = vmatpush1.msra.mxu0 0.0
  %2339 = vmatprep.subr.mxu0 0.0
  %2340 = vmatpush1.msra.mxu0 0.0
  %2341 = vmatprep.subr.mxu0 0.0
  %2342 = vmatpush1.msra.mxu0 0.0
  %2343 = vmatprep.subr.mxu0 0.0
  %2344 = vmatpush1.msra.mxu0 0.0
  %2345 = vmatprep.subr.mxu0 0.0
  %2346 = vmatpush1.msra.mxu0 0.0
  %2347 = vmatprep.subr.mxu0 0.0
  %2348 = vmatpush1.msra.mxu0 0.0
  %2349 = vmatprep.subr.mxu0 0.0
  %2350 = vmatpush1.msra.mxu0 0.0
  %2351 = vmatprep.subr.mxu0 0.0
  %2352 = vmatpush1.msra.mxu0 0.0
  %2353 = vmatprep.subr.mxu0 0.0
  %2354 = vmatpush1.msra.mxu0 0.0
  %2355 = vmatprep.mubr.f32.mxu0 0.0
  %2356 = vmatmul.mubr.f32.gmra.mrb[0].mxu0 %v2289
  %v2357 = vpop.f32.mrb[0].mxu0
  %v2358 = vadd.f32 0.0, %v2357
  %v2359 = vpop.f32.mrb[0].mxu0
  %2360 = vdwg.mxu0
  %v2361 = vadd.f32 %v1561, %v2358
  %v2362 = vxor.u32 %v2361, 2147483648
  %v2363 = vmul.f32 %v2362, 1.442695
  %v2364 = vpow.pop %v2363
  %v2365 = vadd.f32 %v2364, 1.0
  %v2366 = vrcp.pop %v2365
  %v2367 = vmul.f32 1.0, %v2366
  %v2368 = vadd.f32 %v2358, %v1652
  %2370 = vrot.lane.b32.xlu0 %v2368, 64
  %v2371 = vpop.permute.xlu0 %2370
  %v2373 = vmul.f32 %v2367, %v2371
  %2375 = vrot.lane.b32.xlu0 %v2373, 64
  %v2376 = vpop.permute.xlu0 %2375
  %v2378 = vadd.f32 %v1561, %v2376
  %v2379 = vtanh.pop %v2378
  %v2380 = vsub.f32 1.0, %v2367
  %2382 = vrot.lane.b32.xlu0 %v2379, 96
  %v2383 = vpop.permute.xlu0 %2382
  %v2385 = vmul.f32 %v2380, %v2383
  %v2386 = vmul.f32 %v2367, %v2285
  %v2387 = vadd.f32 %v2385, %v2386
  %v2388 = vld [vmem:[%s3] sm:$0xff]
  %v2389 = vld [vmem:[%s3 + $0x8] sm:$0xff]
  %v2390 = vld [vmem:[%s3 + $0x10] sm:$0xff]
  %v2391 = vld [vmem:[%s3 + $0x18] sm:$0xff]
  %v2392 = vld [vmem:[%s3 + $0x20] sm:$0x1]
  %v2393 = vld [vmem:[%s3 + $0x28] sm:$0xff]
  %v2394 = vld [vmem:[%s3 + $0x30] sm:$0xff]
  %v2395 = vld [vmem:[%s3 + $0x38] sm:$0xff]
  %v2396 = vld [vmem:[%s3 + $0x40] sm:$0x1]
  %v2397 = vld [vmem:[%s3 + $0x48] sm:$0x1]
  %v2398 = vlaneseq
  %v2399 = vshrl.u32 %v2398, 7
  %v2400 = vsub.s32 0, %v2399
  %v2401 = vrot.slane %v2392, %v2400
  %2403 = vrot.lane.b32.xlu0 %v2387, 96
  %v2404 = vpop.permute.xlu0 %2403
  %v2405 = vsel %vm180, %v2404, 0
  %2407 = vmatprep.subr.mxu0 0.0
  %2408 = vmatpush1.msra.mxu0 %v2388
  %2409 = vmatprep.subr.mxu0 0.0
  %2410 = vmatpush1.msra.mxu0 %v2389
  %2411 = vmatprep.subr.mxu0 0.0
  %2412 = vmatpush1.msra.mxu0 %v2390
  %2413 = vmatprep.subr.mxu0 0.0
  %2414 = vmatpush1.msra.mxu0 %v2391
  %2415 = vmatprep.subr.mxu0 0.0
  %2416 = vmatpush1.msra.mxu0 0.0
  %2417 = vmatprep.subr.mxu0 0.0
  %2418 = vmatpush1.msra.mxu0 0.0
  %2419 = vmatprep.subr.mxu0 0.0
  %2420 = vmatpush1.msra.mxu0 0.0
  %2421 = vmatprep.subr.mxu0 0.0
  %2422 = vmatpush1.msra.mxu0 0.0
  %2423 = vmatprep.subr.mxu0 0.0
  %2424 = vmatpush1.msra.mxu0 0.0
  %2425 = vmatprep.subr.mxu0 0.0
  %2426 = vmatpush1.msra.mxu0 0.0
  %2427 = vmatprep.subr.mxu0 0.0
  %2428 = vmatpush1.msra.mxu0 0.0
  %2429 = vmatprep.subr.mxu0 0.0
  %2430 = vmatpush1.msra.mxu0 0.0
  %2431 = vmatprep.subr.mxu0 0.0
  %2432 = vmatpush1.msra.mxu0 0.0
  %2433 = vmatprep.subr.mxu0 0.0
  %2434 = vmatpush1.msra.mxu0 0.0
  %2435 = vmatprep.subr.mxu0 0.0
  %2436 = vmatpush1.msra.mxu0 0.0
  %2437 = vmatprep.subr.mxu0 0.0
  %2438 = vmatpush1.msra.mxu0 0.0
  %2439 = vmatprep.subr.mxu0 0.0
  %2440 = vmatpush1.msra.mxu0 0.0
  %2441 = vmatprep.subr.mxu0 0.0
  %2442 = vmatpush1.msra.mxu0 0.0
  %2443 = vmatprep.subr.mxu0 0.0
  %2444 = vmatpush1.msra.mxu0 0.0
  %2445 = vmatprep.subr.mxu0 0.0
  %2446 = vmatpush1.msra.mxu0 0.0
  %2447 = vmatprep.subr.mxu0 0.0
  %2448 = vmatpush1.msra.mxu0 0.0
  %2449 = vmatprep.subr.mxu0 0.0
  %2450 = vmatpush1.msra.mxu0 0.0
  %2451 = vmatprep.subr.mxu0 0.0
  %2452 = vmatpush1.msra.mxu0 0.0
  %2453 = vmatprep.subr.mxu0 0.0
  %2454 = vmatpush1.msra.mxu0 0.0
  %2455 = vmatprep.subr.mxu0 0.0
  %2456 = vmatpush1.msra.mxu0 0.0
  %2457 = vmatprep.subr.mxu0 0.0
  %2458 = vmatpush1.msra.mxu0 0.0
  %2459 = vmatprep.subr.mxu0 0.0
  %2460 = vmatpush1.msra.mxu0 0.0
  %2461 = vmatprep.subr.mxu0 0.0
  %2462 = vmatpush1.msra.mxu0 0.0
  %2463 = vmatprep.subr.mxu0 0.0
  %2464 = vmatpush1.msra.mxu0 0.0
  %2465 = vmatprep.subr.mxu0 0.0
  %2466 = vmatpush1.msra.mxu0 0.0
  %2467 = vmatprep.subr.mxu0 0.0
  %2468 = vmatpush1.msra.mxu0 0.0
  %2469 = vmatprep.subr.mxu0 0.0
  %2470 = vmatpush1.msra.mxu0 0.0
  %2471 = vmatprep.mubr.f32.mxu0 0.0
  %2472 = vmatmul.mubr.f32.gmra.mrb[0].mxu0 %v2405
  %v2473 = vpop.f32.mrb[0].mxu0
  %v2474 = vadd.f32 %v2401, %v2473
  %v2475 = vpop.f32.mrb[0].mxu0
  %2476 = vdwg.mxu0
  %v2477 = vmax.f32 %v2474, 0.0
  %v2478 = vlaneseq
  %v2479 = vshrl.u32 %v2478, 7
  %v2480 = vsub.s32 0, %v2479
  %v2481 = vrot.slane %v2397, %v2480
  %vm2482 = vcmask 203776
  %v2484 = vsel %vm2482, %v2477, 0
  %vm2486 = vcmask 1040384
  %v2488 = vsel %vm2486, %v2396, 0
  %2490 = vmatprep.subr.mxu0 0.0
  %2491 = vmatpush1.msra.mxu0 %v2393
  %2492 = vmatprep.subr.mxu0 0.0
  %2493 = vmatpush1.msra.mxu0 %v2394
  %2494 = vmatprep.subr.mxu0 0.0
  %2495 = vmatpush1.msra.mxu0 %v2395
  %2496 = vmatprep.subr.mxu0 0.0
  %2497 = vmatpush1.msra.mxu0 %v2488
  %2498 = vmatprep.subr.mxu0 0.0
  %2499 = vmatpush1.msra.mxu0 0.0
  %2500 = vmatprep.subr.mxu0 0.0
  %2501 = vmatpush1.msra.mxu0 0.0
  %2502 = vmatprep.subr.mxu0 0.0
  %2503 = vmatpush1.msra.mxu0 0.0
  %2504 = vmatprep.subr.mxu0 0.0
  %2505 = vmatpush1.msra.mxu0 0.0
  %2506 = vmatprep.subr.mxu0 0.0
  %2507 = vmatpush1.msra.mxu0 0.0
  %2508 = vmatprep.subr.mxu0 0.0
  %2509 = vmatpush1.msra.mxu0 0.0
  %2510 = vmatprep.subr.mxu0 0.0
  %2511 = vmatpush1.msra.mxu0 0.0
  %2512 = vmatprep.subr.mxu0 0.0
  %2513 = vmatpush1.msra.mxu0 0.0
  %2514 = vmatprep.subr.mxu0 0.0
  %2515 = vmatpush1.msra.mxu0 0.0
  %2516 = vmatprep.subr.mxu0 0.0
  %2517 = vmatpush1.msra.mxu0 0.0
  %2518 = vmatprep.subr.mxu0 0.0
  %2519 = vmatpush1.msra.mxu0 0.0
  %2520 = vmatprep.subr.mxu0 0.0
  %2521 = vmatpush1.msra.mxu0 0.0
  %2522 = vmatprep.subr.mxu0 0.0
  %2523 = vmatpush1.msra.mxu0 0.0
  %2524 = vmatprep.subr.mxu0 0.0
  %2525 = vmatpush1.msra.mxu0 0.0
  %2526 = vmatprep.subr.mxu0 0.0
  %2527 = vmatpush1.msra.mxu0 0.0
  %2528 = vmatprep.subr.mxu0 0.0
  %2529 = vmatpush1.msra.mxu0 0.0
  %2530 = vmatprep.subr.mxu0 0.0
  %2531 = vmatpush1.msra.mxu0 0.0
  %2532 = vmatprep.subr.mxu0 0.0
  %2533 = vmatpush1.msra.mxu0 0.0
  %2534 = vmatprep.subr.mxu0 0.0
  %2535 = vmatpush1.msra.mxu0 0.0
  %2536 = vmatprep.subr.mxu0 0.0
  %2537 = vmatpush1.msra.mxu0 0.0
  %2538 = vmatprep.subr.mxu0 0.0
  %2539 = vmatpush1.msra.mxu0 0.0
  %2540 = vmatprep.subr.mxu0 0.0
  %2541 = vmatpush1.msra.mxu0 0.0
  %2542 = vmatprep.subr.mxu0 0.0
  %2543 = vmatpush1.msra.mxu0 0.0
  %2544 = vmatprep.subr.mxu0 0.0
  %2545 = vmatpush1.msra.mxu0 0.0
  %2546 = vmatprep.subr.mxu0 0.0
  %2547 = vmatpush1.msra.mxu0 0.0
  %2548 = vmatprep.subr.mxu0 0.0
  %2549 = vmatpush1.msra.mxu0 0.0
  %2550 = vmatprep.subr.mxu0 0.0
  %2551 = vmatpush1.msra.mxu0 0.0
  %2552 = vmatprep.subr.mxu0 0.0
  %2553 = vmatpush1.msra.mxu0 0.0
  %2554 = vmatprep.mubr.f32.mxu0 0.0
  %2555 = vmatmul.mubr.f32.gmra.mrb[0].mxu0 %v2484
  %v2556 = vpop.f32.mrb[0].mxu0
  %v2557 = vadd.f32 %v2481, %v2556
  %v2558 = vpop.f32.mrb[0].mxu0
  %2559 = vdwg.mxu0
  %vm2560 = vcmask 31744
  %2561 = vst.msk [vmem:[%s4] sm:$0xff] %vm2560, %v2557
  // Predicated region
  $region18: #{gru_model_forward.1} parent=0 // pred_check
    _
  $region19: #{gru_model_forward.1} parent=0 // pred_check_branch
    %2563 = sbr.rel (0) target = $region21
  $region20: #{gru_model_forward.1} parent=0 // pred_region
    _
  $region21: #{gru_model_forward.1} parent=0 // pred_fallthru
    _
  // Predicated region
  $region22: #{gru_model_forward.1} parent=0 // pred_check
    _
  $region23: #{gru_model_forward.1} parent=0 // pred_check_branch
    %2565 = sbr.rel (0) target = $region25
  $region24: #{gru_model_forward.1} parent=0 // pred_region
    _
  $region25: #{gru_model_forward.1} parent=0 // pred_fallthru
    _

</llo_original>
